<compile_context>
chip_gen: v7x
topology: tpu7x:2x2x1
jax: 0.10.0
libtpu: 0.0.40
codegen_flags: <defaults>
</compile_context>

<pallas_src>
from functools import partial

import jax
import jax.numpy as jnp
from jax.experimental import pallas as pl
from jax.experimental.pallas import tpu as pltpu


def _spa_block_kernel(xe_ref, mask_ref, w1_ref, b1_ref, w2_ref, b2_ref, o_ref,
                      y1_ref, *, C, Mp, P, Wp, neg_slope):
    """Fused SpaBlock for one batch image (flattened padded-grid layout).

    xe_ref:   (C, Mp + 4P) zero-extended, flattened, spatially padded input
    mask_ref: (1, Mp + 2P) 1.0 on true-interior positions of the extended grid
    w*_ref:   (9, C, C)    conv weights, tap-major; each tap is (Cout, Cin)
    b*_ref:   (C, 1)
    o_ref:    (C, Mp)      output on the padded grid (caller extracts interior)
    y1_ref:   (C, Mp + 2P) VMEM scratch holding the first conv's activation
    """
    L1 = Mp + 2 * P

    # ---- conv1 + bias + LeakyReLU, computed on the extended grid ------------
    acc1 = jnp.zeros((C, L1), jnp.float32)
    for t in range(9):
        dy, dx = t // 3, t % 3
        off = P + (dy - 1) * Wp + (dx - 1)            # static, in [0, 2P]
        tap = xe_ref[:, off:off + L1]                 # shifted im2col tap (C, L1)
        acc1 = acc1 + jnp.dot(w1_ref[t], tap, preferred_element_type=jnp.float32)
    acc1 = acc1 + b1_ref[...]
    y1 = jnp.where(acc1 >= 0, acc1, neg_slope * acc1)
    # Zero everything outside the true interior == the zero padding conv2 expects.
    y1_ref[...] = y1 * mask_ref[...]

    # ---- conv2 + bias + LeakyReLU + residual, on the padded grid ------------
    acc2 = jnp.zeros((C, Mp), jnp.float32)
    for t in range(9):
        dy, dx = t // 3, t % 3
        off = P + (dy - 1) * Wp + (dx - 1)
        acc2 = acc2 + jnp.dot(w2_ref[t], y1_ref[:, off:off + Mp],
                              preferred_element_type=jnp.float32)
    acc2 = acc2 + b2_ref[...]
    y2 = jnp.where(acc2 >= 0, acc2, neg_slope * acc2)

    o_ref[...] = (y2 + xe_ref[:, 2 * P:2 * P + Mp]).astype(o_ref.dtype)


def spa_block_fwd(x, w1, b1, w2, b2, neg_slope=0.1):
    """x: (N, C, H, W) NCHW; w*: (C, C, 3, 3); b*: (C,).  Returns (N, C, H, W)."""
    N, C, H, W = x.shape
    Hp, Wp = H + 2, W + 2
    Mp = Hp * Wp
    P = Wp + 1
    L1 = Mp + 2 * P

    # Zero-pad spatially, flatten the padded grid, then extend the flat axis so
    # every 3x3 tap is a plain static shifted slice inside the kernel.
    xp = jnp.pad(x, ((0, 0), (0, 0), (1, 1), (1, 1)))
    xe = jnp.pad(xp.reshape(N, C, Mp), ((0, 0), (0, 0), (2 * P, 2 * P)))

    # Interior mask on the extended grid (position j <-> padded-grid index j - P).
    mask = jnp.pad(
        jnp.pad(jnp.ones((H, W), x.dtype), ((1, 1), (1, 1))).reshape(Mp),
        (P, P)).reshape(1, L1)

    # (Cout, Cin, 3, 3) -> (9, Cout, Cin), tap-major (t = dy*3 + dx).
    w1t = jnp.transpose(w1, (2, 3, 0, 1)).reshape(9, C, C)
    w2t = jnp.transpose(w2, (2, 3, 0, 1)).reshape(9, C, C)
    b1c = b1.reshape(C, 1).astype(jnp.float32)
    b2c = b2.reshape(C, 1).astype(jnp.float32)

    kern = partial(_spa_block_kernel, C=C, Mp=Mp, P=P, Wp=Wp, neg_slope=neg_slope)
    out_p = pl.pallas_call(
        kern,
        out_shape=jax.ShapeDtypeStruct((N, C, Mp), x.dtype),
        grid=(N,),
        in_specs=[
            pl.BlockSpec((None, C, Mp + 4 * P), lambda n: (n, 0, 0)),  # xe
            pl.BlockSpec((1, L1), lambda n: (0, 0)),                   # mask
            pl.BlockSpec((9, C, C), lambda n: (0, 0, 0)),              # w1
            pl.BlockSpec((C, 1), lambda n: (0, 0)),                    # b1
            pl.BlockSpec((9, C, C), lambda n: (0, 0, 0)),              # w2
            pl.BlockSpec((C, 1), lambda n: (0, 0)),                    # b2
        ],
        out_specs=pl.BlockSpec((None, C, Mp), lambda n: (n, 0, 0)),
        scratch_shapes=[pltpu.VMEM((C, L1), jnp.float32)],
        compiler_params=pltpu.CompilerParams(
            dimension_semantics=("parallel",),
            vmem_limit_bytes=32 * 1024 * 1024,
        ),
    )(xe, mask, w1t, b1c, w2t, b2c)

    # Extract the true interior of the padded grid (border rows were scratch work).
    return out_p.reshape(N, C, Hp, Wp)[:, :, 1:H + 1, 1:W + 1]


if __name__ == "__main__":
    nc, N, H, W = 8, 2, 16, 16
    key = jax.random.PRNGKey(0)
    kx, kw1, kb1, kw2, kb2 = jax.random.split(key, 5)

    x = jax.random.uniform(kx, (N, nc, H, W), jnp.float32)
    fan = nc * 9
    w1 = jax.random.normal(kw1, (nc, nc, 3, 3), jnp.float32) / fan ** 0.5
    b1 = 0.01 * jax.random.normal(kb1, (nc,), jnp.float32)
    w2 = jax.random.normal(kw2, (nc, nc, 3, 3), jnp.float32) / fan ** 0.5
    b2 = 0.01 * jax.random.normal(kb2, (nc,), jnp.float32)

    fwd = jax.jit(spa_block_fwd)
    out = fwd(x, w1, b1, w2, b2)
    jax.block_until_ready(out)

    # Plain-XLA reference for correctness.
    def ref(x, w1, b1, w2, b2):
        def conv(v, w, b):
            y = jax.lax.conv_general_dilated(
                v, w, (1, 1), ((1, 1), (1, 1)),
                dimension_numbers=("NCHW", "OIHW", "NCHW"),
                precision=jax.lax.Precision.HIGHEST)
            return y + b[None, :, None, None]

        def lrelu(v):
            return jnp.where(v >= 0, v, 0.1 * v)

        return x + lrelu(conv(lrelu(conv(x, w1, b1)), w2, b2))

    expected = ref(x, w1, b1, w2, b2)
    assert out.shape == (N, nc, H, W)
    assert out.dtype == jnp.float32
    max_err = float(jnp.max(jnp.abs(out - expected)))
    assert jnp.allclose(out, expected, rtol=2e-3, atol=2e-3), max_err
    print("KERNEL_OK")
</pallas_src>

<mosaic_0001>
module attributes {stable_mosaic.version = 11 : i64} {
  func.func @_spa_block_kernel(%arg0: i32, %arg1: memref<1x8x400xf32, #tpu.memory_space<vmem>>, %arg2: memref<1x362xf32, #tpu.memory_space<vmem>>, %arg3: memref<9x8x8xf32, #tpu.memory_space<vmem>>, %arg4: memref<8x1xf32, #tpu.memory_space<vmem>>, %arg5: memref<9x8x8xf32, #tpu.memory_space<vmem>>, %arg6: memref<8x1xf32, #tpu.memory_space<vmem>>, %arg7: memref<1x8x324xf32, #tpu.memory_space<vmem>>, %arg8: memref<8x362xf32, #tpu.memory_space<vmem>>) attributes {dimension_semantics = [#tpu.dimension_semantics<parallel>], iteration_bounds = array<i64: 2>, scalar_prefetch = 0 : i64, scratch_operands = 1 : i64, tpu.core_type = #tpu.core_type<tc>, window_params = [{transform_indices = @transform_0, window_bounds = array<i64: 1, 8, 400>}, {pipeline_mode = #tpu.pipeline_mode<synchronous>, transform_indices = @transform_1, window_bounds = array<i64: 1, 362>}, {pipeline_mode = #tpu.pipeline_mode<synchronous>, transform_indices = @transform_2, window_bounds = array<i64: 9, 8, 8>}, {pipeline_mode = #tpu.pipeline_mode<synchronous>, transform_indices = @transform_3, window_bounds = array<i64: 8, 1>}, {pipeline_mode = #tpu.pipeline_mode<synchronous>, transform_indices = @transform_4, window_bounds = array<i64: 9, 8, 8>}, {pipeline_mode = #tpu.pipeline_mode<synchronous>, transform_indices = @transform_5, window_bounds = array<i64: 8, 1>}, {transform_indices = @transform_6, window_bounds = array<i64: 1, 8, 324>}]} {
    %cst = arith.constant 0.000000e+00 : f32
    %0 = vector.broadcast %cst : f32 to vector<8x362xf32>
    %c0 = arith.constant 0 : index
    %c0_0 = arith.constant 0 : index
    %c0_1 = arith.constant 0 : index
    %1 = vector.load %arg1[%c0, %c0_0, %c0_1] : memref<1x8x400xf32, #tpu.memory_space<vmem>>, vector<1x8x362xf32>
    %2 = vector.shape_cast %1 : vector<1x8x362xf32> to vector<8x362xf32>
    %c0_2 = arith.constant 0 : index
    %c0_3 = arith.constant 0 : index
    %c0_4 = arith.constant 0 : index
    %3 = vector.load %arg3[%c0_2, %c0_3, %c0_4] : memref<9x8x8xf32, #tpu.memory_space<vmem>>, vector<1x8x8xf32>
    %4 = vector.shape_cast %3 : vector<1x8x8xf32> to vector<8x8xf32>
    %cst_5 = arith.constant dense<0.000000e+00> : vector<8x362xf32>
    %5 = tpu.matmul %4, %2, %cst_5 {dimension_numbers = #tpu.dot_dimension_numbers<[1], [0], [0], [1], [0, 0, 1, 1], [], []>} : vector<8x8xf32>, vector<8x362xf32>, vector<8x362xf32> -> vector<8x362xf32>
    %6 = arith.addf %0, %5 : vector<8x362xf32>
    %c0_6 = arith.constant 0 : index
    %c0_7 = arith.constant 0 : index
    %c1 = arith.constant 1 : index
    %7 = vector.load %arg1[%c0_6, %c0_7, %c1] : memref<1x8x400xf32, #tpu.memory_space<vmem>>, vector<1x8x362xf32>
    %8 = vector.shape_cast %7 : vector<1x8x362xf32> to vector<8x362xf32>
    %c1_8 = arith.constant 1 : index
    %c0_9 = arith.constant 0 : index
    %c0_10 = arith.constant 0 : index
    %9 = vector.load %arg3[%c1_8, %c0_9, %c0_10] : memref<9x8x8xf32, #tpu.memory_space<vmem>>, vector<1x8x8xf32>
    %10 = vector.shape_cast %9 : vector<1x8x8xf32> to vector<8x8xf32>
    %cst_11 = arith.constant dense<0.000000e+00> : vector<8x362xf32>
    %11 = tpu.matmul %10, %8, %cst_11 {dimension_numbers = #tpu.dot_dimension_numbers<[1], [0], [0], [1], [0, 0, 1, 1], [], []>} : vector<8x8xf32>, vector<8x362xf32>, vector<8x362xf32> -> vector<8x362xf32>
    %12 = arith.addf %6, %11 : vector<8x362xf32>
    %c0_12 = arith.constant 0 : index
    %c0_13 = arith.constant 0 : index
    %c2 = arith.constant 2 : index
    %13 = vector.load %arg1[%c0_12, %c0_13, %c2] : memref<1x8x400xf32, #tpu.memory_space<vmem>>, vector<1x8x362xf32>
    %14 = vector.shape_cast %13 : vector<1x8x362xf32> to vector<8x362xf32>
    %c2_14 = arith.constant 2 : index
    %c0_15 = arith.constant 0 : index
    %c0_16 = arith.constant 0 : index
    %15 = vector.load %arg3[%c2_14, %c0_15, %c0_16] : memref<9x8x8xf32, #tpu.memory_space<vmem>>, vector<1x8x8xf32>
    %16 = vector.shape_cast %15 : vector<1x8x8xf32> to vector<8x8xf32>
    %cst_17 = arith.constant dense<0.000000e+00> : vector<8x362xf32>
    %17 = tpu.matmul %16, %14, %cst_17 {dimension_numbers = #tpu.dot_dimension_numbers<[1], [0], [0], [1], [0, 0, 1, 1], [], []>} : vector<8x8xf32>, vector<8x362xf32>, vector<8x362xf32> -> vector<8x362xf32>
    %18 = arith.addf %12, %17 : vector<8x362xf32>
    %c0_18 = arith.constant 0 : index
    %c0_19 = arith.constant 0 : index
    %c18 = arith.constant 18 : index
    %19 = vector.load %arg1[%c0_18, %c0_19, %c18] : memref<1x8x400xf32, #tpu.memory_space<vmem>>, vector<1x8x362xf32>
    %20 = vector.shape_cast %19 : vector<1x8x362xf32> to vector<8x362xf32>
    %c3 = arith.constant 3 : index
    %c0_20 = arith.constant 0 : index
    %c0_21 = arith.constant 0 : index
    %21 = vector.load %arg3[%c3, %c0_20, %c0_21] : memref<9x8x8xf32, #tpu.memory_space<vmem>>, vector<1x8x8xf32>
    %22 = vector.shape_cast %21 : vector<1x8x8xf32> to vector<8x8xf32>
    %cst_22 = arith.constant dense<0.000000e+00> : vector<8x362xf32>
    %23 = tpu.matmul %22, %20, %cst_22 {dimension_numbers = #tpu.dot_dimension_numbers<[1], [0], [0], [1], [0, 0, 1, 1], [], []>} : vector<8x8xf32>, vector<8x362xf32>, vector<8x362xf32> -> vector<8x362xf32>
    %24 = arith.addf %18, %23 : vector<8x362xf32>
    %c0_23 = arith.constant 0 : index
    %c0_24 = arith.constant 0 : index
    %c19 = arith.constant 19 : index
    %25 = vector.load %arg1[%c0_23, %c0_24, %c19] : memref<1x8x400xf32, #tpu.memory_space<vmem>>, vector<1x8x362xf32>
    %26 = vector.shape_cast %25 : vector<1x8x362xf32> to vector<8x362xf32>
    %c4 = arith.constant 4 : index
    %c0_25 = arith.constant 0 : index
    %c0_26 = arith.constant 0 : index
    %27 = vector.load %arg3[%c4, %c0_25, %c0_26] : memref<9x8x8xf32, #tpu.memory_space<vmem>>, vector<1x8x8xf32>
    %28 = vector.shape_cast %27 : vector<1x8x8xf32> to vector<8x8xf32>
    %cst_27 = arith.constant dense<0.000000e+00> : vector<8x362xf32>
    %29 = tpu.matmul %28, %26, %cst_27 {dimension_numbers = #tpu.dot_dimension_numbers<[1], [0], [0], [1], [0, 0, 1, 1], [], []>} : vector<8x8xf32>, vector<8x362xf32>, vector<8x362xf32> -> vector<8x362xf32>
    %30 = arith.addf %24, %29 : vector<8x362xf32>
    %c0_28 = arith.constant 0 : index
    %c0_29 = arith.constant 0 : index
    %c20 = arith.constant 20 : index
    %31 = vector.load %arg1[%c0_28, %c0_29, %c20] : memref<1x8x400xf32, #tpu.memory_space<vmem>>, vector<1x8x362xf32>
    %32 = vector.shape_cast %31 : vector<1x8x362xf32> to vector<8x362xf32>
    %c5 = arith.constant 5 : index
    %c0_30 = arith.constant 0 : index
    %c0_31 = arith.constant 0 : index
    %33 = vector.load %arg3[%c5, %c0_30, %c0_31] : memref<9x8x8xf32, #tpu.memory_space<vmem>>, vector<1x8x8xf32>
    %34 = vector.shape_cast %33 : vector<1x8x8xf32> to vector<8x8xf32>
    %cst_32 = arith.constant dense<0.000000e+00> : vector<8x362xf32>
    %35 = tpu.matmul %34, %32, %cst_32 {dimension_numbers = #tpu.dot_dimension_numbers<[1], [0], [0], [1], [0, 0, 1, 1], [], []>} : vector<8x8xf32>, vector<8x362xf32>, vector<8x362xf32> -> vector<8x362xf32>
    %36 = arith.addf %30, %35 : vector<8x362xf32>
    %c0_33 = arith.constant 0 : index
    %c0_34 = arith.constant 0 : index
    %c36 = arith.constant 36 : index
    %37 = vector.load %arg1[%c0_33, %c0_34, %c36] : memref<1x8x400xf32, #tpu.memory_space<vmem>>, vector<1x8x362xf32>
    %38 = vector.shape_cast %37 : vector<1x8x362xf32> to vector<8x362xf32>
    %c6 = arith.constant 6 : index
    %c0_35 = arith.constant 0 : index
    %c0_36 = arith.constant 0 : index
    %39 = vector.load %arg3[%c6, %c0_35, %c0_36] : memref<9x8x8xf32, #tpu.memory_space<vmem>>, vector<1x8x8xf32>
    %40 = vector.shape_cast %39 : vector<1x8x8xf32> to vector<8x8xf32>
    %cst_37 = arith.constant dense<0.000000e+00> : vector<8x362xf32>
    %41 = tpu.matmul %40, %38, %cst_37 {dimension_numbers = #tpu.dot_dimension_numbers<[1], [0], [0], [1], [0, 0, 1, 1], [], []>} : vector<8x8xf32>, vector<8x362xf32>, vector<8x362xf32> -> vector<8x362xf32>
    %42 = arith.addf %36, %41 : vector<8x362xf32>
    %c0_38 = arith.constant 0 : index
    %c0_39 = arith.constant 0 : index
    %c37 = arith.constant 37 : index
    %43 = vector.load %arg1[%c0_38, %c0_39, %c37] : memref<1x8x400xf32, #tpu.memory_space<vmem>>, vector<1x8x362xf32>
    %44 = vector.shape_cast %43 : vector<1x8x362xf32> to vector<8x362xf32>
    %c7 = arith.constant 7 : index
    %c0_40 = arith.constant 0 : index
    %c0_41 = arith.constant 0 : index
    %45 = vector.load %arg3[%c7, %c0_40, %c0_41] : memref<9x8x8xf32, #tpu.memory_space<vmem>>, vector<1x8x8xf32>
    %46 = vector.shape_cast %45 : vector<1x8x8xf32> to vector<8x8xf32>
    %cst_42 = arith.constant dense<0.000000e+00> : vector<8x362xf32>
    %47 = tpu.matmul %46, %44, %cst_42 {dimension_numbers = #tpu.dot_dimension_numbers<[1], [0], [0], [1], [0, 0, 1, 1], [], []>} : vector<8x8xf32>, vector<8x362xf32>, vector<8x362xf32> -> vector<8x362xf32>
    %48 = arith.addf %42, %47 : vector<8x362xf32>
    %c0_43 = arith.constant 0 : index
    %c0_44 = arith.constant 0 : index
    %c38 = arith.constant 38 : index
    %49 = vector.load %arg1[%c0_43, %c0_44, %c38] : memref<1x8x400xf32, #tpu.memory_space<vmem>>, vector<1x8x362xf32>
    %50 = vector.shape_cast %49 : vector<1x8x362xf32> to vector<8x362xf32>
    %c8 = arith.constant 8 : index
    %c0_45 = arith.constant 0 : index
    %c0_46 = arith.constant 0 : index
    %51 = vector.load %arg3[%c8, %c0_45, %c0_46] : memref<9x8x8xf32, #tpu.memory_space<vmem>>, vector<1x8x8xf32>
    %52 = vector.shape_cast %51 : vector<1x8x8xf32> to vector<8x8xf32>
    %cst_47 = arith.constant dense<0.000000e+00> : vector<8x362xf32>
    %53 = tpu.matmul %52, %50, %cst_47 {dimension_numbers = #tpu.dot_dimension_numbers<[1], [0], [0], [1], [0, 0, 1, 1], [], []>} : vector<8x8xf32>, vector<8x362xf32>, vector<8x362xf32> -> vector<8x362xf32>
    %54 = arith.addf %48, %53 : vector<8x362xf32>
    %c0_48 = arith.constant 0 : index
    %c0_49 = arith.constant 0 : index
    %55 = vector.load %arg4[%c0_48, %c0_49] : memref<8x1xf32, #tpu.memory_space<vmem>>, vector<8x1xf32>
    %56 = vector.broadcast %55 : vector<8x1xf32> to vector<8x362xf32>
    %57 = arith.addf %54, %56 : vector<8x362xf32>
    %cst_50 = arith.constant 0.000000e+00 : f32
    %58 = vector.broadcast %cst_50 : f32 to vector<8x362xf32>
    %59 = arith.cmpf oge, %57, %58 : vector<8x362xf32>
    %cst_51 = arith.constant 1.000000e-01 : f32
    %60 = vector.broadcast %cst_51 : f32 to vector<8x362xf32>
    %61 = arith.mulf %60, %57 : vector<8x362xf32>
    %62 = arith.select %59, %57, %61 : vector<8x362xi1>, vector<8x362xf32>
    %c0_52 = arith.constant 0 : index
    %c0_53 = arith.constant 0 : index
    %63 = vector.load %arg2[%c0_52, %c0_53] : memref<1x362xf32, #tpu.memory_space<vmem>>, vector<1x362xf32>
    %64 = vector.broadcast %63 : vector<1x362xf32> to vector<8x362xf32>
    %65 = arith.mulf %62, %64 : vector<8x362xf32>
    %c0_54 = arith.constant 0 : index
    %c0_55 = arith.constant 0 : index
    %66 = vector.load %arg8[%c0_54, %c0_55] : memref<8x362xf32, #tpu.memory_space<vmem>>, vector<8x362xf32>
    tpu.vector_store %arg8[%c0_54, %c0_55], %65 {strides = array<i32>} : memref<8x362xf32, #tpu.memory_space<vmem>>, vector<8x362xf32>,
    %cst_56 = arith.constant 0.000000e+00 : f32
    %67 = vector.broadcast %cst_56 : f32 to vector<8x324xf32>
    %c0_57 = arith.constant 0 : index
    %c0_58 = arith.constant 0 : index
    %c0_59 = arith.constant 0 : index
    %68 = vector.load %arg5[%c0_57, %c0_58, %c0_59] : memref<9x8x8xf32, #tpu.memory_space<vmem>>, vector<1x8x8xf32>
    %69 = vector.shape_cast %68 : vector<1x8x8xf32> to vector<8x8xf32>
    %c0_60 = arith.constant 0 : index
    %c0_61 = arith.constant 0 : index
    %70 = vector.load %arg8[%c0_60, %c0_61] : memref<8x362xf32, #tpu.memory_space<vmem>>, vector<8x324xf32>
    %cst_62 = arith.constant dense<0.000000e+00> : vector<8x324xf32>
    %71 = tpu.matmul %69, %70, %cst_62 {dimension_numbers = #tpu.dot_dimension_numbers<[1], [0], [0], [1], [0, 0, 1, 1], [], []>} : vector<8x8xf32>, vector<8x324xf32>, vector<8x324xf32> -> vector<8x324xf32>
    %72 = arith.addf %67, %71 : vector<8x324xf32>
    %c1_63 = arith.constant 1 : index
    %c0_64 = arith.constant 0 : index
    %c0_65 = arith.constant 0 : index
    %73 = vector.load %arg5[%c1_63, %c0_64, %c0_65] : memref<9x8x8xf32, #tpu.memory_space<vmem>>, vector<1x8x8xf32>
    %74 = vector.shape_cast %73 : vector<1x8x8xf32> to vector<8x8xf32>
    %c0_66 = arith.constant 0 : index
    %c1_67 = arith.constant 1 : index
    %75 = vector.load %arg8[%c0_66, %c1_67] : memref<8x362xf32, #tpu.memory_space<vmem>>, vector<8x324xf32>
    %cst_68 = arith.constant dense<0.000000e+00> : vector<8x324xf32>
    %76 = tpu.matmul %74, %75, %cst_68 {dimension_numbers = #tpu.dot_dimension_numbers<[1], [0], [0], [1], [0, 0, 1, 1], [], []>} : vector<8x8xf32>, vector<8x324xf32>, vector<8x324xf32> -> vector<8x324xf32>
    %77 = arith.addf %72, %76 : vector<8x324xf32>
    %c2_69 = arith.constant 2 : index
    %c0_70 = arith.constant 0 : index
    %c0_71 = arith.constant 0 : index
    %78 = vector.load %arg5[%c2_69, %c0_70, %c0_71] : memref<9x8x8xf32, #tpu.memory_space<vmem>>, vector<1x8x8xf32>
    %79 = vector.shape_cast %78 : vector<1x8x8xf32> to vector<8x8xf32>
    %c0_72 = arith.constant 0 : index
    %c2_73 = arith.constant 2 : index
    %80 = vector.load %arg8[%c0_72, %c2_73] : memref<8x362xf32, #tpu.memory_space<vmem>>, vector<8x324xf32>
    %cst_74 = arith.constant dense<0.000000e+00> : vector<8x324xf32>
    %81 = tpu.matmul %79, %80, %cst_74 {dimension_numbers = #tpu.dot_dimension_numbers<[1], [0], [0], [1], [0, 0, 1, 1], [], []>} : vector<8x8xf32>, vector<8x324xf32>, vector<8x324xf32> -> vector<8x324xf32>
    %82 = arith.addf %77, %81 : vector<8x324xf32>
    %c3_75 = arith.constant 3 : index
    %c0_76 = arith.constant 0 : index
    %c0_77 = arith.constant 0 : index
    %83 = vector.load %arg5[%c3_75, %c0_76, %c0_77] : memref<9x8x8xf32, #tpu.memory_space<vmem>>, vector<1x8x8xf32>
    %84 = vector.shape_cast %83 : vector<1x8x8xf32> to vector<8x8xf32>
    %c0_78 = arith.constant 0 : index
    %c18_79 = arith.constant 18 : index
    %85 = vector.load %arg8[%c0_78, %c18_79] : memref<8x362xf32, #tpu.memory_space<vmem>>, vector<8x324xf32>
    %cst_80 = arith.constant dense<0.000000e+00> : vector<8x324xf32>
    %86 = tpu.matmul %84, %85, %cst_80 {dimension_numbers = #tpu.dot_dimension_numbers<[1], [0], [0], [1], [0, 0, 1, 1], [], []>} : vector<8x8xf32>, vector<8x324xf32>, vector<8x324xf32> -> vector<8x324xf32>
    %87 = arith.addf %82, %86 : vector<8x324xf32>
    %c4_81 = arith.constant 4 : index
    %c0_82 = arith.constant 0 : index
    %c0_83 = arith.constant 0 : index
    %88 = vector.load %arg5[%c4_81, %c0_82, %c0_83] : memref<9x8x8xf32, #tpu.memory_space<vmem>>, vector<1x8x8xf32>
    %89 = vector.shape_cast %88 : vector<1x8x8xf32> to vector<8x8xf32>
    %c0_84 = arith.constant 0 : index
    %c19_85 = arith.constant 19 : index
    %90 = vector.load %arg8[%c0_84, %c19_85] : memref<8x362xf32, #tpu.memory_space<vmem>>, vector<8x324xf32>
    %cst_86 = arith.constant dense<0.000000e+00> : vector<8x324xf32>
    %91 = tpu.matmul %89, %90, %cst_86 {dimension_numbers = #tpu.dot_dimension_numbers<[1], [0], [0], [1], [0, 0, 1, 1], [], []>} : vector<8x8xf32>, vector<8x324xf32>, vector<8x324xf32> -> vector<8x324xf32>
    %92 = arith.addf %87, %91 : vector<8x324xf32>
    %c5_87 = arith.constant 5 : index
    %c0_88 = arith.constant 0 : index
    %c0_89 = arith.constant 0 : index
    %93 = vector.load %arg5[%c5_87, %c0_88, %c0_89] : memref<9x8x8xf32, #tpu.memory_space<vmem>>, vector<1x8x8xf32>
    %94 = vector.shape_cast %93 : vector<1x8x8xf32> to vector<8x8xf32>
    %c0_90 = arith.constant 0 : index
    %c20_91 = arith.constant 20 : index
    %95 = vector.load %arg8[%c0_90, %c20_91] : memref<8x362xf32, #tpu.memory_space<vmem>>, vector<8x324xf32>
    %cst_92 = arith.constant dense<0.000000e+00> : vector<8x324xf32>
    %96 = tpu.matmul %94, %95, %cst_92 {dimension_numbers = #tpu.dot_dimension_numbers<[1], [0], [0], [1], [0, 0, 1, 1], [], []>} : vector<8x8xf32>, vector<8x324xf32>, vector<8x324xf32> -> vector<8x324xf32>
    %97 = arith.addf %92, %96 : vector<8x324xf32>
    %c6_93 = arith.constant 6 : index
    %c0_94 = arith.constant 0 : index
    %c0_95 = arith.constant 0 : index
    %98 = vector.load %arg5[%c6_93, %c0_94, %c0_95] : memref<9x8x8xf32, #tpu.memory_space<vmem>>, vector<1x8x8xf32>
    %99 = vector.shape_cast %98 : vector<1x8x8xf32> to vector<8x8xf32>
    %c0_96 = arith.constant 0 : index
    %c36_97 = arith.constant 36 : index
    %100 = vector.load %arg8[%c0_96, %c36_97] : memref<8x362xf32, #tpu.memory_space<vmem>>, vector<8x324xf32>
    %cst_98 = arith.constant dense<0.000000e+00> : vector<8x324xf32>
    %101 = tpu.matmul %99, %100, %cst_98 {dimension_numbers = #tpu.dot_dimension_numbers<[1], [0], [0], [1], [0, 0, 1, 1], [], []>} : vector<8x8xf32>, vector<8x324xf32>, vector<8x324xf32> -> vector<8x324xf32>
    %102 = arith.addf %97, %101 : vector<8x324xf32>
    %c7_99 = arith.constant 7 : index
    %c0_100 = arith.constant 0 : index
    %c0_101 = arith.constant 0 : index
    %103 = vector.load %arg5[%c7_99, %c0_100, %c0_101] : memref<9x8x8xf32, #tpu.memory_space<vmem>>, vector<1x8x8xf32>
    %104 = vector.shape_cast %103 : vector<1x8x8xf32> to vector<8x8xf32>
    %c0_102 = arith.constant 0 : index
    %c37_103 = arith.constant 37 : index
    %105 = vector.load %arg8[%c0_102, %c37_103] : memref<8x362xf32, #tpu.memory_space<vmem>>, vector<8x324xf32>
    %cst_104 = arith.constant dense<0.000000e+00> : vector<8x324xf32>
    %106 = tpu.matmul %104, %105, %cst_104 {dimension_numbers = #tpu.dot_dimension_numbers<[1], [0], [0], [1], [0, 0, 1, 1], [], []>} : vector<8x8xf32>, vector<8x324xf32>, vector<8x324xf32> -> vector<8x324xf32>
    %107 = arith.addf %102, %106 : vector<8x324xf32>
    %c8_105 = arith.constant 8 : index
    %c0_106 = arith.constant 0 : index
    %c0_107 = arith.constant 0 : index
    %108 = vector.load %arg5[%c8_105, %c0_106, %c0_107] : memref<9x8x8xf32, #tpu.memory_space<vmem>>, vector<1x8x8xf32>
    %109 = vector.shape_cast %108 : vector<1x8x8xf32> to vector<8x8xf32>
    %c0_108 = arith.constant 0 : index
    %c38_109 = arith.constant 38 : index
    %110 = vector.load %arg8[%c0_108, %c38_109] : memref<8x362xf32, #tpu.memory_space<vmem>>, vector<8x324xf32>
    %cst_110 = arith.constant dense<0.000000e+00> : vector<8x324xf32>
    %111 = tpu.matmul %109, %110, %cst_110 {dimension_numbers = #tpu.dot_dimension_numbers<[1], [0], [0], [1], [0, 0, 1, 1], [], []>} : vector<8x8xf32>, vector<8x324xf32>, vector<8x324xf32> -> vector<8x324xf32>
    %112 = arith.addf %107, %111 : vector<8x324xf32>
    %c0_111 = arith.constant 0 : index
    %c0_112 = arith.constant 0 : index
    %113 = vector.load %arg6[%c0_111, %c0_112] : memref<8x1xf32, #tpu.memory_space<vmem>>, vector<8x1xf32>
    %114 = vector.broadcast %113 : vector<8x1xf32> to vector<8x324xf32>
    %115 = arith.addf %112, %114 : vector<8x324xf32>
    %cst_113 = arith.constant 0.000000e+00 : f32
    %116 = vector.broadcast %cst_113 : f32 to vector<8x324xf32>
    %117 = arith.cmpf oge, %115, %116 : vector<8x324xf32>
    %cst_114 = arith.constant 1.000000e-01 : f32
    %118 = vector.broadcast %cst_114 : f32 to vector<8x324xf32>
    %119 = arith.mulf %118, %115 : vector<8x324xf32>
    %120 = arith.select %117, %115, %119 : vector<8x324xi1>, vector<8x324xf32>
    %c0_115 = arith.constant 0 : index
    %c0_116 = arith.constant 0 : index
    %c38_117 = arith.constant 38 : index
    %121 = vector.load %arg1[%c0_115, %c0_116, %c38_117] : memref<1x8x400xf32, #tpu.memory_space<vmem>>, vector<1x8x324xf32>
    %122 = vector.shape_cast %121 : vector<1x8x324xf32> to vector<8x324xf32>
    %123 = arith.addf %120, %122 : vector<8x324xf32>
    %c0_118 = arith.constant 0 : index
    %c0_119 = arith.constant 0 : index
    %c0_120 = arith.constant 0 : index
    %124 = vector.load %arg7[%c0_118, %c0_119, %c0_120] : memref<1x8x324xf32, #tpu.memory_space<vmem>>, vector<1x8x324xf32>
    %125 = vector.shape_cast %124 : vector<1x8x324xf32> to vector<8x324xf32>
    %126 = vector.shape_cast %123 : vector<8x324xf32> to vector<1x8x324xf32>
    tpu.vector_store %arg7[%c0_118, %c0_119, %c0_120], %126 {strides = array<i32>} : memref<1x8x324xf32, #tpu.memory_space<vmem>>, vector<1x8x324xf32>,
    return
  }
  func.func @transform_0(%arg0: i32) -> (i32, i32, i32) {
    %c0_i32 = arith.constant 0 : i32
    %c0_i32_0 = arith.constant 0 : i32
    %c0_i32_1 = arith.constant 0 : i32
    return %arg0, %c0_i32, %c0_i32_0 : i32, i32, i32
  }
  func.func @transform_1(%arg0: i32) -> (i32, i32) {
    %c0_i32 = arith.constant 0 : i32
    %c0_i32_0 = arith.constant 0 : i32
    %c0_i32_1 = arith.constant 0 : i32
    return %c0_i32, %c0_i32_0 : i32, i32
  }
  func.func @transform_2(%arg0: i32) -> (i32, i32, i32) {
    %c0_i32 = arith.constant 0 : i32
    %c0_i32_0 = arith.constant 0 : i32
    %c0_i32_1 = arith.constant 0 : i32
    %c0_i32_2 = arith.constant 0 : i32
    return %c0_i32, %c0_i32_0, %c0_i32_1 : i32, i32, i32
  }
  func.func @transform_3(%arg0: i32) -> (i32, i32) {
    %c0_i32 = arith.constant 0 : i32
    %c0_i32_0 = arith.constant 0 : i32
    %c0_i32_1 = arith.constant 0 : i32
    return %c0_i32, %c0_i32_0 : i32, i32
  }
  func.func @transform_4(%arg0: i32) -> (i32, i32, i32) {
    %c0_i32 = arith.constant 0 : i32
    %c0_i32_0 = arith.constant 0 : i32
    %c0_i32_1 = arith.constant 0 : i32
    %c0_i32_2 = arith.constant 0 : i32
    return %c0_i32, %c0_i32_0, %c0_i32_1 : i32, i32, i32
  }
  func.func @transform_5(%arg0: i32) -> (i32, i32) {
    %c0_i32 = arith.constant 0 : i32
    %c0_i32_0 = arith.constant 0 : i32
    %c0_i32_1 = arith.constant 0 : i32
    return %c0_i32, %c0_i32_0 : i32, i32
  }
  func.func @transform_6(%arg0: i32) -> (i32, i32, i32) {
    %c0_i32 = arith.constant 0 : i32
    %c0_i32_0 = arith.constant 0 : i32
    %c0_i32_1 = arith.constant 0 : i32
    return %arg0, %c0_i32, %c0_i32_0 : i32, i32, i32
  }
}

</mosaic_0001>

<llo_original>
// kernel: spa_block_fwd.1
$region0: #{spa_block_fwd.1}
  #allocation0 [shape = 'u32[]', space=smem, size = 0x4, offset = 0x4, fixed_abs, tag = 'smem constant byte address 0x4 - core index']
  #allocation1 [shape = 'u32[144,128]{1,0:T(1,128)}', space=vmem, size = 0x12000, scoped, tag = 'internal scratch']
  #allocation2 [shape = 'f32[8,362]{1,0:T(8,128)}', space=vmem, size = 0x3000, scoped, tag = 'scratch operand']
  %s0 = inlined_call_operand.vmem [shape: f32[2,8,400], index: 0, kind: input, shape index: {}]
  %s1 = inlined_call_operand.vmem [shape: f32[1,362], index: 1, kind: input, shape index: {}]
  %s2 = inlined_call_operand.vmem [shape: f32[9,8,8], index: 2, kind: input, shape index: {}]
  %s3 = inlined_call_operand.vmem [shape: f32[8,1], index: 3, kind: input, shape index: {}]
  %s4 = inlined_call_operand.vmem [shape: f32[9,8,8], index: 4, kind: input, shape index: {}]
  %s5 = inlined_call_operand.vmem [shape: f32[8,1], index: 5, kind: input, shape index: {}]
  %s6 = inlined_call_operand.vmem [shape: f32[2,8,324], index: 6, kind: output, shape index: {}]
  %s7 = sld [smem:[#allocation0]]
  $region57: #{spa_block_fwd.1} parent=0
    _
  %s9 = ssub.s32 1, %s7
  %s10 = scalar_select 0, %s9, %s7
  loop: start=0, step=1, limit=4
  $region2: #{spa_block_fwd.1} parent=0 // loop_pre_header
    _
  $region3: #{spa_block_fwd.1} parent=0 // loop_header
    %s12 = sphi 0, %s16
    %p13 = scmp.ge.s32.totalorder %s12, 4
    %s22 = sphi 0, %s24
    %s25 = sphi 0, %s22
    %s26 = sphi 0, %s25
    %s42 = sphi 0, %s26
    %s46 = sphi 0, %s46
    %s48 = sphi 0, %s46
    %s49 = sphi 0, %s48
    %s63 = sphi 0, %s49
    %s67 = sphi 0, %s67
    %s69 = sphi 0, %s67
    %s70 = sphi 0, %s69
    %s84 = sphi 0, %s70
    %s88 = sphi 0, %s88
    %s90 = sphi 0, %s88
    %s91 = sphi 0, %s90
    %s105 = sphi 0, %s91
    %s109 = sphi 0, %s109
    %s111 = sphi 0, %s109
    %s112 = sphi 0, %s111
    %s126 = sphi 0, %s112
    %s130 = sphi 0, %s130
    %s132 = sphi 0, %s130
    %s133 = sphi 0, %s132
    %s147 = sphi 0, %s133
    %s153 = sphi 0, %s155
    %s156 = sphi 0, %s153
    %s157 = sphi 0, %s156
    %s173 = sphi 0, %s157
  $region4: #{spa_block_fwd.1} parent=0 // loop_header_branch
    %15 = sbr.rel (%p13) target = $region8
  $region5: #{spa_block_fwd.1} parent=0 // loop_body
    %s17 = ssub.s32 %s12, 1
    %s18 = ssub.s32 %s12, 2
    %s19 = sadd.s32 %s12, 1
    %s20 = ssub.s32 %s12, %s19
    %p21 = scmp.eq.s32.totalorder %s20, 0
    %s23 = sadd.s32 %s22, 1
    %s24 = scalar_select %p21, %s22, %s23
    %p27 = pneg %p21
    %p28 = scmp.eq.s32.totalorder %s12, 1
    %p29 = por %p27, %p28
    %p30 = scmp.ne.s32.totalorder %s22, %s25
    %p31 = scmp.eq.s32.totalorder %s12, 0
    %p32 = por %p30, %p31
    %p33 = scmp.ne.s32.totalorder %s22, %s25
    %p34 = scmp.eq.s32.totalorder %s17, 1
    %p35 = por %p33, %p34
    %p36 = scmp.ne.s32.totalorder %s25, %s26
    %p37 = scmp.eq.s32.totalorder %s17, 0
    %p38 = por %p36, %p37
    %p39 = scmp.ne.s32.totalorder %s25, %s26
    %p40 = scmp.eq.s32.totalorder %s18, 1
    %p41 = por %p39, %p40
    %p43 = scmp.ne.s32.totalorder %s26, %s42
    %p44 = scmp.eq.s32.totalorder %s18, 0
    %p45 = por %p43, %p44
    %s47 = sadd.s32 %s46, 1
    %p50 = scmp.eq.s32.totalorder %s12, 1
    %p51 = scmp.ne.s32.totalorder %s46, %s48
    %p52 = scmp.eq.s32.totalorder %s12, 0
    %p53 = por %p51, %p52
    %p54 = scmp.ne.s32.totalorder %s46, %s48
    %p55 = scmp.eq.s32.totalorder %s17, 1
    %p56 = por %p54, %p55
    %p57 = scmp.ne.s32.totalorder %s48, %s49
    %p58 = scmp.eq.s32.totalorder %s17, 0
    %p59 = por %p57, %p58
    %p60 = scmp.ne.s32.totalorder %s48, %s49
    %p61 = scmp.eq.s32.totalorder %s18, 1
    %p62 = por %p60, %p61
    %p64 = scmp.ne.s32.totalorder %s49, %s63
    %p65 = scmp.eq.s32.totalorder %s18, 0
    %p66 = por %p64, %p65
    %s68 = sadd.s32 %s67, 1
    %p71 = scmp.eq.s32.totalorder %s12, 1
    %p72 = scmp.ne.s32.totalorder %s67, %s69
    %p73 = scmp.eq.s32.totalorder %s12, 0
    %p74 = por %p72, %p73
    %p75 = scmp.ne.s32.totalorder %s67, %s69
    %p76 = scmp.eq.s32.totalorder %s17, 1
    %p77 = por %p75, %p76
    %p78 = scmp.ne.s32.totalorder %s69, %s70
    %p79 = scmp.eq.s32.totalorder %s17, 0
    %p80 = por %p78, %p79
    %p81 = scmp.ne.s32.totalorder %s69, %s70
    %p82 = scmp.eq.s32.totalorder %s18, 1
    %p83 = por %p81, %p82
    %p85 = scmp.ne.s32.totalorder %s70, %s84
    %p86 = scmp.eq.s32.totalorder %s18, 0
    %p87 = por %p85, %p86
    %s89 = sadd.s32 %s88, 1
    %p92 = scmp.eq.s32.totalorder %s12, 1
    %p93 = scmp.ne.s32.totalorder %s88, %s90
    %p94 = scmp.eq.s32.totalorder %s12, 0
    %p95 = por %p93, %p94
    %p96 = scmp.ne.s32.totalorder %s88, %s90
    %p97 = scmp.eq.s32.totalorder %s17, 1
    %p98 = por %p96, %p97
    %p99 = scmp.ne.s32.totalorder %s90, %s91
    %p100 = scmp.eq.s32.totalorder %s17, 0
    %p101 = por %p99, %p100
    %p102 = scmp.ne.s32.totalorder %s90, %s91
    %p103 = scmp.eq.s32.totalorder %s18, 1
    %p104 = por %p102, %p103
    %p106 = scmp.ne.s32.totalorder %s91, %s105
    %p107 = scmp.eq.s32.totalorder %s18, 0
    %p108 = por %p106, %p107
    %s110 = sadd.s32 %s109, 1
    %p113 = scmp.eq.s32.totalorder %s12, 1
    %p114 = scmp.ne.s32.totalorder %s109, %s111
    %p115 = scmp.eq.s32.totalorder %s12, 0
    %p116 = por %p114, %p115
    %p117 = scmp.ne.s32.totalorder %s109, %s111
    %p118 = scmp.eq.s32.totalorder %s17, 1
    %p119 = por %p117, %p118
    %p120 = scmp.ne.s32.totalorder %s111, %s112
    %p121 = scmp.eq.s32.totalorder %s17, 0
    %p122 = por %p120, %p121
    %p123 = scmp.ne.s32.totalorder %s111, %s112
    %p124 = scmp.eq.s32.totalorder %s18, 1
    %p125 = por %p123, %p124
    %p127 = scmp.ne.s32.totalorder %s112, %s126
    %p128 = scmp.eq.s32.totalorder %s18, 0
    %p129 = por %p127, %p128
    %s131 = sadd.s32 %s130, 1
    %p134 = scmp.eq.s32.totalorder %s12, 1
    %p135 = scmp.ne.s32.totalorder %s130, %s132
    %p136 = scmp.eq.s32.totalorder %s12, 0
    %p137 = por %p135, %p136
    %p138 = scmp.ne.s32.totalorder %s130, %s132
    %p139 = scmp.eq.s32.totalorder %s17, 1
    %p140 = por %p138, %p139
    %p141 = scmp.ne.s32.totalorder %s132, %s133
    %p142 = scmp.eq.s32.totalorder %s17, 0
    %p143 = por %p141, %p142
    %p144 = scmp.ne.s32.totalorder %s132, %s133
    %p145 = scmp.eq.s32.totalorder %s18, 1
    %p146 = por %p144, %p145
    %p148 = scmp.ne.s32.totalorder %s133, %s147
    %p149 = scmp.eq.s32.totalorder %s18, 0
    %p150 = por %p148, %p149
    %s151 = ssub.s32 %s12, %s19
    %p152 = scmp.eq.s32.totalorder %s151, 0
    %s154 = sadd.s32 %s153, 1
    %s155 = scalar_select %p152, %s153, %s154
    %p158 = pneg %p152
    %p159 = scmp.eq.s32.totalorder %s12, 1
    %p160 = por %p158, %p159
    %p161 = scmp.ne.s32.totalorder %s153, %s156
    %p162 = scmp.eq.s32.totalorder %s12, 0
    %p163 = por %p161, %p162
    %p164 = scmp.ne.s32.totalorder %s153, %s156
    %p165 = scmp.eq.s32.totalorder %s17, 1
    %p166 = por %p164, %p165
    %p167 = scmp.ne.s32.totalorder %s156, %s157
    %p168 = scmp.eq.s32.totalorder %s17, 0
    %p169 = por %p167, %p168
    %p170 = scmp.ne.s32.totalorder %s156, %s157
    %p171 = scmp.eq.s32.totalorder %s18, 1
    %p172 = por %p170, %p171
    %p174 = scmp.ne.s32.totalorder %s157, %s173
    %p175 = scmp.eq.s32.totalorder %s18, 0
    %p176 = por %p174, %p175
    %p177 = scmp.le.s32.totalorder 1, %s12
    %p178 = scmp.lt.s32.totalorder %s12, 3
    %p179 = pnand %p177, %p178
    %p180 = pneg %p179
    // Predicated region
    $region9: #{spa_block_fwd.1} parent=5 // pred_check
      _
    $region10: #{spa_block_fwd.1} parent=5 // pred_check_branch
      %182 = sbr.rel (%p179) target = $region12
    $region11: #{spa_block_fwd.1} parent=5 // pred_region
      %s183 = ssub.s32 %s12, 1
      // Predicated region
      $region13: #{spa_block_fwd.1} parent=11 // pred_check
        %p184 = pneg %p59
      $region14: #{spa_block_fwd.1} parent=11 // pred_check_branch
        %186 = sbr.rel (%p184) target = $region16
      $region15: #{spa_block_fwd.1} parent=11 // pred_region
        _
      $region16: #{spa_block_fwd.1} parent=11 // pred_fallthru
        _
      // Predicated region
      $region17: #{spa_block_fwd.1} parent=11 // pred_check
        %p187 = pneg %p80
      $region18: #{spa_block_fwd.1} parent=11 // pred_check_branch
        %189 = sbr.rel (%p187) target = $region20
      $region19: #{spa_block_fwd.1} parent=11 // pred_region
        _
      $region20: #{spa_block_fwd.1} parent=11 // pred_fallthru
        _
      // Predicated region
      $region21: #{spa_block_fwd.1} parent=11 // pred_check
        %p190 = pneg %p101
      $region22: #{spa_block_fwd.1} parent=11 // pred_check_branch
        %192 = sbr.rel (%p190) target = $region24
      $region23: #{spa_block_fwd.1} parent=11 // pred_region
        _
      $region24: #{spa_block_fwd.1} parent=11 // pred_fallthru
        _
      // Predicated region
      $region25: #{spa_block_fwd.1} parent=11 // pred_check
        %p193 = pneg %p122
      $region26: #{spa_block_fwd.1} parent=11 // pred_check_branch
        %195 = sbr.rel (%p193) target = $region28
      $region27: #{spa_block_fwd.1} parent=11 // pred_region
        _
      $region28: #{spa_block_fwd.1} parent=11 // pred_fallthru
        _
      // Predicated region
      $region29: #{spa_block_fwd.1} parent=11 // pred_check
        %p196 = pneg %p143
      $region30: #{spa_block_fwd.1} parent=11 // pred_check_branch
        %198 = sbr.rel (%p196) target = $region32
      $region31: #{spa_block_fwd.1} parent=11 // pred_region
        _
      $region32: #{spa_block_fwd.1} parent=11 // pred_fallthru
        _
    $region12: #{spa_block_fwd.1} parent=5 // pred_fallthru
      _
    %p199 = scmp.lt.s32.totalorder %s12, 2
    // Predicated region
    $region33: #{spa_block_fwd.1} parent=5 // pred_check
      %p200 = pneg %p199
    $region34: #{spa_block_fwd.1} parent=5 // pred_check_branch
      %202 = sbr.rel (%p200) target = $region36
    $region35: #{spa_block_fwd.1} parent=5 // pred_region
      // Predicated region
      $region37: #{spa_block_fwd.1} parent=35 // pred_check
        %p203 = pneg %p32
      $region38: #{spa_block_fwd.1} parent=35 // pred_check_branch
        %205 = sbr.rel (%p203) target = $region40
      $region39: #{spa_block_fwd.1} parent=35 // pred_region
        %p206 = scmp.lt.s32.totalorder %s12, 1
        %s207 = scalar_select %p206, %s12, 1
        %s208 = smul.addr %s207, 4
        %s209 = smul.addr %s208, 8
        %s210 = scalar_lea.vmem %s0, %s209
      $region40: #{spa_block_fwd.1} parent=35 // pred_fallthru
        _
    $region36: #{spa_block_fwd.1} parent=5 // pred_fallthru
      _
    %p211 = scmp.le.s32.totalorder 1, %s12
    %p212 = scmp.lt.s32.totalorder %s12, 3
    %p213 = pnand %p211, %p212
    %p214 = pneg %p213
    // Predicated region
    $region41: #{spa_block_fwd.1} parent=5 // pred_check
      _
    $region42: #{spa_block_fwd.1} parent=5 // pred_check_branch
      %216 = sbr.rel (%p213) target = $region44
    $region43: #{spa_block_fwd.1} parent=5 // pred_region
      %s217 = ssub.s32 %s12, 1
      %p218 = scmp.lt.s32.totalorder %s17, 1
      %s219 = scalar_select %p218, %s17, 1
      %s220 = smul.addr %s219, 4
      %s221 = smul.addr %s220, 8
      %s222 = scalar_lea.vmem %s0, %s221
      %p223 = pneg %p38
      %p224 = pneg %p35
      %p225 = pneg %p59
      %p226 = pneg %p56
      %p227 = pneg %p80
      %p228 = pneg %p77
      %p229 = pneg %p101
      %p230 = pneg %p98
      %p231 = pneg %p122
      %p232 = pneg %p119
      %p233 = pneg %p143
      %p234 = pneg %p140
      %p235 = pneg %p169
      %p236 = pneg %p166
      %p237 = scmp.lt.s32.totalorder %s17, 1
      %s238 = scalar_select %p237, %s17, 1
      %s239 = smul.addr %s238, 3
      %s240 = smul.addr %s239, 8
      %s241 = scalar_lea.vmem %s6, %s240
      %p242 = scmp.lt.s32.totalorder %s17, 1
      %s243 = scalar_select %p242, %s17, 1
      %s244 = smul.addr %s243, 4
      %s245 = smul.addr %s244, 8
      %s246 = scalar_lea.vmem %s0, %s245
      %p247 = scmp.lt.s32.totalorder %s17, 1
      %s248 = scalar_select %p247, %s17, 1
      %s249 = smul.addr %s248, 3
      %s250 = smul.addr %s249, 8
      %s251 = scalar_lea.vmem %s6, %s250
      %v252 = vld [vmem:[%s246] sm:$0xff]
      %v253 = vld [vmem:[%s246 + $0x8] sm:$0xff]
      %v254 = vld [vmem:[%s246 + $0x10] sm:$0xff]
      %v255 = vld [vmem:[%s2] sm:$0xff]
      %s256 = scalar_lea.vmem %s2, 8
      %v257 = vld [vmem:[%s256] sm:$0xff]
      %261 = vrot.lane.b32.xlu0 %v252, 127
      %v262 = vpop.permute.xlu0 %261
      %263 = vrot.lane.b32.xlu0 %v253, 127
      %v264 = vpop.permute.xlu0 %263
      %265 = vrot.lane.b32.xlu0 %v254, 127
      %v266 = vpop.permute.xlu0 %265
      %vm267 = vcmask 1039360
      %v268 = vsel %vm267, %v262, %v264
      %v269 = vsel %vm267, %v264, %v266
      %vm273 = vcmask 64512
      %v275 = vsel %vm273, %v257, 0
      %277 = vmatprep.subr.mxu0 %v269
      %278 = vmatpush1.msra.mxu0 %v268
      %279 = vmatprep.subr.mxu0 0.0
      %280 = vmatpush1.msra.mxu0 0.0
      %281 = vmatprep.subr.mxu0 0.0
      %282 = vmatpush1.msra.mxu0 0.0
      %283 = vmatprep.subr.mxu0 0.0
      %284 = vmatpush1.msra.mxu0 0.0
      %285 = vmatprep.subr.mxu0 0.0
      %286 = vmatpush1.msra.mxu0 0.0
      %287 = vmatprep.subr.mxu0 0.0
      %288 = vmatpush1.msra.mxu0 0.0
      %289 = vmatprep.subr.mxu0 0.0
      %290 = vmatpush1.msra.mxu0 0.0
      %291 = vmatprep.subr.mxu0 0.0
      %292 = vmatpush1.msra.mxu0 0.0
      %293 = vmatprep.subr.mxu0 0.0
      %294 = vmatpush1.msra.mxu0 0.0
      %295 = vmatprep.subr.mxu0 0.0
      %296 = vmatpush1.msra.mxu0 0.0
      %297 = vmatprep.subr.mxu0 0.0
      %298 = vmatpush1.msra.mxu0 0.0
      %299 = vmatprep.subr.mxu0 0.0
      %300 = vmatpush1.msra.mxu0 0.0
      %301 = vmatprep.subr.mxu0 0.0
      %302 = vmatpush1.msra.mxu0 0.0
      %303 = vmatprep.subr.mxu0 0.0
      %304 = vmatpush1.msra.mxu0 0.0
      %305 = vmatprep.subr.mxu0 0.0
      %306 = vmatpush1.msra.mxu0 0.0
      %307 = vmatprep.subr.mxu0 0.0
      %308 = vmatpush1.msra.mxu0 0.0
      %309 = vmatprep.subr.mxu0 0.0
      %310 = vmatpush1.msra.mxu0 0.0
      %311 = vmatprep.subr.mxu0 0.0
      %312 = vmatpush1.msra.mxu0 0.0
      %313 = vmatprep.subr.mxu0 0.0
      %314 = vmatpush1.msra.mxu0 0.0
      %315 = vmatprep.subr.mxu0 0.0
      %316 = vmatpush1.msra.mxu0 0.0
      %317 = vmatprep.subr.mxu0 0.0
      %318 = vmatpush1.msra.mxu0 0.0
      %319 = vmatprep.subr.mxu0 0.0
      %320 = vmatpush1.msra.mxu0 0.0
      %321 = vmatprep.subr.mxu0 0.0
      %322 = vmatpush1.msra.mxu0 0.0
      %323 = vmatprep.subr.mxu0 0.0
      %324 = vmatpush1.msra.mxu0 0.0
      %325 = vmatprep.subr.mxu0 0.0
      %326 = vmatpush1.msra.mxu0 0.0
      %327 = vmatprep.subr.mxu0 0.0
      %328 = vmatpush1.msra.mxu0 0.0
      %329 = vmatprep.subr.mxu0 0.0
      %330 = vmatpush1.msra.mxu0 0.0
      %331 = vmatprep.subr.mxu0 0.0
      %332 = vmatpush1.msra.mxu0 0.0
      %333 = vmatprep.subr.mxu0 0.0
      %334 = vmatpush1.msra.mxu0 0.0
      %335 = vmatprep.subr.mxu0 0.0
      %336 = vmatpush1.msra.mxu0 0.0
      %337 = vmatprep.subr.mxu0 0.0
      %338 = vmatpush1.msra.mxu0 0.0
      %339 = vmatprep.subr.mxu0 0.0
      %340 = vmatpush1.msra.mxu0 0.0
      %341 = vmatprep.mubr.f32.mxu0 0.0
      %342 = vmatmul.mubr.f32.gmra.mrb[0].mxu0 %v275
      %v343 = vpop.f32.mrb[0].mxu0
      %v344 = vadd.f32 0.0, %v343
      %v345 = vpop.f32.mrb[0].mxu0
      %v346 = vadd.f32 0.0, %v345
      %347 = vdwg.mxu0
      %348 = vmatprep.subr.mxu0 0.0
      %349 = vmatpush1.msra.mxu0 %v266
      %350 = vmatprep.subr.mxu0 0.0
      %351 = vmatpush1.msra.mxu0 0.0
      %352 = vmatprep.subr.mxu0 0.0
      %353 = vmatpush1.msra.mxu0 0.0
      %354 = vmatprep.subr.mxu0 0.0
      %355 = vmatpush1.msra.mxu0 0.0
      %356 = vmatprep.subr.mxu0 0.0
      %357 = vmatpush1.msra.mxu0 0.0
      %358 = vmatprep.subr.mxu0 0.0
      %359 = vmatpush1.msra.mxu0 0.0
      %360 = vmatprep.subr.mxu0 0.0
      %361 = vmatpush1.msra.mxu0 0.0
      %362 = vmatprep.subr.mxu0 0.0
      %363 = vmatpush1.msra.mxu0 0.0
      %364 = vmatprep.subr.mxu0 0.0
      %365 = vmatpush1.msra.mxu0 0.0
      %366 = vmatprep.subr.mxu0 0.0
      %367 = vmatpush1.msra.mxu0 0.0
      %368 = vmatprep.subr.mxu0 0.0
      %369 = vmatpush1.msra.mxu0 0.0
      %370 = vmatprep.subr.mxu0 0.0
      %371 = vmatpush1.msra.mxu0 0.0
      %372 = vmatprep.subr.mxu0 0.0
      %373 = vmatpush1.msra.mxu0 0.0
      %374 = vmatprep.subr.mxu0 0.0
      %375 = vmatpush1.msra.mxu0 0.0
      %376 = vmatprep.subr.mxu0 0.0
      %377 = vmatpush1.msra.mxu0 0.0
      %378 = vmatprep.subr.mxu0 0.0
      %379 = vmatpush1.msra.mxu0 0.0
      %380 = vmatprep.subr.mxu0 0.0
      %381 = vmatpush1.msra.mxu0 0.0
      %382 = vmatprep.subr.mxu0 0.0
      %383 = vmatpush1.msra.mxu0 0.0
      %384 = vmatprep.subr.mxu0 0.0
      %385 = vmatpush1.msra.mxu0 0.0
      %386 = vmatprep.subr.mxu0 0.0
      %387 = vmatpush1.msra.mxu0 0.0
      %388 = vmatprep.subr.mxu0 0.0
      %389 = vmatpush1.msra.mxu0 0.0
      %390 = vmatprep.subr.mxu0 0.0
      %391 = vmatpush1.msra.mxu0 0.0
      %392 = vmatprep.subr.mxu0 0.0
      %393 = vmatpush1.msra.mxu0 0.0
      %394 = vmatprep.subr.mxu0 0.0
      %395 = vmatpush1.msra.mxu0 0.0
      %396 = vmatprep.subr.mxu0 0.0
      %397 = vmatpush1.msra.mxu0 0.0
      %398 = vmatprep.subr.mxu0 0.0
      %399 = vmatpush1.msra.mxu0 0.0
      %400 = vmatprep.subr.mxu0 0.0
      %401 = vmatpush1.msra.mxu0 0.0
      %402 = vmatprep.subr.mxu0 0.0
      %403 = vmatpush1.msra.mxu0 0.0
      %404 = vmatprep.subr.mxu0 0.0
      %405 = vmatpush1.msra.mxu0 0.0
      %406 = vmatprep.subr.mxu0 0.0
      %407 = vmatpush1.msra.mxu0 0.0
      %408 = vmatprep.subr.mxu0 0.0
      %409 = vmatpush1.msra.mxu0 0.0
      %410 = vmatprep.subr.mxu0 0.0
      %411 = vmatpush1.msra.mxu0 0.0
      %412 = vmatprep.mubr.f32.mxu0 0.0
      %413 = vmatmul.mubr.f32.gmra.mrb[0].mxu0 %v275
      %v414 = vpop.f32.mrb[0].mxu0
      %v415 = vadd.f32 0.0, %v414
      %v416 = vpop.f32.mrb[0].mxu0
      %417 = vdwg.mxu0
      %v419 = vsel %vm273, %v255, 0
      %421 = vmatprep.subr.mxu0 %v253
      %422 = vmatpush1.msra.mxu0 %v252
      %423 = vmatprep.subr.mxu0 0.0
      %424 = vmatpush1.msra.mxu0 0.0
      %425 = vmatprep.subr.mxu0 0.0
      %426 = vmatpush1.msra.mxu0 0.0
      %427 = vmatprep.subr.mxu0 0.0
      %428 = vmatpush1.msra.mxu0 0.0
      %429 = vmatprep.subr.mxu0 0.0
      %430 = vmatpush1.msra.mxu0 0.0
      %431 = vmatprep.subr.mxu0 0.0
      %432 = vmatpush1.msra.mxu0 0.0
      %433 = vmatprep.subr.mxu0 0.0
      %434 = vmatpush1.msra.mxu0 0.0
      %435 = vmatprep.subr.mxu0 0.0
      %436 = vmatpush1.msra.mxu0 0.0
      %437 = vmatprep.subr.mxu0 0.0
      %438 = vmatpush1.msra.mxu0 0.0
      %439 = vmatprep.subr.mxu0 0.0
      %440 = vmatpush1.msra.mxu0 0.0
      %441 = vmatprep.subr.mxu0 0.0
      %442 = vmatpush1.msra.mxu0 0.0
      %443 = vmatprep.subr.mxu0 0.0
      %444 = vmatpush1.msra.mxu0 0.0
      %445 = vmatprep.subr.mxu0 0.0
      %446 = vmatpush1.msra.mxu0 0.0
      %447 = vmatprep.subr.mxu0 0.0
      %448 = vmatpush1.msra.mxu0 0.0
      %449 = vmatprep.subr.mxu0 0.0
      %450 = vmatpush1.msra.mxu0 0.0
      %451 = vmatprep.subr.mxu0 0.0
      %452 = vmatpush1.msra.mxu0 0.0
      %453 = vmatprep.subr.mxu0 0.0
      %454 = vmatpush1.msra.mxu0 0.0
      %455 = vmatprep.subr.mxu0 0.0
      %456 = vmatpush1.msra.mxu0 0.0
      %457 = vmatprep.subr.mxu0 0.0
      %458 = vmatpush1.msra.mxu0 0.0
      %459 = vmatprep.subr.mxu0 0.0
      %460 = vmatpush1.msra.mxu0 0.0
      %461 = vmatprep.subr.mxu0 0.0
      %462 = vmatpush1.msra.mxu0 0.0
      %463 = vmatprep.subr.mxu0 0.0
      %464 = vmatpush1.msra.mxu0 0.0
      %465 = vmatprep.subr.mxu0 0.0
      %466 = vmatpush1.msra.mxu0 0.0
      %467 = vmatprep.subr.mxu0 0.0
      %468 = vmatpush1.msra.mxu0 0.0
      %469 = vmatprep.subr.mxu0 0.0
      %470 = vmatpush1.msra.mxu0 0.0
      %471 = vmatprep.subr.mxu0 0.0
      %472 = vmatpush1.msra.mxu0 0.0
      %473 = vmatprep.subr.mxu0 0.0
      %474 = vmatpush1.msra.mxu0 0.0
      %475 = vmatprep.subr.mxu0 0.0
      %476 = vmatpush1.msra.mxu0 0.0
      %477 = vmatprep.subr.mxu0 0.0
      %478 = vmatpush1.msra.mxu0 0.0
      %479 = vmatprep.subr.mxu0 0.0
      %480 = vmatpush1.msra.mxu0 0.0
      %481 = vmatprep.subr.mxu0 0.0
      %482 = vmatpush1.msra.mxu0 0.0
      %483 = vmatprep.subr.mxu0 0.0
      %484 = vmatpush1.msra.mxu0 0.0
      %485 = vmatprep.mubr.f32.mxu0 0.0
      %486 = vmatmul.mubr.f32.gmra.mrb[0].mxu0 %v419
      %v487 = vpop.f32.mrb[0].mxu0
      %v488 = vadd.f32 %v344, %v487
      %v489 = vpop.f32.mrb[0].mxu0
      %v490 = vadd.f32 %v346, %v489
      %491 = vdwg.mxu0
      %492 = vmatprep.subr.mxu0 0.0
      %493 = vmatpush1.msra.mxu0 %v254
      %494 = vmatprep.subr.mxu0 0.0
      %495 = vmatpush1.msra.mxu0 0.0
      %496 = vmatprep.subr.mxu0 0.0
      %497 = vmatpush1.msra.mxu0 0.0
      %498 = vmatprep.subr.mxu0 0.0
      %499 = vmatpush1.msra.mxu0 0.0
      %500 = vmatprep.subr.mxu0 0.0
      %501 = vmatpush1.msra.mxu0 0.0
      %502 = vmatprep.subr.mxu0 0.0
      %503 = vmatpush1.msra.mxu0 0.0
      %504 = vmatprep.subr.mxu0 0.0
      %505 = vmatpush1.msra.mxu0 0.0
      %506 = vmatprep.subr.mxu0 0.0
      %507 = vmatpush1.msra.mxu0 0.0
      %508 = vmatprep.subr.mxu0 0.0
      %509 = vmatpush1.msra.mxu0 0.0
      %510 = vmatprep.subr.mxu0 0.0
      %511 = vmatpush1.msra.mxu0 0.0
      %512 = vmatprep.subr.mxu0 0.0
      %513 = vmatpush1.msra.mxu0 0.0
      %514 = vmatprep.subr.mxu0 0.0
      %515 = vmatpush1.msra.mxu0 0.0
      %516 = vmatprep.subr.mxu0 0.0
      %517 = vmatpush1.msra.mxu0 0.0
      %518 = vmatprep.subr.mxu0 0.0
      %519 = vmatpush1.msra.mxu0 0.0
      %520 = vmatprep.subr.mxu0 0.0
      %521 = vmatpush1.msra.mxu0 0.0
      %522 = vmatprep.subr.mxu0 0.0
      %523 = vmatpush1.msra.mxu0 0.0
      %524 = vmatprep.subr.mxu0 0.0
      %525 = vmatpush1.msra.mxu0 0.0
      %526 = vmatprep.subr.mxu0 0.0
      %527 = vmatpush1.msra.mxu0 0.0
      %528 = vmatprep.subr.mxu0 0.0
      %529 = vmatpush1.msra.mxu0 0.0
      %530 = vmatprep.subr.mxu0 0.0
      %531 = vmatpush1.msra.mxu0 0.0
      %532 = vmatprep.subr.mxu0 0.0
      %533 = vmatpush1.msra.mxu0 0.0
      %534 = vmatprep.subr.mxu0 0.0
      %535 = vmatpush1.msra.mxu0 0.0
      %536 = vmatprep.subr.mxu0 0.0
      %537 = vmatpush1.msra.mxu0 0.0
      %538 = vmatprep.subr.mxu0 0.0
      %539 = vmatpush1.msra.mxu0 0.0
      %540 = vmatprep.subr.mxu0 0.0
      %541 = vmatpush1.msra.mxu0 0.0
      %542 = vmatprep.subr.mxu0 0.0
      %543 = vmatpush1.msra.mxu0 0.0
      %544 = vmatprep.subr.mxu0 0.0
      %545 = vmatpush1.msra.mxu0 0.0
      %546 = vmatprep.subr.mxu0 0.0
      %547 = vmatpush1.msra.mxu0 0.0
      %548 = vmatprep.subr.mxu0 0.0
      %549 = vmatpush1.msra.mxu0 0.0
      %550 = vmatprep.subr.mxu0 0.0
      %551 = vmatpush1.msra.mxu0 0.0
      %552 = vmatprep.subr.mxu0 0.0
      %553 = vmatpush1.msra.mxu0 0.0
      %554 = vmatprep.subr.mxu0 0.0
      %555 = vmatpush1.msra.mxu0 0.0
      %556 = vmatprep.mubr.f32.mxu0 0.0
      %557 = vmatmul.mubr.f32.gmra.mrb[0].mxu0 %v419
      %v558 = vpop.f32.mrb[0].mxu0
      %v559 = vadd.f32 %v415, %v558
      %v560 = vpop.f32.mrb[0].mxu0
      %561 = vdwg.mxu0
      %s562 = scalar_lea.vmem %s2, 16
      %v563 = vld [vmem:[%s562] sm:$0xff]
      %564 = vrot.lane.b32.xlu0 %v252, 126
      %v565 = vpop.permute.xlu0 %564
      %566 = vrot.lane.b32.xlu0 %v253, 126
      %v567 = vpop.permute.xlu0 %566
      %568 = vrot.lane.b32.xlu0 %v254, 126
      %v569 = vpop.permute.xlu0 %568
      %vm570 = vcmask 1031168
      %v571 = vsel %vm570, %v565, %v567
      %v572 = vsel %vm570, %v567, %v569
      %v577 = vsel %vm273, %v563, 0
      %579 = vmatprep.subr.mxu0 %v572
      %580 = vmatpush1.msra.mxu0 %v571
      %581 = vmatprep.subr.mxu0 0.0
      %582 = vmatpush1.msra.mxu0 0.0
      %583 = vmatprep.subr.mxu0 0.0
      %584 = vmatpush1.msra.mxu0 0.0
      %585 = vmatprep.subr.mxu0 0.0
      %586 = vmatpush1.msra.mxu0 0.0
      %587 = vmatprep.subr.mxu0 0.0
      %588 = vmatpush1.msra.mxu0 0.0
      %589 = vmatprep.subr.mxu0 0.0
      %590 = vmatpush1.msra.mxu0 0.0
      %591 = vmatprep.subr.mxu0 0.0
      %592 = vmatpush1.msra.mxu0 0.0
      %593 = vmatprep.subr.mxu0 0.0
      %594 = vmatpush1.msra.mxu0 0.0
      %595 = vmatprep.subr.mxu0 0.0
      %596 = vmatpush1.msra.mxu0 0.0
      %597 = vmatprep.subr.mxu0 0.0
      %598 = vmatpush1.msra.mxu0 0.0
      %599 = vmatprep.subr.mxu0 0.0
      %600 = vmatpush1.msra.mxu0 0.0
      %601 = vmatprep.subr.mxu0 0.0
      %602 = vmatpush1.msra.mxu0 0.0
      %603 = vmatprep.subr.mxu0 0.0
      %604 = vmatpush1.msra.mxu0 0.0
      %605 = vmatprep.subr.mxu0 0.0
      %606 = vmatpush1.msra.mxu0 0.0
      %607 = vmatprep.subr.mxu0 0.0
      %608 = vmatpush1.msra.mxu0 0.0
      %609 = vmatprep.subr.mxu0 0.0
      %610 = vmatpush1.msra.mxu0 0.0
      %611 = vmatprep.subr.mxu0 0.0
      %612 = vmatpush1.msra.mxu0 0.0
      %613 = vmatprep.subr.mxu0 0.0
      %614 = vmatpush1.msra.mxu0 0.0
      %615 = vmatprep.subr.mxu0 0.0
      %616 = vmatpush1.msra.mxu0 0.0
      %617 = vmatprep.subr.mxu0 0.0
      %618 = vmatpush1.msra.mxu0 0.0
      %619 = vmatprep.subr.mxu0 0.0
      %620 = vmatpush1.msra.mxu0 0.0
      %621 = vmatprep.subr.mxu0 0.0
      %622 = vmatpush1.msra.mxu0 0.0
      %623 = vmatprep.subr.mxu0 0.0
      %624 = vmatpush1.msra.mxu0 0.0
      %625 = vmatprep.subr.mxu0 0.0
      %626 = vmatpush1.msra.mxu0 0.0
      %627 = vmatprep.subr.mxu0 0.0
      %628 = vmatpush1.msra.mxu0 0.0
      %629 = vmatprep.subr.mxu0 0.0
      %630 = vmatpush1.msra.mxu0 0.0
      %631 = vmatprep.subr.mxu0 0.0
      %632 = vmatpush1.msra.mxu0 0.0
      %633 = vmatprep.subr.mxu0 0.0
      %634 = vmatpush1.msra.mxu0 0.0
      %635 = vmatprep.subr.mxu0 0.0
      %636 = vmatpush1.msra.mxu0 0.0
      %637 = vmatprep.subr.mxu0 0.0
      %638 = vmatpush1.msra.mxu0 0.0
      %639 = vmatprep.subr.mxu0 0.0
      %640 = vmatpush1.msra.mxu0 0.0
      %641 = vmatprep.subr.mxu0 0.0
      %642 = vmatpush1.msra.mxu0 0.0
      %643 = vmatprep.mubr.f32.mxu0 0.0
      %644 = vmatmul.mubr.f32.gmra.mrb[0].mxu0 %v577
      %v645 = vpop.f32.mrb[0].mxu0
      %v646 = vadd.f32 0.0, %v645
      %v647 = vpop.f32.mrb[0].mxu0
      %v648 = vadd.f32 0.0, %v647
      %649 = vdwg.mxu0
      %650 = vmatprep.subr.mxu0 0.0
      %651 = vmatpush1.msra.mxu0 %v569
      %652 = vmatprep.subr.mxu0 0.0
      %653 = vmatpush1.msra.mxu0 0.0
      %654 = vmatprep.subr.mxu0 0.0
      %655 = vmatpush1.msra.mxu0 0.0
      %656 = vmatprep.subr.mxu0 0.0
      %657 = vmatpush1.msra.mxu0 0.0
      %658 = vmatprep.subr.mxu0 0.0
      %659 = vmatpush1.msra.mxu0 0.0
      %660 = vmatprep.subr.mxu0 0.0
      %661 = vmatpush1.msra.mxu0 0.0
      %662 = vmatprep.subr.mxu0 0.0
      %663 = vmatpush1.msra.mxu0 0.0
      %664 = vmatprep.subr.mxu0 0.0
      %665 = vmatpush1.msra.mxu0 0.0
      %666 = vmatprep.subr.mxu0 0.0
      %667 = vmatpush1.msra.mxu0 0.0
      %668 = vmatprep.subr.mxu0 0.0
      %669 = vmatpush1.msra.mxu0 0.0
      %670 = vmatprep.subr.mxu0 0.0
      %671 = vmatpush1.msra.mxu0 0.0
      %672 = vmatprep.subr.mxu0 0.0
      %673 = vmatpush1.msra.mxu0 0.0
      %674 = vmatprep.subr.mxu0 0.0
      %675 = vmatpush1.msra.mxu0 0.0
      %676 = vmatprep.subr.mxu0 0.0
      %677 = vmatpush1.msra.mxu0 0.0
      %678 = vmatprep.subr.mxu0 0.0
      %679 = vmatpush1.msra.mxu0 0.0
      %680 = vmatprep.subr.mxu0 0.0
      %681 = vmatpush1.msra.mxu0 0.0
      %682 = vmatprep.subr.mxu0 0.0
      %683 = vmatpush1.msra.mxu0 0.0
      %684 = vmatprep.subr.mxu0 0.0
      %685 = vmatpush1.msra.mxu0 0.0
      %686 = vmatprep.subr.mxu0 0.0
      %687 = vmatpush1.msra.mxu0 0.0
      %688 = vmatprep.subr.mxu0 0.0
      %689 = vmatpush1.msra.mxu0 0.0
      %690 = vmatprep.subr.mxu0 0.0
      %691 = vmatpush1.msra.mxu0 0.0
      %692 = vmatprep.subr.mxu0 0.0
      %693 = vmatpush1.msra.mxu0 0.0
      %694 = vmatprep.subr.mxu0 0.0
      %695 = vmatpush1.msra.mxu0 0.0
      %696 = vmatprep.subr.mxu0 0.0
      %697 = vmatpush1.msra.mxu0 0.0
      %698 = vmatprep.subr.mxu0 0.0
      %699 = vmatpush1.msra.mxu0 0.0
      %700 = vmatprep.subr.mxu0 0.0
      %701 = vmatpush1.msra.mxu0 0.0
      %702 = vmatprep.subr.mxu0 0.0
      %703 = vmatpush1.msra.mxu0 0.0
      %704 = vmatprep.subr.mxu0 0.0
      %705 = vmatpush1.msra.mxu0 0.0
      %706 = vmatprep.subr.mxu0 0.0
      %707 = vmatpush1.msra.mxu0 0.0
      %708 = vmatprep.subr.mxu0 0.0
      %709 = vmatpush1.msra.mxu0 0.0
      %710 = vmatprep.subr.mxu0 0.0
      %711 = vmatpush1.msra.mxu0 0.0
      %712 = vmatprep.subr.mxu0 0.0
      %713 = vmatpush1.msra.mxu0 0.0
      %714 = vmatprep.mubr.f32.mxu0 0.0
      %715 = vmatmul.mubr.f32.gmra.mrb[0].mxu0 %v577
      %v716 = vpop.f32.mrb[0].mxu0
      %v717 = vadd.f32 0.0, %v716
      %v718 = vpop.f32.mrb[0].mxu0
      %719 = vdwg.mxu0
      %v720 = vadd.f32 %v488, %v646
      %v721 = vadd.f32 %v490, %v648
      %v722 = vadd.f32 %v559, %v717
      %s723 = scalar_lea.vmem %s2, 24
      %v724 = vld [vmem:[%s723] sm:$0xff]
      %725 = vrot.lane.b32.xlu0 %v252, 110
      %v726 = vpop.permute.xlu0 %725
      %727 = vrot.lane.b32.xlu0 %v253, 110
      %v728 = vpop.permute.xlu0 %727
      %729 = vrot.lane.b32.xlu0 %v254, 110
      %v730 = vpop.permute.xlu0 %729
      %vm731 = vcmask 900096
      %v732 = vsel %vm731, %v726, %v728
      %v733 = vsel %vm731, %v728, %v730
      %v738 = vsel %vm273, %v724, 0
      %740 = vmatprep.subr.mxu0 %v733
      %741 = vmatpush1.msra.mxu0 %v732
      %742 = vmatprep.subr.mxu0 0.0
      %743 = vmatpush1.msra.mxu0 0.0
      %744 = vmatprep.subr.mxu0 0.0
      %745 = vmatpush1.msra.mxu0 0.0
      %746 = vmatprep.subr.mxu0 0.0
      %747 = vmatpush1.msra.mxu0 0.0
      %748 = vmatprep.subr.mxu0 0.0
      %749 = vmatpush1.msra.mxu0 0.0
      %750 = vmatprep.subr.mxu0 0.0
      %751 = vmatpush1.msra.mxu0 0.0
      %752 = vmatprep.subr.mxu0 0.0
      %753 = vmatpush1.msra.mxu0 0.0
      %754 = vmatprep.subr.mxu0 0.0
      %755 = vmatpush1.msra.mxu0 0.0
      %756 = vmatprep.subr.mxu0 0.0
      %757 = vmatpush1.msra.mxu0 0.0
      %758 = vmatprep.subr.mxu0 0.0
      %759 = vmatpush1.msra.mxu0 0.0
      %760 = vmatprep.subr.mxu0 0.0
      %761 = vmatpush1.msra.mxu0 0.0
      %762 = vmatprep.subr.mxu0 0.0
      %763 = vmatpush1.msra.mxu0 0.0
      %764 = vmatprep.subr.mxu0 0.0
      %765 = vmatpush1.msra.mxu0 0.0
      %766 = vmatprep.subr.mxu0 0.0
      %767 = vmatpush1.msra.mxu0 0.0
      %768 = vmatprep.subr.mxu0 0.0
      %769 = vmatpush1.msra.mxu0 0.0
      %770 = vmatprep.subr.mxu0 0.0
      %771 = vmatpush1.msra.mxu0 0.0
      %772 = vmatprep.subr.mxu0 0.0
      %773 = vmatpush1.msra.mxu0 0.0
      %774 = vmatprep.subr.mxu0 0.0
      %775 = vmatpush1.msra.mxu0 0.0
      %776 = vmatprep.subr.mxu0 0.0
      %777 = vmatpush1.msra.mxu0 0.0
      %778 = vmatprep.subr.mxu0 0.0
      %779 = vmatpush1.msra.mxu0 0.0
      %780 = vmatprep.subr.mxu0 0.0
      %781 = vmatpush1.msra.mxu0 0.0
      %782 = vmatprep.subr.mxu0 0.0
      %783 = vmatpush1.msra.mxu0 0.0
      %784 = vmatprep.subr.mxu0 0.0
      %785 = vmatpush1.msra.mxu0 0.0
      %786 = vmatprep.subr.mxu0 0.0
      %787 = vmatpush1.msra.mxu0 0.0
      %788 = vmatprep.subr.mxu0 0.0
      %789 = vmatpush1.msra.mxu0 0.0
      %790 = vmatprep.subr.mxu0 0.0
      %791 = vmatpush1.msra.mxu0 0.0
      %792 = vmatprep.subr.mxu0 0.0
      %793 = vmatpush1.msra.mxu0 0.0
      %794 = vmatprep.subr.mxu0 0.0
      %795 = vmatpush1.msra.mxu0 0.0
      %796 = vmatprep.subr.mxu0 0.0
      %797 = vmatpush1.msra.mxu0 0.0
      %798 = vmatprep.subr.mxu0 0.0
      %799 = vmatpush1.msra.mxu0 0.0
      %800 = vmatprep.subr.mxu0 0.0
      %801 = vmatpush1.msra.mxu0 0.0
      %802 = vmatprep.subr.mxu0 0.0
      %803 = vmatpush1.msra.mxu0 0.0
      %804 = vmatprep.mubr.f32.mxu0 0.0
      %805 = vmatmul.mubr.f32.gmra.mrb[0].mxu0 %v738
      %v806 = vpop.f32.mrb[0].mxu0
      %v807 = vadd.f32 0.0, %v806
      %v808 = vpop.f32.mrb[0].mxu0
      %v809 = vadd.f32 0.0, %v808
      %810 = vdwg.mxu0
      %811 = vmatprep.subr.mxu0 0.0
      %812 = vmatpush1.msra.mxu0 %v730
      %813 = vmatprep.subr.mxu0 0.0
      %814 = vmatpush1.msra.mxu0 0.0
      %815 = vmatprep.subr.mxu0 0.0
      %816 = vmatpush1.msra.mxu0 0.0
      %817 = vmatprep.subr.mxu0 0.0
      %818 = vmatpush1.msra.mxu0 0.0
      %819 = vmatprep.subr.mxu0 0.0
      %820 = vmatpush1.msra.mxu0 0.0
      %821 = vmatprep.subr.mxu0 0.0
      %822 = vmatpush1.msra.mxu0 0.0
      %823 = vmatprep.subr.mxu0 0.0
      %824 = vmatpush1.msra.mxu0 0.0
      %825 = vmatprep.subr.mxu0 0.0
      %826 = vmatpush1.msra.mxu0 0.0
      %827 = vmatprep.subr.mxu0 0.0
      %828 = vmatpush1.msra.mxu0 0.0
      %829 = vmatprep.subr.mxu0 0.0
      %830 = vmatpush1.msra.mxu0 0.0
      %831 = vmatprep.subr.mxu0 0.0
      %832 = vmatpush1.msra.mxu0 0.0
      %833 = vmatprep.subr.mxu0 0.0
      %834 = vmatpush1.msra.mxu0 0.0
      %835 = vmatprep.subr.mxu0 0.0
      %836 = vmatpush1.msra.mxu0 0.0
      %837 = vmatprep.subr.mxu0 0.0
      %838 = vmatpush1.msra.mxu0 0.0
      %839 = vmatprep.subr.mxu0 0.0
      %840 = vmatpush1.msra.mxu0 0.0
      %841 = vmatprep.subr.mxu0 0.0
      %842 = vmatpush1.msra.mxu0 0.0
      %843 = vmatprep.subr.mxu0 0.0
      %844 = vmatpush1.msra.mxu0 0.0
      %845 = vmatprep.subr.mxu0 0.0
      %846 = vmatpush1.msra.mxu0 0.0
      %847 = vmatprep.subr.mxu0 0.0
      %848 = vmatpush1.msra.mxu0 0.0
      %849 = vmatprep.subr.mxu0 0.0
      %850 = vmatpush1.msra.mxu0 0.0
      %851 = vmatprep.subr.mxu0 0.0
      %852 = vmatpush1.msra.mxu0 0.0
      %853 = vmatprep.subr.mxu0 0.0
      %854 = vmatpush1.msra.mxu0 0.0
      %855 = vmatprep.subr.mxu0 0.0
      %856 = vmatpush1.msra.mxu0 0.0
      %857 = vmatprep.subr.mxu0 0.0
      %858 = vmatpush1.msra.mxu0 0.0
      %859 = vmatprep.subr.mxu0 0.0
      %860 = vmatpush1.msra.mxu0 0.0
      %861 = vmatprep.subr.mxu0 0.0
      %862 = vmatpush1.msra.mxu0 0.0
      %863 = vmatprep.subr.mxu0 0.0
      %864 = vmatpush1.msra.mxu0 0.0
      %865 = vmatprep.subr.mxu0 0.0
      %866 = vmatpush1.msra.mxu0 0.0
      %867 = vmatprep.subr.mxu0 0.0
      %868 = vmatpush1.msra.mxu0 0.0
      %869 = vmatprep.subr.mxu0 0.0
      %870 = vmatpush1.msra.mxu0 0.0
      %871 = vmatprep.subr.mxu0 0.0
      %872 = vmatpush1.msra.mxu0 0.0
      %873 = vmatprep.subr.mxu0 0.0
      %874 = vmatpush1.msra.mxu0 0.0
      %875 = vmatprep.mubr.f32.mxu0 0.0
      %876 = vmatmul.mubr.f32.gmra.mrb[0].mxu0 %v738
      %v877 = vpop.f32.mrb[0].mxu0
      %v878 = vadd.f32 0.0, %v877
      %v879 = vpop.f32.mrb[0].mxu0
      %880 = vdwg.mxu0
      %v881 = vadd.f32 %v720, %v807
      %v882 = vadd.f32 %v721, %v809
      %v883 = vadd.f32 %v722, %v878
      %s884 = scalar_lea.vmem %s2, 32
      %v885 = vld [vmem:[%s884] sm:$0xff]
      %886 = vrot.lane.b32.xlu0 %v252, 109
      %v887 = vpop.permute.xlu0 %886
      %888 = vrot.lane.b32.xlu0 %v253, 109
      %v889 = vpop.permute.xlu0 %888
      %890 = vrot.lane.b32.xlu0 %v254, 109
      %v891 = vpop.permute.xlu0 %890
      %vm892 = vcmask 891904
      %v893 = vsel %vm892, %v887, %v889
      %v894 = vsel %vm892, %v889, %v891
      %v899 = vsel %vm273, %v885, 0
      %901 = vmatprep.subr.mxu0 %v894
      %902 = vmatpush1.msra.mxu0 %v893
      %903 = vmatprep.subr.mxu0 0.0
      %904 = vmatpush1.msra.mxu0 0.0
      %905 = vmatprep.subr.mxu0 0.0
      %906 = vmatpush1.msra.mxu0 0.0
      %907 = vmatprep.subr.mxu0 0.0
      %908 = vmatpush1.msra.mxu0 0.0
      %909 = vmatprep.subr.mxu0 0.0
      %910 = vmatpush1.msra.mxu0 0.0
      %911 = vmatprep.subr.mxu0 0.0
      %912 = vmatpush1.msra.mxu0 0.0
      %913 = vmatprep.subr.mxu0 0.0
      %914 = vmatpush1.msra.mxu0 0.0
      %915 = vmatprep.subr.mxu0 0.0
      %916 = vmatpush1.msra.mxu0 0.0
      %917 = vmatprep.subr.mxu0 0.0
      %918 = vmatpush1.msra.mxu0 0.0
      %919 = vmatprep.subr.mxu0 0.0
      %920 = vmatpush1.msra.mxu0 0.0
      %921 = vmatprep.subr.mxu0 0.0
      %922 = vmatpush1.msra.mxu0 0.0
      %923 = vmatprep.subr.mxu0 0.0
      %924 = vmatpush1.msra.mxu0 0.0
      %925 = vmatprep.subr.mxu0 0.0
      %926 = vmatpush1.msra.mxu0 0.0
      %927 = vmatprep.subr.mxu0 0.0
      %928 = vmatpush1.msra.mxu0 0.0
      %929 = vmatprep.subr.mxu0 0.0
      %930 = vmatpush1.msra.mxu0 0.0
      %931 = vmatprep.subr.mxu0 0.0
      %932 = vmatpush1.msra.mxu0 0.0
      %933 = vmatprep.subr.mxu0 0.0
      %934 = vmatpush1.msra.mxu0 0.0
      %935 = vmatprep.subr.mxu0 0.0
      %936 = vmatpush1.msra.mxu0 0.0
      %937 = vmatprep.subr.mxu0 0.0
      %938 = vmatpush1.msra.mxu0 0.0
      %939 = vmatprep.subr.mxu0 0.0
      %940 = vmatpush1.msra.mxu0 0.0
      %941 = vmatprep.subr.mxu0 0.0
      %942 = vmatpush1.msra.mxu0 0.0
      %943 = vmatprep.subr.mxu0 0.0
      %944 = vmatpush1.msra.mxu0 0.0
      %945 = vmatprep.subr.mxu0 0.0
      %946 = vmatpush1.msra.mxu0 0.0
      %947 = vmatprep.subr.mxu0 0.0
      %948 = vmatpush1.msra.mxu0 0.0
      %949 = vmatprep.subr.mxu0 0.0
      %950 = vmatpush1.msra.mxu0 0.0
      %951 = vmatprep.subr.mxu0 0.0
      %952 = vmatpush1.msra.mxu0 0.0
      %953 = vmatprep.subr.mxu0 0.0
      %954 = vmatpush1.msra.mxu0 0.0
      %955 = vmatprep.subr.mxu0 0.0
      %956 = vmatpush1.msra.mxu0 0.0
      %957 = vmatprep.subr.mxu0 0.0
      %958 = vmatpush1.msra.mxu0 0.0
      %959 = vmatprep.subr.mxu0 0.0
      %960 = vmatpush1.msra.mxu0 0.0
      %961 = vmatprep.subr.mxu0 0.0
      %962 = vmatpush1.msra.mxu0 0.0
      %963 = vmatprep.subr.mxu0 0.0
      %964 = vmatpush1.msra.mxu0 0.0
      %965 = vmatprep.mubr.f32.mxu0 0.0
      %966 = vmatmul.mubr.f32.gmra.mrb[0].mxu0 %v899
      %v967 = vpop.f32.mrb[0].mxu0
      %v968 = vadd.f32 0.0, %v967
      %v969 = vpop.f32.mrb[0].mxu0
      %v970 = vadd.f32 0.0, %v969
      %971 = vdwg.mxu0
      %972 = vmatprep.subr.mxu0 0.0
      %973 = vmatpush1.msra.mxu0 %v891
      %974 = vmatprep.subr.mxu0 0.0
      %975 = vmatpush1.msra.mxu0 0.0
      %976 = vmatprep.subr.mxu0 0.0
      %977 = vmatpush1.msra.mxu0 0.0
      %978 = vmatprep.subr.mxu0 0.0
      %979 = vmatpush1.msra.mxu0 0.0
      %980 = vmatprep.subr.mxu0 0.0
      %981 = vmatpush1.msra.mxu0 0.0
      %982 = vmatprep.subr.mxu0 0.0
      %983 = vmatpush1.msra.mxu0 0.0
      %984 = vmatprep.subr.mxu0 0.0
      %985 = vmatpush1.msra.mxu0 0.0
      %986 = vmatprep.subr.mxu0 0.0
      %987 = vmatpush1.msra.mxu0 0.0
      %988 = vmatprep.subr.mxu0 0.0
      %989 = vmatpush1.msra.mxu0 0.0
      %990 = vmatprep.subr.mxu0 0.0
      %991 = vmatpush1.msra.mxu0 0.0
      %992 = vmatprep.subr.mxu0 0.0
      %993 = vmatpush1.msra.mxu0 0.0
      %994 = vmatprep.subr.mxu0 0.0
      %995 = vmatpush1.msra.mxu0 0.0
      %996 = vmatprep.subr.mxu0 0.0
      %997 = vmatpush1.msra.mxu0 0.0
      %998 = vmatprep.subr.mxu0 0.0
      %999 = vmatpush1.msra.mxu0 0.0
      %1000 = vmatprep.subr.mxu0 0.0
      %1001 = vmatpush1.msra.mxu0 0.0
      %1002 = vmatprep.subr.mxu0 0.0
      %1003 = vmatpush1.msra.mxu0 0.0
      %1004 = vmatprep.subr.mxu0 0.0
      %1005 = vmatpush1.msra.mxu0 0.0
      %1006 = vmatprep.subr.mxu0 0.0
      %1007 = vmatpush1.msra.mxu0 0.0
      %1008 = vmatprep.subr.mxu0 0.0
      %1009 = vmatpush1.msra.mxu0 0.0
      %1010 = vmatprep.subr.mxu0 0.0
      %1011 = vmatpush1.msra.mxu0 0.0
      %1012 = vmatprep.subr.mxu0 0.0
      %1013 = vmatpush1.msra.mxu0 0.0
      %1014 = vmatprep.subr.mxu0 0.0
      %1015 = vmatpush1.msra.mxu0 0.0
      %1016 = vmatprep.subr.mxu0 0.0
      %1017 = vmatpush1.msra.mxu0 0.0
      %1018 = vmatprep.subr.mxu0 0.0
      %1019 = vmatpush1.msra.mxu0 0.0
      %1020 = vmatprep.subr.mxu0 0.0
      %1021 = vmatpush1.msra.mxu0 0.0
      %1022 = vmatprep.subr.mxu0 0.0
      %1023 = vmatpush1.msra.mxu0 0.0
      %1024 = vmatprep.subr.mxu0 0.0
      %1025 = vmatpush1.msra.mxu0 0.0
      %1026 = vmatprep.subr.mxu0 0.0
      %1027 = vmatpush1.msra.mxu0 0.0
      %1028 = vmatprep.subr.mxu0 0.0
      %1029 = vmatpush1.msra.mxu0 0.0
      %1030 = vmatprep.subr.mxu0 0.0
      %1031 = vmatpush1.msra.mxu0 0.0
      %1032 = vmatprep.subr.mxu0 0.0
      %1033 = vmatpush1.msra.mxu0 0.0
      %1034 = vmatprep.subr.mxu0 0.0
      %1035 = vmatpush1.msra.mxu0 0.0
      %1036 = vmatprep.mubr.f32.mxu0 0.0
      %1037 = vmatmul.mubr.f32.gmra.mrb[0].mxu0 %v899
      %v1038 = vpop.f32.mrb[0].mxu0
      %v1039 = vadd.f32 0.0, %v1038
      %v1040 = vpop.f32.mrb[0].mxu0
      %1041 = vdwg.mxu0
      %v1042 = vadd.f32 %v881, %v968
      %v1043 = vadd.f32 %v882, %v970
      %v1044 = vadd.f32 %v883, %v1039
      %s1045 = scalar_lea.vmem %s2, 40
      %v1046 = vld [vmem:[%s1045] sm:$0xff]
      %1047 = vrot.lane.b32.xlu0 %v252, 108
      %v1048 = vpop.permute.xlu0 %1047
      %1049 = vrot.lane.b32.xlu0 %v253, 108
      %v1050 = vpop.permute.xlu0 %1049
      %1051 = vrot.lane.b32.xlu0 %v254, 108
      %v1052 = vpop.permute.xlu0 %1051
      %vm1053 = vcmask 883712
      %v1054 = vsel %vm1053, %v1048, %v1050
      %v1055 = vsel %vm1053, %v1050, %v1052
      %v1060 = vsel %vm273, %v1046, 0
      %1062 = vmatprep.subr.mxu0 %v1055
      %1063 = vmatpush1.msra.mxu0 %v1054
      %1064 = vmatprep.subr.mxu0 0.0
      %1065 = vmatpush1.msra.mxu0 0.0
      %1066 = vmatprep.subr.mxu0 0.0
      %1067 = vmatpush1.msra.mxu0 0.0
      %1068 = vmatprep.subr.mxu0 0.0
      %1069 = vmatpush1.msra.mxu0 0.0
      %1070 = vmatprep.subr.mxu0 0.0
      %1071 = vmatpush1.msra.mxu0 0.0
      %1072 = vmatprep.subr.mxu0 0.0
      %1073 = vmatpush1.msra.mxu0 0.0
      %1074 = vmatprep.subr.mxu0 0.0
      %1075 = vmatpush1.msra.mxu0 0.0
      %1076 = vmatprep.subr.mxu0 0.0
      %1077 = vmatpush1.msra.mxu0 0.0
      %1078 = vmatprep.subr.mxu0 0.0
      %1079 = vmatpush1.msra.mxu0 0.0
      %1080 = vmatprep.subr.mxu0 0.0
      %1081 = vmatpush1.msra.mxu0 0.0
      %1082 = vmatprep.subr.mxu0 0.0
      %1083 = vmatpush1.msra.mxu0 0.0
      %1084 = vmatprep.subr.mxu0 0.0
      %1085 = vmatpush1.msra.mxu0 0.0
      %1086 = vmatprep.subr.mxu0 0.0
      %1087 = vmatpush1.msra.mxu0 0.0
      %1088 = vmatprep.subr.mxu0 0.0
      %1089 = vmatpush1.msra.mxu0 0.0
      %1090 = vmatprep.subr.mxu0 0.0
      %1091 = vmatpush1.msra.mxu0 0.0
      %1092 = vmatprep.subr.mxu0 0.0
      %1093 = vmatpush1.msra.mxu0 0.0
      %1094 = vmatprep.subr.mxu0 0.0
      %1095 = vmatpush1.msra.mxu0 0.0
      %1096 = vmatprep.subr.mxu0 0.0
      %1097 = vmatpush1.msra.mxu0 0.0
      %1098 = vmatprep.subr.mxu0 0.0
      %1099 = vmatpush1.msra.mxu0 0.0
      %1100 = vmatprep.subr.mxu0 0.0
      %1101 = vmatpush1.msra.mxu0 0.0
      %1102 = vmatprep.subr.mxu0 0.0
      %1103 = vmatpush1.msra.mxu0 0.0
      %1104 = vmatprep.subr.mxu0 0.0
      %1105 = vmatpush1.msra.mxu0 0.0
      %1106 = vmatprep.subr.mxu0 0.0
      %1107 = vmatpush1.msra.mxu0 0.0
      %1108 = vmatprep.subr.mxu0 0.0
      %1109 = vmatpush1.msra.mxu0 0.0
      %1110 = vmatprep.subr.mxu0 0.0
      %1111 = vmatpush1.msra.mxu0 0.0
      %1112 = vmatprep.subr.mxu0 0.0
      %1113 = vmatpush1.msra.mxu0 0.0
      %1114 = vmatprep.subr.mxu0 0.0
      %1115 = vmatpush1.msra.mxu0 0.0
      %1116 = vmatprep.subr.mxu0 0.0
      %1117 = vmatpush1.msra.mxu0 0.0
      %1118 = vmatprep.subr.mxu0 0.0
      %1119 = vmatpush1.msra.mxu0 0.0
      %1120 = vmatprep.subr.mxu0 0.0
      %1121 = vmatpush1.msra.mxu0 0.0
      %1122 = vmatprep.subr.mxu0 0.0
      %1123 = vmatpush1.msra.mxu0 0.0
      %1124 = vmatprep.subr.mxu0 0.0
      %1125 = vmatpush1.msra.mxu0 0.0
      %1126 = vmatprep.mubr.f32.mxu0 0.0
      %1127 = vmatmul.mubr.f32.gmra.mrb[0].mxu0 %v1060
      %v1128 = vpop.f32.mrb[0].mxu0
      %v1129 = vadd.f32 0.0, %v1128
      %v1130 = vpop.f32.mrb[0].mxu0
      %v1131 = vadd.f32 0.0, %v1130
      %1132 = vdwg.mxu0
      %1133 = vmatprep.subr.mxu0 0.0
      %1134 = vmatpush1.msra.mxu0 %v1052
      %1135 = vmatprep.subr.mxu0 0.0
      %1136 = vmatpush1.msra.mxu0 0.0
      %1137 = vmatprep.subr.mxu0 0.0
      %1138 = vmatpush1.msra.mxu0 0.0
      %1139 = vmatprep.subr.mxu0 0.0
      %1140 = vmatpush1.msra.mxu0 0.0
      %1141 = vmatprep.subr.mxu0 0.0
      %1142 = vmatpush1.msra.mxu0 0.0
      %1143 = vmatprep.subr.mxu0 0.0
      %1144 = vmatpush1.msra.mxu0 0.0
      %1145 = vmatprep.subr.mxu0 0.0
      %1146 = vmatpush1.msra.mxu0 0.0
      %1147 = vmatprep.subr.mxu0 0.0
      %1148 = vmatpush1.msra.mxu0 0.0
      %1149 = vmatprep.subr.mxu0 0.0
      %1150 = vmatpush1.msra.mxu0 0.0
      %1151 = vmatprep.subr.mxu0 0.0
      %1152 = vmatpush1.msra.mxu0 0.0
      %1153 = vmatprep.subr.mxu0 0.0
      %1154 = vmatpush1.msra.mxu0 0.0
      %1155 = vmatprep.subr.mxu0 0.0
      %1156 = vmatpush1.msra.mxu0 0.0
      %1157 = vmatprep.subr.mxu0 0.0
      %1158 = vmatpush1.msra.mxu0 0.0
      %1159 = vmatprep.subr.mxu0 0.0
      %1160 = vmatpush1.msra.mxu0 0.0
      %1161 = vmatprep.subr.mxu0 0.0
      %1162 = vmatpush1.msra.mxu0 0.0
      %1163 = vmatprep.subr.mxu0 0.0
      %1164 = vmatpush1.msra.mxu0 0.0
      %1165 = vmatprep.subr.mxu0 0.0
      %1166 = vmatpush1.msra.mxu0 0.0
      %1167 = vmatprep.subr.mxu0 0.0
      %1168 = vmatpush1.msra.mxu0 0.0
      %1169 = vmatprep.subr.mxu0 0.0
      %1170 = vmatpush1.msra.mxu0 0.0
      %1171 = vmatprep.subr.mxu0 0.0
      %1172 = vmatpush1.msra.mxu0 0.0
      %1173 = vmatprep.subr.mxu0 0.0
      %1174 = vmatpush1.msra.mxu0 0.0
      %1175 = vmatprep.subr.mxu0 0.0
      %1176 = vmatpush1.msra.mxu0 0.0
      %1177 = vmatprep.subr.mxu0 0.0
      %1178 = vmatpush1.msra.mxu0 0.0
      %1179 = vmatprep.subr.mxu0 0.0
      %1180 = vmatpush1.msra.mxu0 0.0
      %1181 = vmatprep.subr.mxu0 0.0
      %1182 = vmatpush1.msra.mxu0 0.0
      %1183 = vmatprep.subr.mxu0 0.0
      %1184 = vmatpush1.msra.mxu0 0.0
      %1185 = vmatprep.subr.mxu0 0.0
      %1186 = vmatpush1.msra.mxu0 0.0
      %1187 = vmatprep.subr.mxu0 0.0
      %1188 = vmatpush1.msra.mxu0 0.0
      %1189 = vmatprep.subr.mxu0 0.0
      %1190 = vmatpush1.msra.mxu0 0.0
      %1191 = vmatprep.subr.mxu0 0.0
      %1192 = vmatpush1.msra.mxu0 0.0
      %1193 = vmatprep.subr.mxu0 0.0
      %1194 = vmatpush1.msra.mxu0 0.0
      %1195 = vmatprep.subr.mxu0 0.0
      %1196 = vmatpush1.msra.mxu0 0.0
      %1197 = vmatprep.mubr.f32.mxu0 0.0
      %1198 = vmatmul.mubr.f32.gmra.mrb[0].mxu0 %v1060
      %v1199 = vpop.f32.mrb[0].mxu0
      %v1200 = vadd.f32 0.0, %v1199
      %v1201 = vpop.f32.mrb[0].mxu0
      %1202 = vdwg.mxu0
      %v1203 = vadd.f32 %v1042, %v1129
      %v1204 = vadd.f32 %v1043, %v1131
      %v1205 = vadd.f32 %v1044, %v1200
      %v1206 = vld [vmem:[%s246] sm:$0xff]
      %v1207 = vld [vmem:[%s246 + $0x8] sm:$0xff]
      %v1208 = vld [vmem:[%s246 + $0x10] sm:$0xff]
      %v1209 = vld [vmem:[%s246 + $0x18] sm:$0xff]
      %s1210 = scalar_lea.vmem %s2, 48
      %v1211 = vld [vmem:[%s1210] sm:$0xff]
      %1216 = vrot.lane.b32.xlu0 %v1206, 92
      %v1217 = vpop.permute.xlu0 %1216
      %1218 = vrot.lane.b32.xlu0 %v1207, 92
      %v1219 = vpop.permute.xlu0 %1218
      %1220 = vrot.lane.b32.xlu0 %v1208, 92
      %v1221 = vpop.permute.xlu0 %1220
      %1222 = vrot.lane.b32.xlu0 %v1209, 92
      %v1223 = vpop.permute.xlu0 %1222
      %vm1224 = vcmask 752640
      %v1225 = vsel %vm1224, %v1217, %v1219
      %v1226 = vsel %vm1224, %v1219, %v1221
      %v1227 = vsel %vm1224, %v1221, %v1223
      %v1232 = vsel %vm273, %v1211, 0
      %1234 = vmatprep.subr.mxu0 %v1226
      %1235 = vmatpush1.msra.mxu0 %v1225
      %1236 = vmatprep.subr.mxu0 0.0
      %1237 = vmatpush1.msra.mxu0 0.0
      %1238 = vmatprep.subr.mxu0 0.0
      %1239 = vmatpush1.msra.mxu0 0.0
      %1240 = vmatprep.subr.mxu0 0.0
      %1241 = vmatpush1.msra.mxu0 0.0
      %1242 = vmatprep.subr.mxu0 0.0
      %1243 = vmatpush1.msra.mxu0 0.0
      %1244 = vmatprep.subr.mxu0 0.0
      %1245 = vmatpush1.msra.mxu0 0.0
      %1246 = vmatprep.subr.mxu0 0.0
      %1247 = vmatpush1.msra.mxu0 0.0
      %1248 = vmatprep.subr.mxu0 0.0
      %1249 = vmatpush1.msra.mxu0 0.0
      %1250 = vmatprep.subr.mxu0 0.0
      %1251 = vmatpush1.msra.mxu0 0.0
      %1252 = vmatprep.subr.mxu0 0.0
      %1253 = vmatpush1.msra.mxu0 0.0
      %1254 = vmatprep.subr.mxu0 0.0
      %1255 = vmatpush1.msra.mxu0 0.0
      %1256 = vmatprep.subr.mxu0 0.0
      %1257 = vmatpush1.msra.mxu0 0.0
      %1258 = vmatprep.subr.mxu0 0.0
      %1259 = vmatpush1.msra.mxu0 0.0
      %1260 = vmatprep.subr.mxu0 0.0
      %1261 = vmatpush1.msra.mxu0 0.0
      %1262 = vmatprep.subr.mxu0 0.0
      %1263 = vmatpush1.msra.mxu0 0.0
      %1264 = vmatprep.subr.mxu0 0.0
      %1265 = vmatpush1.msra.mxu0 0.0
      %1266 = vmatprep.subr.mxu0 0.0
      %1267 = vmatpush1.msra.mxu0 0.0
      %1268 = vmatprep.subr.mxu0 0.0
      %1269 = vmatpush1.msra.mxu0 0.0
      %1270 = vmatprep.subr.mxu0 0.0
      %1271 = vmatpush1.msra.mxu0 0.0
      %1272 = vmatprep.subr.mxu0 0.0
      %1273 = vmatpush1.msra.mxu0 0.0
      %1274 = vmatprep.subr.mxu0 0.0
      %1275 = vmatpush1.msra.mxu0 0.0
      %1276 = vmatprep.subr.mxu0 0.0
      %1277 = vmatpush1.msra.mxu0 0.0
      %1278 = vmatprep.subr.mxu0 0.0
      %1279 = vmatpush1.msra.mxu0 0.0
      %1280 = vmatprep.subr.mxu0 0.0
      %1281 = vmatpush1.msra.mxu0 0.0
      %1282 = vmatprep.subr.mxu0 0.0
      %1283 = vmatpush1.msra.mxu0 0.0
      %1284 = vmatprep.subr.mxu0 0.0
      %1285 = vmatpush1.msra.mxu0 0.0
      %1286 = vmatprep.subr.mxu0 0.0
      %1287 = vmatpush1.msra.mxu0 0.0
      %1288 = vmatprep.subr.mxu0 0.0
      %1289 = vmatpush1.msra.mxu0 0.0
      %1290 = vmatprep.subr.mxu0 0.0
      %1291 = vmatpush1.msra.mxu0 0.0
      %1292 = vmatprep.subr.mxu0 0.0
      %1293 = vmatpush1.msra.mxu0 0.0
      %1294 = vmatprep.subr.mxu0 0.0
      %1295 = vmatpush1.msra.mxu0 0.0
      %1296 = vmatprep.subr.mxu0 0.0
      %1297 = vmatpush1.msra.mxu0 0.0
      %1298 = vmatprep.mubr.f32.mxu0 0.0
      %1299 = vmatmul.mubr.f32.gmra.mrb[0].mxu0 %v1232
      %v1300 = vpop.f32.mrb[0].mxu0
      %v1301 = vadd.f32 0.0, %v1300
      %v1302 = vpop.f32.mrb[0].mxu0
      %v1303 = vadd.f32 0.0, %v1302
      %1304 = vdwg.mxu0
      %1305 = vmatprep.subr.mxu0 0.0
      %1306 = vmatpush1.msra.mxu0 %v1227
      %1307 = vmatprep.subr.mxu0 0.0
      %1308 = vmatpush1.msra.mxu0 0.0
      %1309 = vmatprep.subr.mxu0 0.0
      %1310 = vmatpush1.msra.mxu0 0.0
      %1311 = vmatprep.subr.mxu0 0.0
      %1312 = vmatpush1.msra.mxu0 0.0
      %1313 = vmatprep.subr.mxu0 0.0
      %1314 = vmatpush1.msra.mxu0 0.0
      %1315 = vmatprep.subr.mxu0 0.0
      %1316 = vmatpush1.msra.mxu0 0.0
      %1317 = vmatprep.subr.mxu0 0.0
      %1318 = vmatpush1.msra.mxu0 0.0
      %1319 = vmatprep.subr.mxu0 0.0
      %1320 = vmatpush1.msra.mxu0 0.0
      %1321 = vmatprep.subr.mxu0 0.0
      %1322 = vmatpush1.msra.mxu0 0.0
      %1323 = vmatprep.subr.mxu0 0.0
      %1324 = vmatpush1.msra.mxu0 0.0
      %1325 = vmatprep.subr.mxu0 0.0
      %1326 = vmatpush1.msra.mxu0 0.0
      %1327 = vmatprep.subr.mxu0 0.0
      %1328 = vmatpush1.msra.mxu0 0.0
      %1329 = vmatprep.subr.mxu0 0.0
      %1330 = vmatpush1.msra.mxu0 0.0
      %1331 = vmatprep.subr.mxu0 0.0
      %1332 = vmatpush1.msra.mxu0 0.0
      %1333 = vmatprep.subr.mxu0 0.0
      %1334 = vmatpush1.msra.mxu0 0.0
      %1335 = vmatprep.subr.mxu0 0.0
      %1336 = vmatpush1.msra.mxu0 0.0
      %1337 = vmatprep.subr.mxu0 0.0
      %1338 = vmatpush1.msra.mxu0 0.0
      %1339 = vmatprep.subr.mxu0 0.0
      %1340 = vmatpush1.msra.mxu0 0.0
      %1341 = vmatprep.subr.mxu0 0.0
      %1342 = vmatpush1.msra.mxu0 0.0
      %1343 = vmatprep.subr.mxu0 0.0
      %1344 = vmatpush1.msra.mxu0 0.0
      %1345 = vmatprep.subr.mxu0 0.0
      %1346 = vmatpush1.msra.mxu0 0.0
      %1347 = vmatprep.subr.mxu0 0.0
      %1348 = vmatpush1.msra.mxu0 0.0
      %1349 = vmatprep.subr.mxu0 0.0
      %1350 = vmatpush1.msra.mxu0 0.0
      %1351 = vmatprep.subr.mxu0 0.0
      %1352 = vmatpush1.msra.mxu0 0.0
      %1353 = vmatprep.subr.mxu0 0.0
      %1354 = vmatpush1.msra.mxu0 0.0
      %1355 = vmatprep.subr.mxu0 0.0
      %1356 = vmatpush1.msra.mxu0 0.0
      %1357 = vmatprep.subr.mxu0 0.0
      %1358 = vmatpush1.msra.mxu0 0.0
      %1359 = vmatprep.subr.mxu0 0.0
      %1360 = vmatpush1.msra.mxu0 0.0
      %1361 = vmatprep.subr.mxu0 0.0
      %1362 = vmatpush1.msra.mxu0 0.0
      %1363 = vmatprep.subr.mxu0 0.0
      %1364 = vmatpush1.msra.mxu0 0.0
      %1365 = vmatprep.subr.mxu0 0.0
      %1366 = vmatpush1.msra.mxu0 0.0
      %1367 = vmatprep.subr.mxu0 0.0
      %1368 = vmatpush1.msra.mxu0 0.0
      %1369 = vmatprep.mubr.f32.mxu0 0.0
      %1370 = vmatmul.mubr.f32.gmra.mrb[0].mxu0 %v1232
      %v1371 = vpop.f32.mrb[0].mxu0
      %v1372 = vadd.f32 0.0, %v1371
      %v1373 = vpop.f32.mrb[0].mxu0
      %1374 = vdwg.mxu0
      %v1375 = vadd.f32 %v1203, %v1301
      %v1376 = vadd.f32 %v1204, %v1303
      %v1377 = vadd.f32 %v1205, %v1372
      %s1378 = scalar_lea.vmem %s2, 56
      %v1379 = vld [vmem:[%s1378] sm:$0xff]
      %1380 = vrot.lane.b32.xlu0 %v1206, 91
      %v1381 = vpop.permute.xlu0 %1380
      %1382 = vrot.lane.b32.xlu0 %v1207, 91
      %v1383 = vpop.permute.xlu0 %1382
      %1384 = vrot.lane.b32.xlu0 %v1208, 91
      %v1385 = vpop.permute.xlu0 %1384
      %1386 = vrot.lane.b32.xlu0 %v1209, 91
      %v1387 = vpop.permute.xlu0 %1386
      %vm1388 = vcmask 744448
      %v1389 = vsel %vm1388, %v1381, %v1383
      %v1390 = vsel %vm1388, %v1383, %v1385
      %v1391 = vsel %vm1388, %v1385, %v1387
      %v1396 = vsel %vm273, %v1379, 0
      %1398 = vmatprep.subr.mxu0 %v1390
      %1399 = vmatpush1.msra.mxu0 %v1389
      %1400 = vmatprep.subr.mxu0 0.0
      %1401 = vmatpush1.msra.mxu0 0.0
      %1402 = vmatprep.subr.mxu0 0.0
      %1403 = vmatpush1.msra.mxu0 0.0
      %1404 = vmatprep.subr.mxu0 0.0
      %1405 = vmatpush1.msra.mxu0 0.0
      %1406 = vmatprep.subr.mxu0 0.0
      %1407 = vmatpush1.msra.mxu0 0.0
      %1408 = vmatprep.subr.mxu0 0.0
      %1409 = vmatpush1.msra.mxu0 0.0
      %1410 = vmatprep.subr.mxu0 0.0
      %1411 = vmatpush1.msra.mxu0 0.0
      %1412 = vmatprep.subr.mxu0 0.0
      %1413 = vmatpush1.msra.mxu0 0.0
      %1414 = vmatprep.subr.mxu0 0.0
      %1415 = vmatpush1.msra.mxu0 0.0
      %1416 = vmatprep.subr.mxu0 0.0
      %1417 = vmatpush1.msra.mxu0 0.0
      %1418 = vmatprep.subr.mxu0 0.0
      %1419 = vmatpush1.msra.mxu0 0.0
      %1420 = vmatprep.subr.mxu0 0.0
      %1421 = vmatpush1.msra.mxu0 0.0
      %1422 = vmatprep.subr.mxu0 0.0
      %1423 = vmatpush1.msra.mxu0 0.0
      %1424 = vmatprep.subr.mxu0 0.0
      %1425 = vmatpush1.msra.mxu0 0.0
      %1426 = vmatprep.subr.mxu0 0.0
      %1427 = vmatpush1.msra.mxu0 0.0
      %1428 = vmatprep.subr.mxu0 0.0
      %1429 = vmatpush1.msra.mxu0 0.0
      %1430 = vmatprep.subr.mxu0 0.0
      %1431 = vmatpush1.msra.mxu0 0.0
      %1432 = vmatprep.subr.mxu0 0.0
      %1433 = vmatpush1.msra.mxu0 0.0
      %1434 = vmatprep.subr.mxu0 0.0
      %1435 = vmatpush1.msra.mxu0 0.0
      %1436 = vmatprep.subr.mxu0 0.0
      %1437 = vmatpush1.msra.mxu0 0.0
      %1438 = vmatprep.subr.mxu0 0.0
      %1439 = vmatpush1.msra.mxu0 0.0
      %1440 = vmatprep.subr.mxu0 0.0
      %1441 = vmatpush1.msra.mxu0 0.0
      %1442 = vmatprep.subr.mxu0 0.0
      %1443 = vmatpush1.msra.mxu0 0.0
      %1444 = vmatprep.subr.mxu0 0.0
      %1445 = vmatpush1.msra.mxu0 0.0
      %1446 = vmatprep.subr.mxu0 0.0
      %1447 = vmatpush1.msra.mxu0 0.0
      %1448 = vmatprep.subr.mxu0 0.0
      %1449 = vmatpush1.msra.mxu0 0.0
      %1450 = vmatprep.subr.mxu0 0.0
      %1451 = vmatpush1.msra.mxu0 0.0
      %1452 = vmatprep.subr.mxu0 0.0
      %1453 = vmatpush1.msra.mxu0 0.0
      %1454 = vmatprep.subr.mxu0 0.0
      %1455 = vmatpush1.msra.mxu0 0.0
      %1456 = vmatprep.subr.mxu0 0.0
      %1457 = vmatpush1.msra.mxu0 0.0
      %1458 = vmatprep.subr.mxu0 0.0
      %1459 = vmatpush1.msra.mxu0 0.0
      %1460 = vmatprep.subr.mxu0 0.0
      %1461 = vmatpush1.msra.mxu0 0.0
      %1462 = vmatprep.mubr.f32.mxu0 0.0
      %1463 = vmatmul.mubr.f32.gmra.mrb[0].mxu0 %v1396
      %v1464 = vpop.f32.mrb[0].mxu0
      %v1465 = vadd.f32 0.0, %v1464
      %v1466 = vpop.f32.mrb[0].mxu0
      %v1467 = vadd.f32 0.0, %v1466
      %1468 = vdwg.mxu0
      %1469 = vmatprep.subr.mxu0 0.0
      %1470 = vmatpush1.msra.mxu0 %v1391
      %1471 = vmatprep.subr.mxu0 0.0
      %1472 = vmatpush1.msra.mxu0 0.0
      %1473 = vmatprep.subr.mxu0 0.0
      %1474 = vmatpush1.msra.mxu0 0.0
      %1475 = vmatprep.subr.mxu0 0.0
      %1476 = vmatpush1.msra.mxu0 0.0
      %1477 = vmatprep.subr.mxu0 0.0
      %1478 = vmatpush1.msra.mxu0 0.0
      %1479 = vmatprep.subr.mxu0 0.0
      %1480 = vmatpush1.msra.mxu0 0.0
      %1481 = vmatprep.subr.mxu0 0.0
      %1482 = vmatpush1.msra.mxu0 0.0
      %1483 = vmatprep.subr.mxu0 0.0
      %1484 = vmatpush1.msra.mxu0 0.0
      %1485 = vmatprep.subr.mxu0 0.0
      %1486 = vmatpush1.msra.mxu0 0.0
      %1487 = vmatprep.subr.mxu0 0.0
      %1488 = vmatpush1.msra.mxu0 0.0
      %1489 = vmatprep.subr.mxu0 0.0
      %1490 = vmatpush1.msra.mxu0 0.0
      %1491 = vmatprep.subr.mxu0 0.0
      %1492 = vmatpush1.msra.mxu0 0.0
      %1493 = vmatprep.subr.mxu0 0.0
      %1494 = vmatpush1.msra.mxu0 0.0
      %1495 = vmatprep.subr.mxu0 0.0
      %1496 = vmatpush1.msra.mxu0 0.0
      %1497 = vmatprep.subr.mxu0 0.0
      %1498 = vmatpush1.msra.mxu0 0.0
      %1499 = vmatprep.subr.mxu0 0.0
      %1500 = vmatpush1.msra.mxu0 0.0
      %1501 = vmatprep.subr.mxu0 0.0
      %1502 = vmatpush1.msra.mxu0 0.0
      %1503 = vmatprep.subr.mxu0 0.0
      %1504 = vmatpush1.msra.mxu0 0.0
      %1505 = vmatprep.subr.mxu0 0.0
      %1506 = vmatpush1.msra.mxu0 0.0
      %1507 = vmatprep.subr.mxu0 0.0
      %1508 = vmatpush1.msra.mxu0 0.0
      %1509 = vmatprep.subr.mxu0 0.0
      %1510 = vmatpush1.msra.mxu0 0.0
      %1511 = vmatprep.subr.mxu0 0.0
      %1512 = vmatpush1.msra.mxu0 0.0
      %1513 = vmatprep.subr.mxu0 0.0
      %1514 = vmatpush1.msra.mxu0 0.0
      %1515 = vmatprep.subr.mxu0 0.0
      %1516 = vmatpush1.msra.mxu0 0.0
      %1517 = vmatprep.subr.mxu0 0.0
      %1518 = vmatpush1.msra.mxu0 0.0
      %1519 = vmatprep.subr.mxu0 0.0
      %1520 = vmatpush1.msra.mxu0 0.0
      %1521 = vmatprep.subr.mxu0 0.0
      %1522 = vmatpush1.msra.mxu0 0.0
      %1523 = vmatprep.subr.mxu0 0.0
      %1524 = vmatpush1.msra.mxu0 0.0
      %1525 = vmatprep.subr.mxu0 0.0
      %1526 = vmatpush1.msra.mxu0 0.0
      %1527 = vmatprep.subr.mxu0 0.0
      %1528 = vmatpush1.msra.mxu0 0.0
      %1529 = vmatprep.subr.mxu0 0.0
      %1530 = vmatpush1.msra.mxu0 0.0
      %1531 = vmatprep.subr.mxu0 0.0
      %1532 = vmatpush1.msra.mxu0 0.0
      %1533 = vmatprep.mubr.f32.mxu0 0.0
      %1534 = vmatmul.mubr.f32.gmra.mrb[0].mxu0 %v1396
      %v1535 = vpop.f32.mrb[0].mxu0
      %v1536 = vadd.f32 0.0, %v1535
      %v1537 = vpop.f32.mrb[0].mxu0
      %1538 = vdwg.mxu0
      %v1539 = vadd.f32 %v1375, %v1465
      %v1540 = vadd.f32 %v1376, %v1467
      %v1541 = vadd.f32 %v1377, %v1536
      %s1542 = scalar_lea.vmem %s2, 64
      %v1543 = vld [vmem:[%s1542] sm:$0xff]
      %1544 = vrot.lane.b32.xlu0 %v1206, 90
      %v1545 = vpop.permute.xlu0 %1544
      %1546 = vrot.lane.b32.xlu0 %v1207, 90
      %v1547 = vpop.permute.xlu0 %1546
      %1548 = vrot.lane.b32.xlu0 %v1208, 90
      %v1549 = vpop.permute.xlu0 %1548
      %1550 = vrot.lane.b32.xlu0 %v1209, 90
      %v1551 = vpop.permute.xlu0 %1550
      %vm1552 = vcmask 736256
      %v1553 = vsel %vm1552, %v1545, %v1547
      %v1554 = vsel %vm1552, %v1547, %v1549
      %v1555 = vsel %vm1552, %v1549, %v1551
      %v1560 = vsel %vm273, %v1543, 0
      %1562 = vmatprep.subr.mxu0 %v1554
      %1563 = vmatpush1.msra.mxu0 %v1553
      %1564 = vmatprep.subr.mxu0 0.0
      %1565 = vmatpush1.msra.mxu0 0.0
      %1566 = vmatprep.subr.mxu0 0.0
      %1567 = vmatpush1.msra.mxu0 0.0
      %1568 = vmatprep.subr.mxu0 0.0
      %1569 = vmatpush1.msra.mxu0 0.0
      %1570 = vmatprep.subr.mxu0 0.0
      %1571 = vmatpush1.msra.mxu0 0.0
      %1572 = vmatprep.subr.mxu0 0.0
      %1573 = vmatpush1.msra.mxu0 0.0
      %1574 = vmatprep.subr.mxu0 0.0
      %1575 = vmatpush1.msra.mxu0 0.0
      %1576 = vmatprep.subr.mxu0 0.0
      %1577 = vmatpush1.msra.mxu0 0.0
      %1578 = vmatprep.subr.mxu0 0.0
      %1579 = vmatpush1.msra.mxu0 0.0
      %1580 = vmatprep.subr.mxu0 0.0
      %1581 = vmatpush1.msra.mxu0 0.0
      %1582 = vmatprep.subr.mxu0 0.0
      %1583 = vmatpush1.msra.mxu0 0.0
      %1584 = vmatprep.subr.mxu0 0.0
      %1585 = vmatpush1.msra.mxu0 0.0
      %1586 = vmatprep.subr.mxu0 0.0
      %1587 = vmatpush1.msra.mxu0 0.0
      %1588 = vmatprep.subr.mxu0 0.0
      %1589 = vmatpush1.msra.mxu0 0.0
      %1590 = vmatprep.subr.mxu0 0.0
      %1591 = vmatpush1.msra.mxu0 0.0
      %1592 = vmatprep.subr.mxu0 0.0
      %1593 = vmatpush1.msra.mxu0 0.0
      %1594 = vmatprep.subr.mxu0 0.0
      %1595 = vmatpush1.msra.mxu0 0.0
      %1596 = vmatprep.subr.mxu0 0.0
      %1597 = vmatpush1.msra.mxu0 0.0
      %1598 = vmatprep.subr.mxu0 0.0
      %1599 = vmatpush1.msra.mxu0 0.0
      %1600 = vmatprep.subr.mxu0 0.0
      %1601 = vmatpush1.msra.mxu0 0.0
      %1602 = vmatprep.subr.mxu0 0.0
      %1603 = vmatpush1.msra.mxu0 0.0
      %1604 = vmatprep.subr.mxu0 0.0
      %1605 = vmatpush1.msra.mxu0 0.0
      %1606 = vmatprep.subr.mxu0 0.0
      %1607 = vmatpush1.msra.mxu0 0.0
      %1608 = vmatprep.subr.mxu0 0.0
      %1609 = vmatpush1.msra.mxu0 0.0
      %1610 = vmatprep.subr.mxu0 0.0
      %1611 = vmatpush1.msra.mxu0 0.0
      %1612 = vmatprep.subr.mxu0 0.0
      %1613 = vmatpush1.msra.mxu0 0.0
      %1614 = vmatprep.subr.mxu0 0.0
      %1615 = vmatpush1.msra.mxu0 0.0
      %1616 = vmatprep.subr.mxu0 0.0
      %1617 = vmatpush1.msra.mxu0 0.0
      %1618 = vmatprep.subr.mxu0 0.0
      %1619 = vmatpush1.msra.mxu0 0.0
      %1620 = vmatprep.subr.mxu0 0.0
      %1621 = vmatpush1.msra.mxu0 0.0
      %1622 = vmatprep.subr.mxu0 0.0
      %1623 = vmatpush1.msra.mxu0 0.0
      %1624 = vmatprep.subr.mxu0 0.0
      %1625 = vmatpush1.msra.mxu0 0.0
      %1626 = vmatprep.mubr.f32.mxu0 0.0
      %1627 = vmatmul.mubr.f32.gmra.mrb[0].mxu0 %v1560
      %v1628 = vpop.f32.mrb[0].mxu0
      %v1629 = vadd.f32 0.0, %v1628
      %v1630 = vpop.f32.mrb[0].mxu0
      %v1631 = vadd.f32 0.0, %v1630
      %1632 = vdwg.mxu0
      %1633 = vmatprep.subr.mxu0 0.0
      %1634 = vmatpush1.msra.mxu0 %v1555
      %1635 = vmatprep.subr.mxu0 0.0
      %1636 = vmatpush1.msra.mxu0 0.0
      %1637 = vmatprep.subr.mxu0 0.0
      %1638 = vmatpush1.msra.mxu0 0.0
      %1639 = vmatprep.subr.mxu0 0.0
      %1640 = vmatpush1.msra.mxu0 0.0
      %1641 = vmatprep.subr.mxu0 0.0
      %1642 = vmatpush1.msra.mxu0 0.0
      %1643 = vmatprep.subr.mxu0 0.0
      %1644 = vmatpush1.msra.mxu0 0.0
      %1645 = vmatprep.subr.mxu0 0.0
      %1646 = vmatpush1.msra.mxu0 0.0
      %1647 = vmatprep.subr.mxu0 0.0
      %1648 = vmatpush1.msra.mxu0 0.0
      %1649 = vmatprep.subr.mxu0 0.0
      %1650 = vmatpush1.msra.mxu0 0.0
      %1651 = vmatprep.subr.mxu0 0.0
      %1652 = vmatpush1.msra.mxu0 0.0
      %1653 = vmatprep.subr.mxu0 0.0
      %1654 = vmatpush1.msra.mxu0 0.0
      %1655 = vmatprep.subr.mxu0 0.0
      %1656 = vmatpush1.msra.mxu0 0.0
      %1657 = vmatprep.subr.mxu0 0.0
      %1658 = vmatpush1.msra.mxu0 0.0
      %1659 = vmatprep.subr.mxu0 0.0
      %1660 = vmatpush1.msra.mxu0 0.0
      %1661 = vmatprep.subr.mxu0 0.0
      %1662 = vmatpush1.msra.mxu0 0.0
      %1663 = vmatprep.subr.mxu0 0.0
      %1664 = vmatpush1.msra.mxu0 0.0
      %1665 = vmatprep.subr.mxu0 0.0
      %1666 = vmatpush1.msra.mxu0 0.0
      %1667 = vmatprep.subr.mxu0 0.0
      %1668 = vmatpush1.msra.mxu0 0.0
      %1669 = vmatprep.subr.mxu0 0.0
      %1670 = vmatpush1.msra.mxu0 0.0
      %1671 = vmatprep.subr.mxu0 0.0
      %1672 = vmatpush1.msra.mxu0 0.0
      %1673 = vmatprep.subr.mxu0 0.0
      %1674 = vmatpush1.msra.mxu0 0.0
      %1675 = vmatprep.subr.mxu0 0.0
      %1676 = vmatpush1.msra.mxu0 0.0
      %1677 = vmatprep.subr.mxu0 0.0
      %1678 = vmatpush1.msra.mxu0 0.0
      %1679 = vmatprep.subr.mxu0 0.0
      %1680 = vmatpush1.msra.mxu0 0.0
      %1681 = vmatprep.subr.mxu0 0.0
      %1682 = vmatpush1.msra.mxu0 0.0
      %1683 = vmatprep.subr.mxu0 0.0
      %1684 = vmatpush1.msra.mxu0 0.0
      %1685 = vmatprep.subr.mxu0 0.0
      %1686 = vmatpush1.msra.mxu0 0.0
      %1687 = vmatprep.subr.mxu0 0.0
      %1688 = vmatpush1.msra.mxu0 0.0
      %1689 = vmatprep.subr.mxu0 0.0
      %1690 = vmatpush1.msra.mxu0 0.0
      %1691 = vmatprep.subr.mxu0 0.0
      %1692 = vmatpush1.msra.mxu0 0.0
      %1693 = vmatprep.subr.mxu0 0.0
      %1694 = vmatpush1.msra.mxu0 0.0
      %1695 = vmatprep.subr.mxu0 0.0
      %1696 = vmatpush1.msra.mxu0 0.0
      %1697 = vmatprep.mubr.f32.mxu0 0.0
      %1698 = vmatmul.mubr.f32.gmra.mrb[0].mxu0 %v1560
      %v1699 = vpop.f32.mrb[0].mxu0
      %v1700 = vadd.f32 0.0, %v1699
      %v1701 = vpop.f32.mrb[0].mxu0
      %1702 = vdwg.mxu0
      %v1703 = vadd.f32 %v1539, %v1629
      %v1704 = vadd.f32 %v1540, %v1631
      %v1705 = vadd.f32 %v1541, %v1700
      %v1706 = vld [vmem:[%s3] sm:$0xff]
      %1708 = vset.pattern.permute.xlu0 0
      %1709 = vperm.xlu0 %1708, %v1706
      %v1710 = vpop.permute.xlu0 %1709
      %v1712 = vadd.f32 %v1703, %v1710
      %v1713 = vadd.f32 %v1704, %v1710
      %v1714 = vadd.f32 %v1705, %v1710
      %vm1715 = vcmp.ge.f32.partialorder %v1712, 0.0
      %vm1716 = vcmp.ge.f32.partialorder %v1713, 0.0
      %vm1717 = vcmp.ge.f32.partialorder %v1714, 0.0
      %v1718 = vmul.f32 %v1712, 0.1
      %v1719 = vmul.f32 %v1713, 0.1
      %v1720 = vmul.f32 %v1714, 0.1
      %v1721 = vsel %vm1715, %v1712, %v1718
      %v1722 = vsel %vm1716, %v1713, %v1719
      %v1723 = vsel %vm1717, %v1714, %v1720
      %v1724 = vld [vmem:[%s1] sm:$0x7]
      %v1726 = vlaneseq
      %v1727 = vshrl.u32 %v1726, 7
      %v1728 = vsub.s32 0, %v1727
      %v1729 = vrot.slane %v1724, %v1728
      %v1730 = vlaneseq
      %v1731 = vshrl.u32 %v1730, 7
      %v1732 = vsub.s32 1, %v1731
      %v1733 = vrot.slane %v1724, %v1732
      %v1734 = vlaneseq
      %v1735 = vshrl.u32 %v1734, 7
      %v1736 = vsub.s32 2, %v1735
      %v1737 = vrot.slane %v1724, %v1736
      %v1741 = vmul.f32 %v1721, %v1729
      %v1742 = vmul.f32 %v1722, %v1733
      %v1743 = vmul.f32 %v1723, %v1737
      %1744 = vst [vmem:[#allocation2] sm:$0xff] %v1741
      %1745 = vst [vmem:[#allocation2 + $0x8] sm:$0xff] %v1742
      %vm1746 = vcmask 867328
      %1747 = vst.msk [vmem:[#allocation2 + $0x10] sm:$0xff] %vm1746, %v1743
      %v1748 = vld [vmem:[%s4] sm:$0xff]
      %v1749 = vld [vmem:[#allocation2] sm:$0xff]
      %v1750 = vld [vmem:[#allocation2 + $0x8] sm:$0xff]
      %v1751 = vld [vmem:[#allocation2 + $0x10] sm:$0xff]
      %s1752 = scalar_lea.vmem %s4, 8
      %v1753 = vld [vmem:[%s1752] sm:$0xff]
      %1757 = vrot.lane.b32.xlu0 %v1749, 127
      %v1758 = vpop.permute.xlu0 %1757
      %1759 = vrot.lane.b32.xlu0 %v1750, 127
      %v1760 = vpop.permute.xlu0 %1759
      %1761 = vrot.lane.b32.xlu0 %v1751, 127
      %v1762 = vpop.permute.xlu0 %1761
      %v1763 = vsel %vm267, %v1758, %v1760
      %v1764 = vsel %vm267, %v1760, %v1762
      %v1769 = vsel %vm273, %v1753, 0
      %1771 = vmatprep.subr.mxu0 %v1764
      %1772 = vmatpush1.msra.mxu0 %v1763
      %1773 = vmatprep.subr.mxu0 0.0
      %1774 = vmatpush1.msra.mxu0 0.0
      %1775 = vmatprep.subr.mxu0 0.0
      %1776 = vmatpush1.msra.mxu0 0.0
      %1777 = vmatprep.subr.mxu0 0.0
      %1778 = vmatpush1.msra.mxu0 0.0
      %1779 = vmatprep.subr.mxu0 0.0
      %1780 = vmatpush1.msra.mxu0 0.0
      %1781 = vmatprep.subr.mxu0 0.0
      %1782 = vmatpush1.msra.mxu0 0.0
      %1783 = vmatprep.subr.mxu0 0.0
      %1784 = vmatpush1.msra.mxu0 0.0
      %1785 = vmatprep.subr.mxu0 0.0
      %1786 = vmatpush1.msra.mxu0 0.0
      %1787 = vmatprep.subr.mxu0 0.0
      %1788 = vmatpush1.msra.mxu0 0.0
      %1789 = vmatprep.subr.mxu0 0.0
      %1790 = vmatpush1.msra.mxu0 0.0
      %1791 = vmatprep.subr.mxu0 0.0
      %1792 = vmatpush1.msra.mxu0 0.0
      %1793 = vmatprep.subr.mxu0 0.0
      %1794 = vmatpush1.msra.mxu0 0.0
      %1795 = vmatprep.subr.mxu0 0.0
      %1796 = vmatpush1.msra.mxu0 0.0
      %1797 = vmatprep.subr.mxu0 0.0
      %1798 = vmatpush1.msra.mxu0 0.0
      %1799 = vmatprep.subr.mxu0 0.0
      %1800 = vmatpush1.msra.mxu0 0.0
      %1801 = vmatprep.subr.mxu0 0.0
      %1802 = vmatpush1.msra.mxu0 0.0
      %1803 = vmatprep.subr.mxu0 0.0
      %1804 = vmatpush1.msra.mxu0 0.0
      %1805 = vmatprep.subr.mxu0 0.0
      %1806 = vmatpush1.msra.mxu0 0.0
      %1807 = vmatprep.subr.mxu0 0.0
      %1808 = vmatpush1.msra.mxu0 0.0
      %1809 = vmatprep.subr.mxu0 0.0
      %1810 = vmatpush1.msra.mxu0 0.0
      %1811 = vmatprep.subr.mxu0 0.0
      %1812 = vmatpush1.msra.mxu0 0.0
      %1813 = vmatprep.subr.mxu0 0.0
      %1814 = vmatpush1.msra.mxu0 0.0
      %1815 = vmatprep.subr.mxu0 0.0
      %1816 = vmatpush1.msra.mxu0 0.0
      %1817 = vmatprep.subr.mxu0 0.0
      %1818 = vmatpush1.msra.mxu0 0.0
      %1819 = vmatprep.subr.mxu0 0.0
      %1820 = vmatpush1.msra.mxu0 0.0
      %1821 = vmatprep.subr.mxu0 0.0
      %1822 = vmatpush1.msra.mxu0 0.0
      %1823 = vmatprep.subr.mxu0 0.0
      %1824 = vmatpush1.msra.mxu0 0.0
      %1825 = vmatprep.subr.mxu0 0.0
      %1826 = vmatpush1.msra.mxu0 0.0
      %1827 = vmatprep.subr.mxu0 0.0
      %1828 = vmatpush1.msra.mxu0 0.0
      %1829 = vmatprep.subr.mxu0 0.0
      %1830 = vmatpush1.msra.mxu0 0.0
      %1831 = vmatprep.subr.mxu0 0.0
      %1832 = vmatpush1.msra.mxu0 0.0
      %1833 = vmatprep.subr.mxu0 0.0
      %1834 = vmatpush1.msra.mxu0 0.0
      %1835 = vmatprep.mubr.f32.mxu0 0.0
      %1836 = vmatmul.mubr.f32.gmra.mrb[0].mxu0 %v1769
      %v1837 = vpop.f32.mrb[0].mxu0
      %v1838 = vadd.f32 0.0, %v1837
      %v1839 = vpop.f32.mrb[0].mxu0
      %v1840 = vadd.f32 0.0, %v1839
      %1841 = vdwg.mxu0
      %1842 = vmatprep.subr.mxu0 0.0
      %1843 = vmatpush1.msra.mxu0 %v1762
      %1844 = vmatprep.subr.mxu0 0.0
      %1845 = vmatpush1.msra.mxu0 0.0
      %1846 = vmatprep.subr.mxu0 0.0
      %1847 = vmatpush1.msra.mxu0 0.0
      %1848 = vmatprep.subr.mxu0 0.0
      %1849 = vmatpush1.msra.mxu0 0.0
      %1850 = vmatprep.subr.mxu0 0.0
      %1851 = vmatpush1.msra.mxu0 0.0
      %1852 = vmatprep.subr.mxu0 0.0
      %1853 = vmatpush1.msra.mxu0 0.0
      %1854 = vmatprep.subr.mxu0 0.0
      %1855 = vmatpush1.msra.mxu0 0.0
      %1856 = vmatprep.subr.mxu0 0.0
      %1857 = vmatpush1.msra.mxu0 0.0
      %1858 = vmatprep.subr.mxu0 0.0
      %1859 = vmatpush1.msra.mxu0 0.0
      %1860 = vmatprep.subr.mxu0 0.0
      %1861 = vmatpush1.msra.mxu0 0.0
      %1862 = vmatprep.subr.mxu0 0.0
      %1863 = vmatpush1.msra.mxu0 0.0
      %1864 = vmatprep.subr.mxu0 0.0
      %1865 = vmatpush1.msra.mxu0 0.0
      %1866 = vmatprep.subr.mxu0 0.0
      %1867 = vmatpush1.msra.mxu0 0.0
      %1868 = vmatprep.subr.mxu0 0.0
      %1869 = vmatpush1.msra.mxu0 0.0
      %1870 = vmatprep.subr.mxu0 0.0
      %1871 = vmatpush1.msra.mxu0 0.0
      %1872 = vmatprep.subr.mxu0 0.0
      %1873 = vmatpush1.msra.mxu0 0.0
      %1874 = vmatprep.subr.mxu0 0.0
      %1875 = vmatpush1.msra.mxu0 0.0
      %1876 = vmatprep.subr.mxu0 0.0
      %1877 = vmatpush1.msra.mxu0 0.0
      %1878 = vmatprep.subr.mxu0 0.0
      %1879 = vmatpush1.msra.mxu0 0.0
      %1880 = vmatprep.subr.mxu0 0.0
      %1881 = vmatpush1.msra.mxu0 0.0
      %1882 = vmatprep.subr.mxu0 0.0
      %1883 = vmatpush1.msra.mxu0 0.0
      %1884 = vmatprep.subr.mxu0 0.0
      %1885 = vmatpush1.msra.mxu0 0.0
      %1886 = vmatprep.subr.mxu0 0.0
      %1887 = vmatpush1.msra.mxu0 0.0
      %1888 = vmatprep.subr.mxu0 0.0
      %1889 = vmatpush1.msra.mxu0 0.0
      %1890 = vmatprep.subr.mxu0 0.0
      %1891 = vmatpush1.msra.mxu0 0.0
      %1892 = vmatprep.subr.mxu0 0.0
      %1893 = vmatpush1.msra.mxu0 0.0
      %1894 = vmatprep.subr.mxu0 0.0
      %1895 = vmatpush1.msra.mxu0 0.0
      %1896 = vmatprep.subr.mxu0 0.0
      %1897 = vmatpush1.msra.mxu0 0.0
      %1898 = vmatprep.subr.mxu0 0.0
      %1899 = vmatpush1.msra.mxu0 0.0
      %1900 = vmatprep.subr.mxu0 0.0
      %1901 = vmatpush1.msra.mxu0 0.0
      %1902 = vmatprep.subr.mxu0 0.0
      %1903 = vmatpush1.msra.mxu0 0.0
      %1904 = vmatprep.subr.mxu0 0.0
      %1905 = vmatpush1.msra.mxu0 0.0
      %1906 = vmatprep.mubr.f32.mxu0 0.0
      %1907 = vmatmul.mubr.f32.gmra.mrb[0].mxu0 %v1769
      %v1908 = vpop.f32.mrb[0].mxu0
      %v1909 = vadd.f32 0.0, %v1908
      %v1910 = vpop.f32.mrb[0].mxu0
      %1911 = vdwg.mxu0
      %v1913 = vsel %vm273, %v1748, 0
      %1915 = vmatprep.subr.mxu0 %v1750
      %1916 = vmatpush1.msra.mxu0 %v1749
      %1917 = vmatprep.subr.mxu0 0.0
      %1918 = vmatpush1.msra.mxu0 0.0
      %1919 = vmatprep.subr.mxu0 0.0
      %1920 = vmatpush1.msra.mxu0 0.0
      %1921 = vmatprep.subr.mxu0 0.0
      %1922 = vmatpush1.msra.mxu0 0.0
      %1923 = vmatprep.subr.mxu0 0.0
      %1924 = vmatpush1.msra.mxu0 0.0
      %1925 = vmatprep.subr.mxu0 0.0
      %1926 = vmatpush1.msra.mxu0 0.0
      %1927 = vmatprep.subr.mxu0 0.0
      %1928 = vmatpush1.msra.mxu0 0.0
      %1929 = vmatprep.subr.mxu0 0.0
      %1930 = vmatpush1.msra.mxu0 0.0
      %1931 = vmatprep.subr.mxu0 0.0
      %1932 = vmatpush1.msra.mxu0 0.0
      %1933 = vmatprep.subr.mxu0 0.0
      %1934 = vmatpush1.msra.mxu0 0.0
      %1935 = vmatprep.subr.mxu0 0.0
      %1936 = vmatpush1.msra.mxu0 0.0
      %1937 = vmatprep.subr.mxu0 0.0
      %1938 = vmatpush1.msra.mxu0 0.0
      %1939 = vmatprep.subr.mxu0 0.0
      %1940 = vmatpush1.msra.mxu0 0.0
      %1941 = vmatprep.subr.mxu0 0.0
      %1942 = vmatpush1.msra.mxu0 0.0
      %1943 = vmatprep.subr.mxu0 0.0
      %1944 = vmatpush1.msra.mxu0 0.0
      %1945 = vmatprep.subr.mxu0 0.0
      %1946 = vmatpush1.msra.mxu0 0.0
      %1947 = vmatprep.subr.mxu0 0.0
      %1948 = vmatpush1.msra.mxu0 0.0
      %1949 = vmatprep.subr.mxu0 0.0
      %1950 = vmatpush1.msra.mxu0 0.0
      %1951 = vmatprep.subr.mxu0 0.0
      %1952 = vmatpush1.msra.mxu0 0.0
      %1953 = vmatprep.subr.mxu0 0.0
      %1954 = vmatpush1.msra.mxu0 0.0
      %1955 = vmatprep.subr.mxu0 0.0
      %1956 = vmatpush1.msra.mxu0 0.0
      %1957 = vmatprep.subr.mxu0 0.0
      %1958 = vmatpush1.msra.mxu0 0.0
      %1959 = vmatprep.subr.mxu0 0.0
      %1960 = vmatpush1.msra.mxu0 0.0
      %1961 = vmatprep.subr.mxu0 0.0
      %1962 = vmatpush1.msra.mxu0 0.0
      %1963 = vmatprep.subr.mxu0 0.0
      %1964 = vmatpush1.msra.mxu0 0.0
      %1965 = vmatprep.subr.mxu0 0.0
      %1966 = vmatpush1.msra.mxu0 0.0
      %1967 = vmatprep.subr.mxu0 0.0
      %1968 = vmatpush1.msra.mxu0 0.0
      %1969 = vmatprep.subr.mxu0 0.0
      %1970 = vmatpush1.msra.mxu0 0.0
      %1971 = vmatprep.subr.mxu0 0.0
      %1972 = vmatpush1.msra.mxu0 0.0
      %1973 = vmatprep.subr.mxu0 0.0
      %1974 = vmatpush1.msra.mxu0 0.0
      %1975 = vmatprep.subr.mxu0 0.0
      %1976 = vmatpush1.msra.mxu0 0.0
      %1977 = vmatprep.subr.mxu0 0.0
      %1978 = vmatpush1.msra.mxu0 0.0
      %1979 = vmatprep.mubr.f32.mxu0 0.0
      %1980 = vmatmul.mubr.f32.gmra.mrb[0].mxu0 %v1913
      %v1981 = vpop.f32.mrb[0].mxu0
      %v1982 = vadd.f32 %v1838, %v1981
      %v1983 = vpop.f32.mrb[0].mxu0
      %v1984 = vadd.f32 %v1840, %v1983
      %1985 = vdwg.mxu0
      %1986 = vmatprep.subr.mxu0 0.0
      %1987 = vmatpush1.msra.mxu0 %v1751
      %1988 = vmatprep.subr.mxu0 0.0
      %1989 = vmatpush1.msra.mxu0 0.0
      %1990 = vmatprep.subr.mxu0 0.0
      %1991 = vmatpush1.msra.mxu0 0.0
      %1992 = vmatprep.subr.mxu0 0.0
      %1993 = vmatpush1.msra.mxu0 0.0
      %1994 = vmatprep.subr.mxu0 0.0
      %1995 = vmatpush1.msra.mxu0 0.0
      %1996 = vmatprep.subr.mxu0 0.0
      %1997 = vmatpush1.msra.mxu0 0.0
      %1998 = vmatprep.subr.mxu0 0.0
      %1999 = vmatpush1.msra.mxu0 0.0
      %2000 = vmatprep.subr.mxu0 0.0
      %2001 = vmatpush1.msra.mxu0 0.0
      %2002 = vmatprep.subr.mxu0 0.0
      %2003 = vmatpush1.msra.mxu0 0.0
      %2004 = vmatprep.subr.mxu0 0.0
      %2005 = vmatpush1.msra.mxu0 0.0
      %2006 = vmatprep.subr.mxu0 0.0
      %2007 = vmatpush1.msra.mxu0 0.0
      %2008 = vmatprep.subr.mxu0 0.0
      %2009 = vmatpush1.msra.mxu0 0.0
      %2010 = vmatprep.subr.mxu0 0.0
      %2011 = vmatpush1.msra.mxu0 0.0
      %2012 = vmatprep.subr.mxu0 0.0
      %2013 = vmatpush1.msra.mxu0 0.0
      %2014 = vmatprep.subr.mxu0 0.0
      %2015 = vmatpush1.msra.mxu0 0.0
      %2016 = vmatprep.subr.mxu0 0.0
      %2017 = vmatpush1.msra.mxu0 0.0
      %2018 = vmatprep.subr.mxu0 0.0
      %2019 = vmatpush1.msra.mxu0 0.0
      %2020 = vmatprep.subr.mxu0 0.0
      %2021 = vmatpush1.msra.mxu0 0.0
      %2022 = vmatprep.subr.mxu0 0.0
      %2023 = vmatpush1.msra.mxu0 0.0
      %2024 = vmatprep.subr.mxu0 0.0
      %2025 = vmatpush1.msra.mxu0 0.0
      %2026 = vmatprep.subr.mxu0 0.0
      %2027 = vmatpush1.msra.mxu0 0.0
      %2028 = vmatprep.subr.mxu0 0.0
      %2029 = vmatpush1.msra.mxu0 0.0
      %2030 = vmatprep.subr.mxu0 0.0
      %2031 = vmatpush1.msra.mxu0 0.0
      %2032 = vmatprep.subr.mxu0 0.0
      %2033 = vmatpush1.msra.mxu0 0.0
      %2034 = vmatprep.subr.mxu0 0.0
      %2035 = vmatpush1.msra.mxu0 0.0
      %2036 = vmatprep.subr.mxu0 0.0
      %2037 = vmatpush1.msra.mxu0 0.0
      %2038 = vmatprep.subr.mxu0 0.0
      %2039 = vmatpush1.msra.mxu0 0.0
      %2040 = vmatprep.subr.mxu0 0.0
      %2041 = vmatpush1.msra.mxu0 0.0
      %2042 = vmatprep.subr.mxu0 0.0
      %2043 = vmatpush1.msra.mxu0 0.0
      %2044 = vmatprep.subr.mxu0 0.0
      %2045 = vmatpush1.msra.mxu0 0.0
      %2046 = vmatprep.subr.mxu0 0.0
      %2047 = vmatpush1.msra.mxu0 0.0
      %2048 = vmatprep.subr.mxu0 0.0
      %2049 = vmatpush1.msra.mxu0 0.0
      %2050 = vmatprep.mubr.f32.mxu0 0.0
      %2051 = vmatmul.mubr.f32.gmra.mrb[0].mxu0 %v1913
      %v2052 = vpop.f32.mrb[0].mxu0
      %v2053 = vadd.f32 %v1909, %v2052
      %v2054 = vpop.f32.mrb[0].mxu0
      %2055 = vdwg.mxu0
      %s2056 = scalar_lea.vmem %s4, 16
      %v2057 = vld [vmem:[%s2056] sm:$0xff]
      %2058 = vrot.lane.b32.xlu0 %v1749, 126
      %v2059 = vpop.permute.xlu0 %2058
      %2060 = vrot.lane.b32.xlu0 %v1750, 126
      %v2061 = vpop.permute.xlu0 %2060
      %2062 = vrot.lane.b32.xlu0 %v1751, 126
      %v2063 = vpop.permute.xlu0 %2062
      %v2064 = vsel %vm570, %v2059, %v2061
      %v2065 = vsel %vm570, %v2061, %v2063
      %v2070 = vsel %vm273, %v2057, 0
      %2072 = vmatprep.subr.mxu0 %v2065
      %2073 = vmatpush1.msra.mxu0 %v2064
      %2074 = vmatprep.subr.mxu0 0.0
      %2075 = vmatpush1.msra.mxu0 0.0
      %2076 = vmatprep.subr.mxu0 0.0
      %2077 = vmatpush1.msra.mxu0 0.0
      %2078 = vmatprep.subr.mxu0 0.0
      %2079 = vmatpush1.msra.mxu0 0.0
      %2080 = vmatprep.subr.mxu0 0.0
      %2081 = vmatpush1.msra.mxu0 0.0
      %2082 = vmatprep.subr.mxu0 0.0
      %2083 = vmatpush1.msra.mxu0 0.0
      %2084 = vmatprep.subr.mxu0 0.0
      %2085 = vmatpush1.msra.mxu0 0.0
      %2086 = vmatprep.subr.mxu0 0.0
      %2087 = vmatpush1.msra.mxu0 0.0
      %2088 = vmatprep.subr.mxu0 0.0
      %2089 = vmatpush1.msra.mxu0 0.0
      %2090 = vmatprep.subr.mxu0 0.0
      %2091 = vmatpush1.msra.mxu0 0.0
      %2092 = vmatprep.subr.mxu0 0.0
      %2093 = vmatpush1.msra.mxu0 0.0
      %2094 = vmatprep.subr.mxu0 0.0
      %2095 = vmatpush1.msra.mxu0 0.0
      %2096 = vmatprep.subr.mxu0 0.0
      %2097 = vmatpush1.msra.mxu0 0.0
      %2098 = vmatprep.subr.mxu0 0.0
      %2099 = vmatpush1.msra.mxu0 0.0
      %2100 = vmatprep.subr.mxu0 0.0
      %2101 = vmatpush1.msra.mxu0 0.0
      %2102 = vmatprep.subr.mxu0 0.0
      %2103 = vmatpush1.msra.mxu0 0.0
      %2104 = vmatprep.subr.mxu0 0.0
      %2105 = vmatpush1.msra.mxu0 0.0
      %2106 = vmatprep.subr.mxu0 0.0
      %2107 = vmatpush1.msra.mxu0 0.0
      %2108 = vmatprep.subr.mxu0 0.0
      %2109 = vmatpush1.msra.mxu0 0.0
      %2110 = vmatprep.subr.mxu0 0.0
      %2111 = vmatpush1.msra.mxu0 0.0
      %2112 = vmatprep.subr.mxu0 0.0
      %2113 = vmatpush1.msra.mxu0 0.0
      %2114 = vmatprep.subr.mxu0 0.0
      %2115 = vmatpush1.msra.mxu0 0.0
      %2116 = vmatprep.subr.mxu0 0.0
      %2117 = vmatpush1.msra.mxu0 0.0
      %2118 = vmatprep.subr.mxu0 0.0
      %2119 = vmatpush1.msra.mxu0 0.0
      %2120 = vmatprep.subr.mxu0 0.0
      %2121 = vmatpush1.msra.mxu0 0.0
      %2122 = vmatprep.subr.mxu0 0.0
      %2123 = vmatpush1.msra.mxu0 0.0
      %2124 = vmatprep.subr.mxu0 0.0
      %2125 = vmatpush1.msra.mxu0 0.0
      %2126 = vmatprep.subr.mxu0 0.0
      %2127 = vmatpush1.msra.mxu0 0.0
      %2128 = vmatprep.subr.mxu0 0.0
      %2129 = vmatpush1.msra.mxu0 0.0
      %2130 = vmatprep.subr.mxu0 0.0
      %2131 = vmatpush1.msra.mxu0 0.0
      %2132 = vmatprep.subr.mxu0 0.0
      %2133 = vmatpush1.msra.mxu0 0.0
      %2134 = vmatprep.subr.mxu0 0.0
      %2135 = vmatpush1.msra.mxu0 0.0
      %2136 = vmatprep.mubr.f32.mxu0 0.0
      %2137 = vmatmul.mubr.f32.gmra.mrb[0].mxu0 %v2070
      %v2138 = vpop.f32.mrb[0].mxu0
      %v2139 = vadd.f32 0.0, %v2138
      %v2140 = vpop.f32.mrb[0].mxu0
      %v2141 = vadd.f32 0.0, %v2140
      %2142 = vdwg.mxu0
      %2143 = vmatprep.subr.mxu0 0.0
      %2144 = vmatpush1.msra.mxu0 %v2063
      %2145 = vmatprep.subr.mxu0 0.0
      %2146 = vmatpush1.msra.mxu0 0.0
      %2147 = vmatprep.subr.mxu0 0.0
      %2148 = vmatpush1.msra.mxu0 0.0
      %2149 = vmatprep.subr.mxu0 0.0
      %2150 = vmatpush1.msra.mxu0 0.0
      %2151 = vmatprep.subr.mxu0 0.0
      %2152 = vmatpush1.msra.mxu0 0.0
      %2153 = vmatprep.subr.mxu0 0.0
      %2154 = vmatpush1.msra.mxu0 0.0
      %2155 = vmatprep.subr.mxu0 0.0
      %2156 = vmatpush1.msra.mxu0 0.0
      %2157 = vmatprep.subr.mxu0 0.0
      %2158 = vmatpush1.msra.mxu0 0.0
      %2159 = vmatprep.subr.mxu0 0.0
      %2160 = vmatpush1.msra.mxu0 0.0
      %2161 = vmatprep.subr.mxu0 0.0
      %2162 = vmatpush1.msra.mxu0 0.0
      %2163 = vmatprep.subr.mxu0 0.0
      %2164 = vmatpush1.msra.mxu0 0.0
      %2165 = vmatprep.subr.mxu0 0.0
      %2166 = vmatpush1.msra.mxu0 0.0
      %2167 = vmatprep.subr.mxu0 0.0
      %2168 = vmatpush1.msra.mxu0 0.0
      %2169 = vmatprep.subr.mxu0 0.0
      %2170 = vmatpush1.msra.mxu0 0.0
      %2171 = vmatprep.subr.mxu0 0.0
      %2172 = vmatpush1.msra.mxu0 0.0
      %2173 = vmatprep.subr.mxu0 0.0
      %2174 = vmatpush1.msra.mxu0 0.0
      %2175 = vmatprep.subr.mxu0 0.0
      %2176 = vmatpush1.msra.mxu0 0.0
      %2177 = vmatprep.subr.mxu0 0.0
      %2178 = vmatpush1.msra.mxu0 0.0
      %2179 = vmatprep.subr.mxu0 0.0
      %2180 = vmatpush1.msra.mxu0 0.0
      %2181 = vmatprep.subr.mxu0 0.0
      %2182 = vmatpush1.msra.mxu0 0.0
      %2183 = vmatprep.subr.mxu0 0.0
      %2184 = vmatpush1.msra.mxu0 0.0
      %2185 = vmatprep.subr.mxu0 0.0
      %2186 = vmatpush1.msra.mxu0 0.0
      %2187 = vmatprep.subr.mxu0 0.0
      %2188 = vmatpush1.msra.mxu0 0.0
      %2189 = vmatprep.subr.mxu0 0.0
      %2190 = vmatpush1.msra.mxu0 0.0
      %2191 = vmatprep.subr.mxu0 0.0
      %2192 = vmatpush1.msra.mxu0 0.0
      %2193 = vmatprep.subr.mxu0 0.0
      %2194 = vmatpush1.msra.mxu0 0.0
      %2195 = vmatprep.subr.mxu0 0.0
      %2196 = vmatpush1.msra.mxu0 0.0
      %2197 = vmatprep.subr.mxu0 0.0
      %2198 = vmatpush1.msra.mxu0 0.0
      %2199 = vmatprep.subr.mxu0 0.0
      %2200 = vmatpush1.msra.mxu0 0.0
      %2201 = vmatprep.subr.mxu0 0.0
      %2202 = vmatpush1.msra.mxu0 0.0
      %2203 = vmatprep.subr.mxu0 0.0
      %2204 = vmatpush1.msra.mxu0 0.0
      %2205 = vmatprep.subr.mxu0 0.0
      %2206 = vmatpush1.msra.mxu0 0.0
      %2207 = vmatprep.mubr.f32.mxu0 0.0
      %2208 = vmatmul.mubr.f32.gmra.mrb[0].mxu0 %v2070
      %v2209 = vpop.f32.mrb[0].mxu0
      %v2210 = vadd.f32 0.0, %v2209
      %v2211 = vpop.f32.mrb[0].mxu0
      %2212 = vdwg.mxu0
      %v2213 = vadd.f32 %v1982, %v2139
      %v2214 = vadd.f32 %v1984, %v2141
      %v2215 = vadd.f32 %v2053, %v2210
      %s2216 = scalar_lea.vmem %s4, 24
      %v2217 = vld [vmem:[%s2216] sm:$0xff]
      %2218 = vrot.lane.b32.xlu0 %v1749, 110
      %v2219 = vpop.permute.xlu0 %2218
      %2220 = vrot.lane.b32.xlu0 %v1750, 110
      %v2221 = vpop.permute.xlu0 %2220
      %2222 = vrot.lane.b32.xlu0 %v1751, 110
      %v2223 = vpop.permute.xlu0 %2222
      %v2224 = vsel %vm731, %v2219, %v2221
      %v2225 = vsel %vm731, %v2221, %v2223
      %v2230 = vsel %vm273, %v2217, 0
      %2232 = vmatprep.subr.mxu0 %v2225
      %2233 = vmatpush1.msra.mxu0 %v2224
      %2234 = vmatprep.subr.mxu0 0.0
      %2235 = vmatpush1.msra.mxu0 0.0
      %2236 = vmatprep.subr.mxu0 0.0
      %2237 = vmatpush1.msra.mxu0 0.0
      %2238 = vmatprep.subr.mxu0 0.0
      %2239 = vmatpush1.msra.mxu0 0.0
      %2240 = vmatprep.subr.mxu0 0.0
      %2241 = vmatpush1.msra.mxu0 0.0
      %2242 = vmatprep.subr.mxu0 0.0
      %2243 = vmatpush1.msra.mxu0 0.0
      %2244 = vmatprep.subr.mxu0 0.0
      %2245 = vmatpush1.msra.mxu0 0.0
      %2246 = vmatprep.subr.mxu0 0.0
      %2247 = vmatpush1.msra.mxu0 0.0
      %2248 = vmatprep.subr.mxu0 0.0
      %2249 = vmatpush1.msra.mxu0 0.0
      %2250 = vmatprep.subr.mxu0 0.0
      %2251 = vmatpush1.msra.mxu0 0.0
      %2252 = vmatprep.subr.mxu0 0.0
      %2253 = vmatpush1.msra.mxu0 0.0
      %2254 = vmatprep.subr.mxu0 0.0
      %2255 = vmatpush1.msra.mxu0 0.0
      %2256 = vmatprep.subr.mxu0 0.0
      %2257 = vmatpush1.msra.mxu0 0.0
      %2258 = vmatprep.subr.mxu0 0.0
      %2259 = vmatpush1.msra.mxu0 0.0
      %2260 = vmatprep.subr.mxu0 0.0
      %2261 = vmatpush1.msra.mxu0 0.0
      %2262 = vmatprep.subr.mxu0 0.0
      %2263 = vmatpush1.msra.mxu0 0.0
      %2264 = vmatprep.subr.mxu0 0.0
      %2265 = vmatpush1.msra.mxu0 0.0
      %2266 = vmatprep.subr.mxu0 0.0
      %2267 = vmatpush1.msra.mxu0 0.0
      %2268 = vmatprep.subr.mxu0 0.0
      %2269 = vmatpush1.msra.mxu0 0.0
      %2270 = vmatprep.subr.mxu0 0.0
      %2271 = vmatpush1.msra.mxu0 0.0
      %2272 = vmatprep.subr.mxu0 0.0
      %2273 = vmatpush1.msra.mxu0 0.0
      %2274 = vmatprep.subr.mxu0 0.0
      %2275 = vmatpush1.msra.mxu0 0.0
      %2276 = vmatprep.subr.mxu0 0.0
      %2277 = vmatpush1.msra.mxu0 0.0
      %2278 = vmatprep.subr.mxu0 0.0
      %2279 = vmatpush1.msra.mxu0 0.0
      %2280 = vmatprep.subr.mxu0 0.0
      %2281 = vmatpush1.msra.mxu0 0.0
      %2282 = vmatprep.subr.mxu0 0.0
      %2283 = vmatpush1.msra.mxu0 0.0
      %2284 = vmatprep.subr.mxu0 0.0
      %2285 = vmatpush1.msra.mxu0 0.0
      %2286 = vmatprep.subr.mxu0 0.0
      %2287 = vmatpush1.msra.mxu0 0.0
      %2288 = vmatprep.subr.mxu0 0.0
      %2289 = vmatpush1.msra.mxu0 0.0
      %2290 = vmatprep.subr.mxu0 0.0
      %2291 = vmatpush1.msra.mxu0 0.0
      %2292 = vmatprep.subr.mxu0 0.0
      %2293 = vmatpush1.msra.mxu0 0.0
      %2294 = vmatprep.subr.mxu0 0.0
      %2295 = vmatpush1.msra.mxu0 0.0
      %2296 = vmatprep.mubr.f32.mxu0 0.0
      %2297 = vmatmul.mubr.f32.gmra.mrb[0].mxu0 %v2230
      %v2298 = vpop.f32.mrb[0].mxu0
      %v2299 = vadd.f32 0.0, %v2298
      %v2300 = vpop.f32.mrb[0].mxu0
      %v2301 = vadd.f32 0.0, %v2300
      %2302 = vdwg.mxu0
      %2303 = vmatprep.subr.mxu0 0.0
      %2304 = vmatpush1.msra.mxu0 %v2223
      %2305 = vmatprep.subr.mxu0 0.0
      %2306 = vmatpush1.msra.mxu0 0.0
      %2307 = vmatprep.subr.mxu0 0.0
      %2308 = vmatpush1.msra.mxu0 0.0
      %2309 = vmatprep.subr.mxu0 0.0
      %2310 = vmatpush1.msra.mxu0 0.0
      %2311 = vmatprep.subr.mxu0 0.0
      %2312 = vmatpush1.msra.mxu0 0.0
      %2313 = vmatprep.subr.mxu0 0.0
      %2314 = vmatpush1.msra.mxu0 0.0
      %2315 = vmatprep.subr.mxu0 0.0
      %2316 = vmatpush1.msra.mxu0 0.0
      %2317 = vmatprep.subr.mxu0 0.0
      %2318 = vmatpush1.msra.mxu0 0.0
      %2319 = vmatprep.subr.mxu0 0.0
      %2320 = vmatpush1.msra.mxu0 0.0
      %2321 = vmatprep.subr.mxu0 0.0
      %2322 = vmatpush1.msra.mxu0 0.0
      %2323 = vmatprep.subr.mxu0 0.0
      %2324 = vmatpush1.msra.mxu0 0.0
      %2325 = vmatprep.subr.mxu0 0.0
      %2326 = vmatpush1.msra.mxu0 0.0
      %2327 = vmatprep.subr.mxu0 0.0
      %2328 = vmatpush1.msra.mxu0 0.0
      %2329 = vmatprep.subr.mxu0 0.0
      %2330 = vmatpush1.msra.mxu0 0.0
      %2331 = vmatprep.subr.mxu0 0.0
      %2332 = vmatpush1.msra.mxu0 0.0
      %2333 = vmatprep.subr.mxu0 0.0
      %2334 = vmatpush1.msra.mxu0 0.0
      %2335 = vmatprep.subr.mxu0 0.0
      %2336 = vmatpush1.msra.mxu0 0.0
      %2337 = vmatprep.subr.mxu0 0.0
      %2338 = vmatpush1.msra.mxu0 0.0
      %2339 = vmatprep.subr.mxu0 0.0
      %2340 = vmatpush1.msra.mxu0 0.0
      %2341 = vmatprep.subr.mxu0 0.0
      %2342 = vmatpush1.msra.mxu0 0.0
      %2343 = vmatprep.subr.mxu0 0.0
      %2344 = vmatpush1.msra.mxu0 0.0
      %2345 = vmatprep.subr.mxu0 0.0
      %2346 = vmatpush1.msra.mxu0 0.0
      %2347 = vmatprep.subr.mxu0 0.0
      %2348 = vmatpush1.msra.mxu0 0.0
      %2349 = vmatprep.subr.mxu0 0.0
      %2350 = vmatpush1.msra.mxu0 0.0
      %2351 = vmatprep.subr.mxu0 0.0
      %2352 = vmatpush1.msra.mxu0 0.0
      %2353 = vmatprep.subr.mxu0 0.0
      %2354 = vmatpush1.msra.mxu0 0.0
      %2355 = vmatprep.subr.mxu0 0.0
      %2356 = vmatpush1.msra.mxu0 0.0
      %2357 = vmatprep.subr.mxu0 0.0
      %2358 = vmatpush1.msra.mxu0 0.0
      %2359 = vmatprep.subr.mxu0 0.0
      %2360 = vmatpush1.msra.mxu0 0.0
      %2361 = vmatprep.subr.mxu0 0.0
      %2362 = vmatpush1.msra.mxu0 0.0
      %2363 = vmatprep.subr.mxu0 0.0
      %2364 = vmatpush1.msra.mxu0 0.0
      %2365 = vmatprep.subr.mxu0 0.0
      %2366 = vmatpush1.msra.mxu0 0.0
      %2367 = vmatprep.mubr.f32.mxu0 0.0
      %2368 = vmatmul.mubr.f32.gmra.mrb[0].mxu0 %v2230
      %v2369 = vpop.f32.mrb[0].mxu0
      %v2370 = vadd.f32 0.0, %v2369
      %v2371 = vpop.f32.mrb[0].mxu0
      %2372 = vdwg.mxu0
      %v2373 = vadd.f32 %v2213, %v2299
      %v2374 = vadd.f32 %v2214, %v2301
      %v2375 = vadd.f32 %v2215, %v2370
      %s2376 = scalar_lea.vmem %s4, 32
      %v2377 = vld [vmem:[%s2376] sm:$0xff]
      %2378 = vrot.lane.b32.xlu0 %v1749, 109
      %v2379 = vpop.permute.xlu0 %2378
      %2380 = vrot.lane.b32.xlu0 %v1750, 109
      %v2381 = vpop.permute.xlu0 %2380
      %2382 = vrot.lane.b32.xlu0 %v1751, 109
      %v2383 = vpop.permute.xlu0 %2382
      %v2384 = vsel %vm892, %v2379, %v2381
      %v2385 = vsel %vm892, %v2381, %v2383
      %v2390 = vsel %vm273, %v2377, 0
      %2392 = vmatprep.subr.mxu0 %v2385
      %2393 = vmatpush1.msra.mxu0 %v2384
      %2394 = vmatprep.subr.mxu0 0.0
      %2395 = vmatpush1.msra.mxu0 0.0
      %2396 = vmatprep.subr.mxu0 0.0
      %2397 = vmatpush1.msra.mxu0 0.0
      %2398 = vmatprep.subr.mxu0 0.0
      %2399 = vmatpush1.msra.mxu0 0.0
      %2400 = vmatprep.subr.mxu0 0.0
      %2401 = vmatpush1.msra.mxu0 0.0
      %2402 = vmatprep.subr.mxu0 0.0
      %2403 = vmatpush1.msra.mxu0 0.0
      %2404 = vmatprep.subr.mxu0 0.0
      %2405 = vmatpush1.msra.mxu0 0.0
      %2406 = vmatprep.subr.mxu0 0.0
      %2407 = vmatpush1.msra.mxu0 0.0
      %2408 = vmatprep.subr.mxu0 0.0
      %2409 = vmatpush1.msra.mxu0 0.0
      %2410 = vmatprep.subr.mxu0 0.0
      %2411 = vmatpush1.msra.mxu0 0.0
      %2412 = vmatprep.subr.mxu0 0.0
      %2413 = vmatpush1.msra.mxu0 0.0
      %2414 = vmatprep.subr.mxu0 0.0
      %2415 = vmatpush1.msra.mxu0 0.0
      %2416 = vmatprep.subr.mxu0 0.0
      %2417 = vmatpush1.msra.mxu0 0.0
      %2418 = vmatprep.subr.mxu0 0.0
      %2419 = vmatpush1.msra.mxu0 0.0
      %2420 = vmatprep.subr.mxu0 0.0
      %2421 = vmatpush1.msra.mxu0 0.0
      %2422 = vmatprep.subr.mxu0 0.0
      %2423 = vmatpush1.msra.mxu0 0.0
      %2424 = vmatprep.subr.mxu0 0.0
      %2425 = vmatpush1.msra.mxu0 0.0
      %2426 = vmatprep.subr.mxu0 0.0
      %2427 = vmatpush1.msra.mxu0 0.0
      %2428 = vmatprep.subr.mxu0 0.0
      %2429 = vmatpush1.msra.mxu0 0.0
      %2430 = vmatprep.subr.mxu0 0.0
      %2431 = vmatpush1.msra.mxu0 0.0
      %2432 = vmatprep.subr.mxu0 0.0
      %2433 = vmatpush1.msra.mxu0 0.0
      %2434 = vmatprep.subr.mxu0 0.0
      %2435 = vmatpush1.msra.mxu0 0.0
      %2436 = vmatprep.subr.mxu0 0.0
      %2437 = vmatpush1.msra.mxu0 0.0
      %2438 = vmatprep.subr.mxu0 0.0
      %2439 = vmatpush1.msra.mxu0 0.0
      %2440 = vmatprep.subr.mxu0 0.0
      %2441 = vmatpush1.msra.mxu0 0.0
      %2442 = vmatprep.subr.mxu0 0.0
      %2443 = vmatpush1.msra.mxu0 0.0
      %2444 = vmatprep.subr.mxu0 0.0
      %2445 = vmatpush1.msra.mxu0 0.0
      %2446 = vmatprep.subr.mxu0 0.0
      %2447 = vmatpush1.msra.mxu0 0.0
      %2448 = vmatprep.subr.mxu0 0.0
      %2449 = vmatpush1.msra.mxu0 0.0
      %2450 = vmatprep.subr.mxu0 0.0
      %2451 = vmatpush1.msra.mxu0 0.0
      %2452 = vmatprep.subr.mxu0 0.0
      %2453 = vmatpush1.msra.mxu0 0.0
      %2454 = vmatprep.subr.mxu0 0.0
      %2455 = vmatpush1.msra.mxu0 0.0
      %2456 = vmatprep.mubr.f32.mxu0 0.0
      %2457 = vmatmul.mubr.f32.gmra.mrb[0].mxu0 %v2390
      %v2458 = vpop.f32.mrb[0].mxu0
      %v2459 = vadd.f32 0.0, %v2458
      %v2460 = vpop.f32.mrb[0].mxu0
      %v2461 = vadd.f32 0.0, %v2460
      %2462 = vdwg.mxu0
      %2463 = vmatprep.subr.mxu0 0.0
      %2464 = vmatpush1.msra.mxu0 %v2383
      %2465 = vmatprep.subr.mxu0 0.0
      %2466 = vmatpush1.msra.mxu0 0.0
      %2467 = vmatprep.subr.mxu0 0.0
      %2468 = vmatpush1.msra.mxu0 0.0
      %2469 = vmatprep.subr.mxu0 0.0
      %2470 = vmatpush1.msra.mxu0 0.0
      %2471 = vmatprep.subr.mxu0 0.0
      %2472 = vmatpush1.msra.mxu0 0.0
      %2473 = vmatprep.subr.mxu0 0.0
      %2474 = vmatpush1.msra.mxu0 0.0
      %2475 = vmatprep.subr.mxu0 0.0
      %2476 = vmatpush1.msra.mxu0 0.0
      %2477 = vmatprep.subr.mxu0 0.0
      %2478 = vmatpush1.msra.mxu0 0.0
      %2479 = vmatprep.subr.mxu0 0.0
      %2480 = vmatpush1.msra.mxu0 0.0
      %2481 = vmatprep.subr.mxu0 0.0
      %2482 = vmatpush1.msra.mxu0 0.0
      %2483 = vmatprep.subr.mxu0 0.0
      %2484 = vmatpush1.msra.mxu0 0.0
      %2485 = vmatprep.subr.mxu0 0.0
      %2486 = vmatpush1.msra.mxu0 0.0
      %2487 = vmatprep.subr.mxu0 0.0
      %2488 = vmatpush1.msra.mxu0 0.0
      %2489 = vmatprep.subr.mxu0 0.0
      %2490 = vmatpush1.msra.mxu0 0.0
      %2491 = vmatprep.subr.mxu0 0.0
      %2492 = vmatpush1.msra.mxu0 0.0
      %2493 = vmatprep.subr.mxu0 0.0
      %2494 = vmatpush1.msra.mxu0 0.0
      %2495 = vmatprep.subr.mxu0 0.0
      %2496 = vmatpush1.msra.mxu0 0.0
      %2497 = vmatprep.subr.mxu0 0.0
      %2498 = vmatpush1.msra.mxu0 0.0
      %2499 = vmatprep.subr.mxu0 0.0
      %2500 = vmatpush1.msra.mxu0 0.0
      %2501 = vmatprep.subr.mxu0 0.0
      %2502 = vmatpush1.msra.mxu0 0.0
      %2503 = vmatprep.subr.mxu0 0.0
      %2504 = vmatpush1.msra.mxu0 0.0
      %2505 = vmatprep.subr.mxu0 0.0
      %2506 = vmatpush1.msra.mxu0 0.0
      %2507 = vmatprep.subr.mxu0 0.0
      %2508 = vmatpush1.msra.mxu0 0.0
      %2509 = vmatprep.subr.mxu0 0.0
      %2510 = vmatpush1.msra.mxu0 0.0
      %2511 = vmatprep.subr.mxu0 0.0
      %2512 = vmatpush1.msra.mxu0 0.0
      %2513 = vmatprep.subr.mxu0 0.0
      %2514 = vmatpush1.msra.mxu0 0.0
      %2515 = vmatprep.subr.mxu0 0.0
      %2516 = vmatpush1.msra.mxu0 0.0
      %2517 = vmatprep.subr.mxu0 0.0
      %2518 = vmatpush1.msra.mxu0 0.0
      %2519 = vmatprep.subr.mxu0 0.0
      %2520 = vmatpush1.msra.mxu0 0.0
      %2521 = vmatprep.subr.mxu0 0.0
      %2522 = vmatpush1.msra.mxu0 0.0
      %2523 = vmatprep.subr.mxu0 0.0
      %2524 = vmatpush1.msra.mxu0 0.0
      %2525 = vmatprep.subr.mxu0 0.0
      %2526 = vmatpush1.msra.mxu0 0.0
      %2527 = vmatprep.mubr.f32.mxu0 0.0
      %2528 = vmatmul.mubr.f32.gmra.mrb[0].mxu0 %v2390
      %v2529 = vpop.f32.mrb[0].mxu0
      %v2530 = vadd.f32 0.0, %v2529
      %v2531 = vpop.f32.mrb[0].mxu0
      %2532 = vdwg.mxu0
      %v2533 = vadd.f32 %v2373, %v2459
      %v2534 = vadd.f32 %v2374, %v2461
      %v2535 = vadd.f32 %v2375, %v2530
      %s2536 = scalar_lea.vmem %s4, 40
      %v2537 = vld [vmem:[%s2536] sm:$0xff]
      %2538 = vrot.lane.b32.xlu0 %v1749, 108
      %v2539 = vpop.permute.xlu0 %2538
      %2540 = vrot.lane.b32.xlu0 %v1750, 108
      %v2541 = vpop.permute.xlu0 %2540
      %2542 = vrot.lane.b32.xlu0 %v1751, 108
      %v2543 = vpop.permute.xlu0 %2542
      %v2544 = vsel %vm1053, %v2539, %v2541
      %v2545 = vsel %vm1053, %v2541, %v2543
      %v2550 = vsel %vm273, %v2537, 0
      %2552 = vmatprep.subr.mxu0 %v2545
      %2553 = vmatpush1.msra.mxu0 %v2544
      %2554 = vmatprep.subr.mxu0 0.0
      %2555 = vmatpush1.msra.mxu0 0.0
      %2556 = vmatprep.subr.mxu0 0.0
      %2557 = vmatpush1.msra.mxu0 0.0
      %2558 = vmatprep.subr.mxu0 0.0
      %2559 = vmatpush1.msra.mxu0 0.0
      %2560 = vmatprep.subr.mxu0 0.0
      %2561 = vmatpush1.msra.mxu0 0.0
      %2562 = vmatprep.subr.mxu0 0.0
      %2563 = vmatpush1.msra.mxu0 0.0
      %2564 = vmatprep.subr.mxu0 0.0
      %2565 = vmatpush1.msra.mxu0 0.0
      %2566 = vmatprep.subr.mxu0 0.0
      %2567 = vmatpush1.msra.mxu0 0.0
      %2568 = vmatprep.subr.mxu0 0.0
      %2569 = vmatpush1.msra.mxu0 0.0
      %2570 = vmatprep.subr.mxu0 0.0
      %2571 = vmatpush1.msra.mxu0 0.0
      %2572 = vmatprep.subr.mxu0 0.0
      %2573 = vmatpush1.msra.mxu0 0.0
      %2574 = vmatprep.subr.mxu0 0.0
      %2575 = vmatpush1.msra.mxu0 0.0
      %2576 = vmatprep.subr.mxu0 0.0
      %2577 = vmatpush1.msra.mxu0 0.0
      %2578 = vmatprep.subr.mxu0 0.0
      %2579 = vmatpush1.msra.mxu0 0.0
      %2580 = vmatprep.subr.mxu0 0.0
      %2581 = vmatpush1.msra.mxu0 0.0
      %2582 = vmatprep.subr.mxu0 0.0
      %2583 = vmatpush1.msra.mxu0 0.0
      %2584 = vmatprep.subr.mxu0 0.0
      %2585 = vmatpush1.msra.mxu0 0.0
      %2586 = vmatprep.subr.mxu0 0.0
      %2587 = vmatpush1.msra.mxu0 0.0
      %2588 = vmatprep.subr.mxu0 0.0
      %2589 = vmatpush1.msra.mxu0 0.0
      %2590 = vmatprep.subr.mxu0 0.0
      %2591 = vmatpush1.msra.mxu0 0.0
      %2592 = vmatprep.subr.mxu0 0.0
      %2593 = vmatpush1.msra.mxu0 0.0
      %2594 = vmatprep.subr.mxu0 0.0
      %2595 = vmatpush1.msra.mxu0 0.0
      %2596 = vmatprep.subr.mxu0 0.0
      %2597 = vmatpush1.msra.mxu0 0.0
      %2598 = vmatprep.subr.mxu0 0.0
      %2599 = vmatpush1.msra.mxu0 0.0
      %2600 = vmatprep.subr.mxu0 0.0
      %2601 = vmatpush1.msra.mxu0 0.0
      %2602 = vmatprep.subr.mxu0 0.0
      %2603 = vmatpush1.msra.mxu0 0.0
      %2604 = vmatprep.subr.mxu0 0.0
      %2605 = vmatpush1.msra.mxu0 0.0
      %2606 = vmatprep.subr.mxu0 0.0
      %2607 = vmatpush1.msra.mxu0 0.0
      %2608 = vmatprep.subr.mxu0 0.0
      %2609 = vmatpush1.msra.mxu0 0.0
      %2610 = vmatprep.subr.mxu0 0.0
      %2611 = vmatpush1.msra.mxu0 0.0
      %2612 = vmatprep.subr.mxu0 0.0
      %2613 = vmatpush1.msra.mxu0 0.0
      %2614 = vmatprep.subr.mxu0 0.0
      %2615 = vmatpush1.msra.mxu0 0.0
      %2616 = vmatprep.mubr.f32.mxu0 0.0
      %2617 = vmatmul.mubr.f32.gmra.mrb[0].mxu0 %v2550
      %v2618 = vpop.f32.mrb[0].mxu0
      %v2619 = vadd.f32 0.0, %v2618
      %v2620 = vpop.f32.mrb[0].mxu0
      %v2621 = vadd.f32 0.0, %v2620
      %2622 = vdwg.mxu0
      %2623 = vmatprep.subr.mxu0 0.0
      %2624 = vmatpush1.msra.mxu0 %v2543
      %2625 = vmatprep.subr.mxu0 0.0
      %2626 = vmatpush1.msra.mxu0 0.0
      %2627 = vmatprep.subr.mxu0 0.0
      %2628 = vmatpush1.msra.mxu0 0.0
      %2629 = vmatprep.subr.mxu0 0.0
      %2630 = vmatpush1.msra.mxu0 0.0
      %2631 = vmatprep.subr.mxu0 0.0
      %2632 = vmatpush1.msra.mxu0 0.0
      %2633 = vmatprep.subr.mxu0 0.0
      %2634 = vmatpush1.msra.mxu0 0.0
      %2635 = vmatprep.subr.mxu0 0.0
      %2636 = vmatpush1.msra.mxu0 0.0
      %2637 = vmatprep.subr.mxu0 0.0
      %2638 = vmatpush1.msra.mxu0 0.0
      %2639 = vmatprep.subr.mxu0 0.0
      %2640 = vmatpush1.msra.mxu0 0.0
      %2641 = vmatprep.subr.mxu0 0.0
      %2642 = vmatpush1.msra.mxu0 0.0
      %2643 = vmatprep.subr.mxu0 0.0
      %2644 = vmatpush1.msra.mxu0 0.0
      %2645 = vmatprep.subr.mxu0 0.0
      %2646 = vmatpush1.msra.mxu0 0.0
      %2647 = vmatprep.subr.mxu0 0.0
      %2648 = vmatpush1.msra.mxu0 0.0
      %2649 = vmatprep.subr.mxu0 0.0
      %2650 = vmatpush1.msra.mxu0 0.0
      %2651 = vmatprep.subr.mxu0 0.0
      %2652 = vmatpush1.msra.mxu0 0.0
      %2653 = vmatprep.subr.mxu0 0.0
      %2654 = vmatpush1.msra.mxu0 0.0
      %2655 = vmatprep.subr.mxu0 0.0
      %2656 = vmatpush1.msra.mxu0 0.0
      %2657 = vmatprep.subr.mxu0 0.0
      %2658 = vmatpush1.msra.mxu0 0.0
      %2659 = vmatprep.subr.mxu0 0.0
      %2660 = vmatpush1.msra.mxu0 0.0
      %2661 = vmatprep.subr.mxu0 0.0
      %2662 = vmatpush1.msra.mxu0 0.0
      %2663 = vmatprep.subr.mxu0 0.0
      %2664 = vmatpush1.msra.mxu0 0.0
      %2665 = vmatprep.subr.mxu0 0.0
      %2666 = vmatpush1.msra.mxu0 0.0
      %2667 = vmatprep.subr.mxu0 0.0
      %2668 = vmatpush1.msra.mxu0 0.0
      %2669 = vmatprep.subr.mxu0 0.0
      %2670 = vmatpush1.msra.mxu0 0.0
      %2671 = vmatprep.subr.mxu0 0.0
      %2672 = vmatpush1.msra.mxu0 0.0
      %2673 = vmatprep.subr.mxu0 0.0
      %2674 = vmatpush1.msra.mxu0 0.0
      %2675 = vmatprep.subr.mxu0 0.0
      %2676 = vmatpush1.msra.mxu0 0.0
      %2677 = vmatprep.subr.mxu0 0.0
      %2678 = vmatpush1.msra.mxu0 0.0
      %2679 = vmatprep.subr.mxu0 0.0
      %2680 = vmatpush1.msra.mxu0 0.0
      %2681 = vmatprep.subr.mxu0 0.0
      %2682 = vmatpush1.msra.mxu0 0.0
      %2683 = vmatprep.subr.mxu0 0.0
      %2684 = vmatpush1.msra.mxu0 0.0
      %2685 = vmatprep.subr.mxu0 0.0
      %2686 = vmatpush1.msra.mxu0 0.0
      %2687 = vmatprep.mubr.f32.mxu0 0.0
      %2688 = vmatmul.mubr.f32.gmra.mrb[0].mxu0 %v2550
      %v2689 = vpop.f32.mrb[0].mxu0
      %v2690 = vadd.f32 0.0, %v2689
      %v2691 = vpop.f32.mrb[0].mxu0
      %2692 = vdwg.mxu0
      %v2693 = vadd.f32 %v2533, %v2619
      %v2694 = vadd.f32 %v2534, %v2621
      %v2695 = vadd.f32 %v2535, %v2690
      %s2696 = scalar_lea.vmem %s4, 48
      %v2697 = vld [vmem:[%s2696] sm:$0xff]
      %2698 = vrot.lane.b32.xlu0 %v1749, 92
      %v2699 = vpop.permute.xlu0 %2698
      %2700 = vrot.lane.b32.xlu0 %v1750, 92
      %v2701 = vpop.permute.xlu0 %2700
      %2702 = vrot.lane.b32.xlu0 %v1751, 92
      %v2703 = vpop.permute.xlu0 %2702
      %v2704 = vsel %vm1224, %v2699, %v2701
      %v2705 = vsel %vm1224, %v2701, %v2703
      %v2710 = vsel %vm273, %v2697, 0
      %2712 = vmatprep.subr.mxu0 %v2705
      %2713 = vmatpush1.msra.mxu0 %v2704
      %2714 = vmatprep.subr.mxu0 0.0
      %2715 = vmatpush1.msra.mxu0 0.0
      %2716 = vmatprep.subr.mxu0 0.0
      %2717 = vmatpush1.msra.mxu0 0.0
      %2718 = vmatprep.subr.mxu0 0.0
      %2719 = vmatpush1.msra.mxu0 0.0
      %2720 = vmatprep.subr.mxu0 0.0
      %2721 = vmatpush1.msra.mxu0 0.0
      %2722 = vmatprep.subr.mxu0 0.0
      %2723 = vmatpush1.msra.mxu0 0.0
      %2724 = vmatprep.subr.mxu0 0.0
      %2725 = vmatpush1.msra.mxu0 0.0
      %2726 = vmatprep.subr.mxu0 0.0
      %2727 = vmatpush1.msra.mxu0 0.0
      %2728 = vmatprep.subr.mxu0 0.0
      %2729 = vmatpush1.msra.mxu0 0.0
      %2730 = vmatprep.subr.mxu0 0.0
      %2731 = vmatpush1.msra.mxu0 0.0
      %2732 = vmatprep.subr.mxu0 0.0
      %2733 = vmatpush1.msra.mxu0 0.0
      %2734 = vmatprep.subr.mxu0 0.0
      %2735 = vmatpush1.msra.mxu0 0.0
      %2736 = vmatprep.subr.mxu0 0.0
      %2737 = vmatpush1.msra.mxu0 0.0
      %2738 = vmatprep.subr.mxu0 0.0
      %2739 = vmatpush1.msra.mxu0 0.0
      %2740 = vmatprep.subr.mxu0 0.0
      %2741 = vmatpush1.msra.mxu0 0.0
      %2742 = vmatprep.subr.mxu0 0.0
      %2743 = vmatpush1.msra.mxu0 0.0
      %2744 = vmatprep.subr.mxu0 0.0
      %2745 = vmatpush1.msra.mxu0 0.0
      %2746 = vmatprep.subr.mxu0 0.0
      %2747 = vmatpush1.msra.mxu0 0.0
      %2748 = vmatprep.subr.mxu0 0.0
      %2749 = vmatpush1.msra.mxu0 0.0
      %2750 = vmatprep.subr.mxu0 0.0
      %2751 = vmatpush1.msra.mxu0 0.0
      %2752 = vmatprep.subr.mxu0 0.0
      %2753 = vmatpush1.msra.mxu0 0.0
      %2754 = vmatprep.subr.mxu0 0.0
      %2755 = vmatpush1.msra.mxu0 0.0
      %2756 = vmatprep.subr.mxu0 0.0
      %2757 = vmatpush1.msra.mxu0 0.0
      %2758 = vmatprep.subr.mxu0 0.0
      %2759 = vmatpush1.msra.mxu0 0.0
      %2760 = vmatprep.subr.mxu0 0.0
      %2761 = vmatpush1.msra.mxu0 0.0
      %2762 = vmatprep.subr.mxu0 0.0
      %2763 = vmatpush1.msra.mxu0 0.0
      %2764 = vmatprep.subr.mxu0 0.0
      %2765 = vmatpush1.msra.mxu0 0.0
      %2766 = vmatprep.subr.mxu0 0.0
      %2767 = vmatpush1.msra.mxu0 0.0
      %2768 = vmatprep.subr.mxu0 0.0
      %2769 = vmatpush1.msra.mxu0 0.0
      %2770 = vmatprep.subr.mxu0 0.0
      %2771 = vmatpush1.msra.mxu0 0.0
      %2772 = vmatprep.subr.mxu0 0.0
      %2773 = vmatpush1.msra.mxu0 0.0
      %2774 = vmatprep.subr.mxu0 0.0
      %2775 = vmatpush1.msra.mxu0 0.0
      %2776 = vmatprep.mubr.f32.mxu0 0.0
      %2777 = vmatmul.mubr.f32.gmra.mrb[0].mxu0 %v2710
      %v2778 = vpop.f32.mrb[0].mxu0
      %v2779 = vadd.f32 0.0, %v2778
      %v2780 = vpop.f32.mrb[0].mxu0
      %v2781 = vadd.f32 0.0, %v2780
      %2782 = vdwg.mxu0
      %2783 = vmatprep.subr.mxu0 0.0
      %2784 = vmatpush1.msra.mxu0 %v2703
      %2785 = vmatprep.subr.mxu0 0.0
      %2786 = vmatpush1.msra.mxu0 0.0
      %2787 = vmatprep.subr.mxu0 0.0
      %2788 = vmatpush1.msra.mxu0 0.0
      %2789 = vmatprep.subr.mxu0 0.0
      %2790 = vmatpush1.msra.mxu0 0.0
      %2791 = vmatprep.subr.mxu0 0.0
      %2792 = vmatpush1.msra.mxu0 0.0
      %2793 = vmatprep.subr.mxu0 0.0
      %2794 = vmatpush1.msra.mxu0 0.0
      %2795 = vmatprep.subr.mxu0 0.0
      %2796 = vmatpush1.msra.mxu0 0.0
      %2797 = vmatprep.subr.mxu0 0.0
      %2798 = vmatpush1.msra.mxu0 0.0
      %2799 = vmatprep.subr.mxu0 0.0
      %2800 = vmatpush1.msra.mxu0 0.0
      %2801 = vmatprep.subr.mxu0 0.0
      %2802 = vmatpush1.msra.mxu0 0.0
      %2803 = vmatprep.subr.mxu0 0.0
      %2804 = vmatpush1.msra.mxu0 0.0
      %2805 = vmatprep.subr.mxu0 0.0
      %2806 = vmatpush1.msra.mxu0 0.0
      %2807 = vmatprep.subr.mxu0 0.0
      %2808 = vmatpush1.msra.mxu0 0.0
      %2809 = vmatprep.subr.mxu0 0.0
      %2810 = vmatpush1.msra.mxu0 0.0
      %2811 = vmatprep.subr.mxu0 0.0
      %2812 = vmatpush1.msra.mxu0 0.0
      %2813 = vmatprep.subr.mxu0 0.0
      %2814 = vmatpush1.msra.mxu0 0.0
      %2815 = vmatprep.subr.mxu0 0.0
      %2816 = vmatpush1.msra.mxu0 0.0
      %2817 = vmatprep.subr.mxu0 0.0
      %2818 = vmatpush1.msra.mxu0 0.0
      %2819 = vmatprep.subr.mxu0 0.0
      %2820 = vmatpush1.msra.mxu0 0.0
      %2821 = vmatprep.subr.mxu0 0.0
      %2822 = vmatpush1.msra.mxu0 0.0
      %2823 = vmatprep.subr.mxu0 0.0
      %2824 = vmatpush1.msra.mxu0 0.0
      %2825 = vmatprep.subr.mxu0 0.0
      %2826 = vmatpush1.msra.mxu0 0.0
      %2827 = vmatprep.subr.mxu0 0.0
      %2828 = vmatpush1.msra.mxu0 0.0
      %2829 = vmatprep.subr.mxu0 0.0
      %2830 = vmatpush1.msra.mxu0 0.0
      %2831 = vmatprep.subr.mxu0 0.0
      %2832 = vmatpush1.msra.mxu0 0.0
      %2833 = vmatprep.subr.mxu0 0.0
      %2834 = vmatpush1.msra.mxu0 0.0
      %2835 = vmatprep.subr.mxu0 0.0
      %2836 = vmatpush1.msra.mxu0 0.0
      %2837 = vmatprep.subr.mxu0 0.0
      %2838 = vmatpush1.msra.mxu0 0.0
      %2839 = vmatprep.subr.mxu0 0.0
      %2840 = vmatpush1.msra.mxu0 0.0
      %2841 = vmatprep.subr.mxu0 0.0
      %2842 = vmatpush1.msra.mxu0 0.0
      %2843 = vmatprep.subr.mxu0 0.0
      %2844 = vmatpush1.msra.mxu0 0.0
      %2845 = vmatprep.subr.mxu0 0.0
      %2846 = vmatpush1.msra.mxu0 0.0
      %2847 = vmatprep.mubr.f32.mxu0 0.0
      %2848 = vmatmul.mubr.f32.gmra.mrb[0].mxu0 %v2710
      %v2849 = vpop.f32.mrb[0].mxu0
      %v2850 = vadd.f32 0.0, %v2849
      %v2851 = vpop.f32.mrb[0].mxu0
      %2852 = vdwg.mxu0
      %v2853 = vadd.f32 %v2693, %v2779
      %v2854 = vadd.f32 %v2694, %v2781
      %v2855 = vadd.f32 %v2695, %v2850
      %s2856 = scalar_lea.vmem %s4, 56
      %v2857 = vld [vmem:[%s2856] sm:$0xff]
      %2858 = vrot.lane.b32.xlu0 %v1749, 91
      %v2859 = vpop.permute.xlu0 %2858
      %2860 = vrot.lane.b32.xlu0 %v1750, 91
      %v2861 = vpop.permute.xlu0 %2860
      %2862 = vrot.lane.b32.xlu0 %v1751, 91
      %v2863 = vpop.permute.xlu0 %2862
      %v2864 = vsel %vm1388, %v2859, %v2861
      %v2865 = vsel %vm1388, %v2861, %v2863
      %v2870 = vsel %vm273, %v2857, 0
      %2872 = vmatprep.subr.mxu0 %v2865
      %2873 = vmatpush1.msra.mxu0 %v2864
      %2874 = vmatprep.subr.mxu0 0.0
      %2875 = vmatpush1.msra.mxu0 0.0
      %2876 = vmatprep.subr.mxu0 0.0
      %2877 = vmatpush1.msra.mxu0 0.0
      %2878 = vmatprep.subr.mxu0 0.0
      %2879 = vmatpush1.msra.mxu0 0.0
      %2880 = vmatprep.subr.mxu0 0.0
      %2881 = vmatpush1.msra.mxu0 0.0
      %2882 = vmatprep.subr.mxu0 0.0
      %2883 = vmatpush1.msra.mxu0 0.0
      %2884 = vmatprep.subr.mxu0 0.0
      %2885 = vmatpush1.msra.mxu0 0.0
      %2886 = vmatprep.subr.mxu0 0.0
      %2887 = vmatpush1.msra.mxu0 0.0
      %2888 = vmatprep.subr.mxu0 0.0
      %2889 = vmatpush1.msra.mxu0 0.0
      %2890 = vmatprep.subr.mxu0 0.0
      %2891 = vmatpush1.msra.mxu0 0.0
      %2892 = vmatprep.subr.mxu0 0.0
      %2893 = vmatpush1.msra.mxu0 0.0
      %2894 = vmatprep.subr.mxu0 0.0
      %2895 = vmatpush1.msra.mxu0 0.0
      %2896 = vmatprep.subr.mxu0 0.0
      %2897 = vmatpush1.msra.mxu0 0.0
      %2898 = vmatprep.subr.mxu0 0.0
      %2899 = vmatpush1.msra.mxu0 0.0
      %2900 = vmatprep.subr.mxu0 0.0
      %2901 = vmatpush1.msra.mxu0 0.0
      %2902 = vmatprep.subr.mxu0 0.0
      %2903 = vmatpush1.msra.mxu0 0.0
      %2904 = vmatprep.subr.mxu0 0.0
      %2905 = vmatpush1.msra.mxu0 0.0
      %2906 = vmatprep.subr.mxu0 0.0
      %2907 = vmatpush1.msra.mxu0 0.0
      %2908 = vmatprep.subr.mxu0 0.0
      %2909 = vmatpush1.msra.mxu0 0.0
      %2910 = vmatprep.subr.mxu0 0.0
      %2911 = vmatpush1.msra.mxu0 0.0
      %2912 = vmatprep.subr.mxu0 0.0
      %2913 = vmatpush1.msra.mxu0 0.0
      %2914 = vmatprep.subr.mxu0 0.0
      %2915 = vmatpush1.msra.mxu0 0.0
      %2916 = vmatprep.subr.mxu0 0.0
      %2917 = vmatpush1.msra.mxu0 0.0
      %2918 = vmatprep.subr.mxu0 0.0
      %2919 = vmatpush1.msra.mxu0 0.0
      %2920 = vmatprep.subr.mxu0 0.0
      %2921 = vmatpush1.msra.mxu0 0.0
      %2922 = vmatprep.subr.mxu0 0.0
      %2923 = vmatpush1.msra.mxu0 0.0
      %2924 = vmatprep.subr.mxu0 0.0
      %2925 = vmatpush1.msra.mxu0 0.0
      %2926 = vmatprep.subr.mxu0 0.0
      %2927 = vmatpush1.msra.mxu0 0.0
      %2928 = vmatprep.subr.mxu0 0.0
      %2929 = vmatpush1.msra.mxu0 0.0
      %2930 = vmatprep.subr.mxu0 0.0
      %2931 = vmatpush1.msra.mxu0 0.0
      %2932 = vmatprep.subr.mxu0 0.0
      %2933 = vmatpush1.msra.mxu0 0.0
      %2934 = vmatprep.subr.mxu0 0.0
      %2935 = vmatpush1.msra.mxu0 0.0
      %2936 = vmatprep.mubr.f32.mxu0 0.0
      %2937 = vmatmul.mubr.f32.gmra.mrb[0].mxu0 %v2870
      %v2938 = vpop.f32.mrb[0].mxu0
      %v2939 = vadd.f32 0.0, %v2938
      %v2940 = vpop.f32.mrb[0].mxu0
      %v2941 = vadd.f32 0.0, %v2940
      %2942 = vdwg.mxu0
      %2943 = vmatprep.subr.mxu0 0.0
      %2944 = vmatpush1.msra.mxu0 %v2863
      %2945 = vmatprep.subr.mxu0 0.0
      %2946 = vmatpush1.msra.mxu0 0.0
      %2947 = vmatprep.subr.mxu0 0.0
      %2948 = vmatpush1.msra.mxu0 0.0
      %2949 = vmatprep.subr.mxu0 0.0
      %2950 = vmatpush1.msra.mxu0 0.0
      %2951 = vmatprep.subr.mxu0 0.0
      %2952 = vmatpush1.msra.mxu0 0.0
      %2953 = vmatprep.subr.mxu0 0.0
      %2954 = vmatpush1.msra.mxu0 0.0
      %2955 = vmatprep.subr.mxu0 0.0
      %2956 = vmatpush1.msra.mxu0 0.0
      %2957 = vmatprep.subr.mxu0 0.0
      %2958 = vmatpush1.msra.mxu0 0.0
      %2959 = vmatprep.subr.mxu0 0.0
      %2960 = vmatpush1.msra.mxu0 0.0
      %2961 = vmatprep.subr.mxu0 0.0
      %2962 = vmatpush1.msra.mxu0 0.0
      %2963 = vmatprep.subr.mxu0 0.0
      %2964 = vmatpush1.msra.mxu0 0.0
      %2965 = vmatprep.subr.mxu0 0.0
      %2966 = vmatpush1.msra.mxu0 0.0
      %2967 = vmatprep.subr.mxu0 0.0
      %2968 = vmatpush1.msra.mxu0 0.0
      %2969 = vmatprep.subr.mxu0 0.0
      %2970 = vmatpush1.msra.mxu0 0.0
      %2971 = vmatprep.subr.mxu0 0.0
      %2972 = vmatpush1.msra.mxu0 0.0
      %2973 = vmatprep.subr.mxu0 0.0
      %2974 = vmatpush1.msra.mxu0 0.0
      %2975 = vmatprep.subr.mxu0 0.0
      %2976 = vmatpush1.msra.mxu0 0.0
      %2977 = vmatprep.subr.mxu0 0.0
      %2978 = vmatpush1.msra.mxu0 0.0
      %2979 = vmatprep.subr.mxu0 0.0
      %2980 = vmatpush1.msra.mxu0 0.0
      %2981 = vmatprep.subr.mxu0 0.0
      %2982 = vmatpush1.msra.mxu0 0.0
      %2983 = vmatprep.subr.mxu0 0.0
      %2984 = vmatpush1.msra.mxu0 0.0
      %2985 = vmatprep.subr.mxu0 0.0
      %2986 = vmatpush1.msra.mxu0 0.0
      %2987 = vmatprep.subr.mxu0 0.0
      %2988 = vmatpush1.msra.mxu0 0.0
      %2989 = vmatprep.subr.mxu0 0.0
      %2990 = vmatpush1.msra.mxu0 0.0
      %2991 = vmatprep.subr.mxu0 0.0
      %2992 = vmatpush1.msra.mxu0 0.0
      %2993 = vmatprep.subr.mxu0 0.0
      %2994 = vmatpush1.msra.mxu0 0.0
      %2995 = vmatprep.subr.mxu0 0.0
      %2996 = vmatpush1.msra.mxu0 0.0
      %2997 = vmatprep.subr.mxu0 0.0
      %2998 = vmatpush1.msra.mxu0 0.0
      %2999 = vmatprep.subr.mxu0 0.0
      %3000 = vmatpush1.msra.mxu0 0.0
      %3001 = vmatprep.subr.mxu0 0.0
      %3002 = vmatpush1.msra.mxu0 0.0
      %3003 = vmatprep.subr.mxu0 0.0
      %3004 = vmatpush1.msra.mxu0 0.0
      %3005 = vmatprep.subr.mxu0 0.0
      %3006 = vmatpush1.msra.mxu0 0.0
      %3007 = vmatprep.mubr.f32.mxu0 0.0
      %3008 = vmatmul.mubr.f32.gmra.mrb[0].mxu0 %v2870
      %v3009 = vpop.f32.mrb[0].mxu0
      %v3010 = vadd.f32 0.0, %v3009
      %v3011 = vpop.f32.mrb[0].mxu0
      %3012 = vdwg.mxu0
      %v3013 = vadd.f32 %v2853, %v2939
      %v3014 = vadd.f32 %v2854, %v2941
      %v3015 = vadd.f32 %v2855, %v3010
      %s3016 = scalar_lea.vmem %s4, 64
      %v3017 = vld [vmem:[%s3016] sm:$0xff]
      %3018 = vrot.lane.b32.xlu0 %v1749, 90
      %v3019 = vpop.permute.xlu0 %3018
      %3020 = vrot.lane.b32.xlu0 %v1750, 90
      %v3021 = vpop.permute.xlu0 %3020
      %3022 = vrot.lane.b32.xlu0 %v1751, 90
      %v3023 = vpop.permute.xlu0 %3022
      %v3024 = vsel %vm1552, %v3019, %v3021
      %v3025 = vsel %vm1552, %v3021, %v3023
      %v3030 = vsel %vm273, %v3017, 0
      %3032 = vmatprep.subr.mxu0 %v3025
      %3033 = vmatpush1.msra.mxu0 %v3024
      %3034 = vmatprep.subr.mxu0 0.0
      %3035 = vmatpush1.msra.mxu0 0.0
      %3036 = vmatprep.subr.mxu0 0.0
      %3037 = vmatpush1.msra.mxu0 0.0
      %3038 = vmatprep.subr.mxu0 0.0
      %3039 = vmatpush1.msra.mxu0 0.0
      %3040 = vmatprep.subr.mxu0 0.0
      %3041 = vmatpush1.msra.mxu0 0.0
      %3042 = vmatprep.subr.mxu0 0.0
      %3043 = vmatpush1.msra.mxu0 0.0
      %3044 = vmatprep.subr.mxu0 0.0
      %3045 = vmatpush1.msra.mxu0 0.0
      %3046 = vmatprep.subr.mxu0 0.0
      %3047 = vmatpush1.msra.mxu0 0.0
      %3048 = vmatprep.subr.mxu0 0.0
      %3049 = vmatpush1.msra.mxu0 0.0
      %3050 = vmatprep.subr.mxu0 0.0
      %3051 = vmatpush1.msra.mxu0 0.0
      %3052 = vmatprep.subr.mxu0 0.0
      %3053 = vmatpush1.msra.mxu0 0.0
      %3054 = vmatprep.subr.mxu0 0.0
      %3055 = vmatpush1.msra.mxu0 0.0
      %3056 = vmatprep.subr.mxu0 0.0
      %3057 = vmatpush1.msra.mxu0 0.0
      %3058 = vmatprep.subr.mxu0 0.0
      %3059 = vmatpush1.msra.mxu0 0.0
      %3060 = vmatprep.subr.mxu0 0.0
      %3061 = vmatpush1.msra.mxu0 0.0
      %3062 = vmatprep.subr.mxu0 0.0
      %3063 = vmatpush1.msra.mxu0 0.0
      %3064 = vmatprep.subr.mxu0 0.0
      %3065 = vmatpush1.msra.mxu0 0.0
      %3066 = vmatprep.subr.mxu0 0.0
      %3067 = vmatpush1.msra.mxu0 0.0
      %3068 = vmatprep.subr.mxu0 0.0
      %3069 = vmatpush1.msra.mxu0 0.0
      %3070 = vmatprep.subr.mxu0 0.0
      %3071 = vmatpush1.msra.mxu0 0.0
      %3072 = vmatprep.subr.mxu0 0.0
      %3073 = vmatpush1.msra.mxu0 0.0
      %3074 = vmatprep.subr.mxu0 0.0
      %3075 = vmatpush1.msra.mxu0 0.0
      %3076 = vmatprep.subr.mxu0 0.0
      %3077 = vmatpush1.msra.mxu0 0.0
      %3078 = vmatprep.subr.mxu0 0.0
      %3079 = vmatpush1.msra.mxu0 0.0
      %3080 = vmatprep.subr.mxu0 0.0
      %3081 = vmatpush1.msra.mxu0 0.0
      %3082 = vmatprep.subr.mxu0 0.0
      %3083 = vmatpush1.msra.mxu0 0.0
      %3084 = vmatprep.subr.mxu0 0.0
      %3085 = vmatpush1.msra.mxu0 0.0
      %3086 = vmatprep.subr.mxu0 0.0
      %3087 = vmatpush1.msra.mxu0 0.0
      %3088 = vmatprep.subr.mxu0 0.0
      %3089 = vmatpush1.msra.mxu0 0.0
      %3090 = vmatprep.subr.mxu0 0.0
      %3091 = vmatpush1.msra.mxu0 0.0
      %3092 = vmatprep.subr.mxu0 0.0
      %3093 = vmatpush1.msra.mxu0 0.0
      %3094 = vmatprep.subr.mxu0 0.0
      %3095 = vmatpush1.msra.mxu0 0.0
      %3096 = vmatprep.mubr.f32.mxu0 0.0
      %3097 = vmatmul.mubr.f32.gmra.mrb[0].mxu0 %v3030
      %v3098 = vpop.f32.mrb[0].mxu0
      %v3099 = vadd.f32 0.0, %v3098
      %v3100 = vpop.f32.mrb[0].mxu0
      %v3101 = vadd.f32 0.0, %v3100
      %3102 = vdwg.mxu0
      %3103 = vmatprep.subr.mxu0 0.0
      %3104 = vmatpush1.msra.mxu0 %v3023
      %3105 = vmatprep.subr.mxu0 0.0
      %3106 = vmatpush1.msra.mxu0 0.0
      %3107 = vmatprep.subr.mxu0 0.0
      %3108 = vmatpush1.msra.mxu0 0.0
      %3109 = vmatprep.subr.mxu0 0.0
      %3110 = vmatpush1.msra.mxu0 0.0
      %3111 = vmatprep.subr.mxu0 0.0
      %3112 = vmatpush1.msra.mxu0 0.0
      %3113 = vmatprep.subr.mxu0 0.0
      %3114 = vmatpush1.msra.mxu0 0.0
      %3115 = vmatprep.subr.mxu0 0.0
      %3116 = vmatpush1.msra.mxu0 0.0
      %3117 = vmatprep.subr.mxu0 0.0
      %3118 = vmatpush1.msra.mxu0 0.0
      %3119 = vmatprep.subr.mxu0 0.0
      %3120 = vmatpush1.msra.mxu0 0.0
      %3121 = vmatprep.subr.mxu0 0.0
      %3122 = vmatpush1.msra.mxu0 0.0
      %3123 = vmatprep.subr.mxu0 0.0
      %3124 = vmatpush1.msra.mxu0 0.0
      %3125 = vmatprep.subr.mxu0 0.0
      %3126 = vmatpush1.msra.mxu0 0.0
      %3127 = vmatprep.subr.mxu0 0.0
      %3128 = vmatpush1.msra.mxu0 0.0
      %3129 = vmatprep.subr.mxu0 0.0
      %3130 = vmatpush1.msra.mxu0 0.0
      %3131 = vmatprep.subr.mxu0 0.0
      %3132 = vmatpush1.msra.mxu0 0.0
      %3133 = vmatprep.subr.mxu0 0.0
      %3134 = vmatpush1.msra.mxu0 0.0
      %3135 = vmatprep.subr.mxu0 0.0
      %3136 = vmatpush1.msra.mxu0 0.0
      %3137 = vmatprep.subr.mxu0 0.0
      %3138 = vmatpush1.msra.mxu0 0.0
      %3139 = vmatprep.subr.mxu0 0.0
      %3140 = vmatpush1.msra.mxu0 0.0
      %3141 = vmatprep.subr.mxu0 0.0
      %3142 = vmatpush1.msra.mxu0 0.0
      %3143 = vmatprep.subr.mxu0 0.0
      %3144 = vmatpush1.msra.mxu0 0.0
      %3145 = vmatprep.subr.mxu0 0.0
      %3146 = vmatpush1.msra.mxu0 0.0
      %3147 = vmatprep.subr.mxu0 0.0
      %3148 = vmatpush1.msra.mxu0 0.0
      %3149 = vmatprep.subr.mxu0 0.0
      %3150 = vmatpush1.msra.mxu0 0.0
      %3151 = vmatprep.subr.mxu0 0.0
      %3152 = vmatpush1.msra.mxu0 0.0
      %3153 = vmatprep.subr.mxu0 0.0
      %3154 = vmatpush1.msra.mxu0 0.0
      %3155 = vmatprep.subr.mxu0 0.0
      %3156 = vmatpush1.msra.mxu0 0.0
      %3157 = vmatprep.subr.mxu0 0.0
      %3158 = vmatpush1.msra.mxu0 0.0
      %3159 = vmatprep.subr.mxu0 0.0
      %3160 = vmatpush1.msra.mxu0 0.0
      %3161 = vmatprep.subr.mxu0 0.0
      %3162 = vmatpush1.msra.mxu0 0.0
      %3163 = vmatprep.subr.mxu0 0.0
      %3164 = vmatpush1.msra.mxu0 0.0
      %3165 = vmatprep.subr.mxu0 0.0
      %3166 = vmatpush1.msra.mxu0 0.0
      %3167 = vmatprep.mubr.f32.mxu0 0.0
      %3168 = vmatmul.mubr.f32.gmra.mrb[0].mxu0 %v3030
      %v3169 = vpop.f32.mrb[0].mxu0
      %v3170 = vadd.f32 0.0, %v3169
      %v3171 = vpop.f32.mrb[0].mxu0
      %3172 = vdwg.mxu0
      %v3173 = vadd.f32 %v3013, %v3099
      %v3174 = vadd.f32 %v3014, %v3101
      %v3175 = vadd.f32 %v3015, %v3170
      %v3176 = vld [vmem:[%s5] sm:$0xff]
      %3178 = vset.pattern.permute.xlu0 0
      %3179 = vperm.xlu0 %3178, %v3176
      %v3180 = vpop.permute.xlu0 %3179
      %v3182 = vadd.f32 %v3173, %v3180
      %v3183 = vadd.f32 %v3174, %v3180
      %v3184 = vadd.f32 %v3175, %v3180
      %vm3185 = vcmp.ge.f32.partialorder %v3182, 0.0
      %vm3186 = vcmp.ge.f32.partialorder %v3183, 0.0
      %vm3187 = vcmp.ge.f32.partialorder %v3184, 0.0
      %v3188 = vmul.f32 %v3182, 0.1
      %v3189 = vmul.f32 %v3183, 0.1
      %v3190 = vmul.f32 %v3184, 0.1
      %v3191 = vsel %vm3185, %v3182, %v3188
      %v3192 = vsel %vm3186, %v3183, %v3189
      %v3193 = vsel %vm3187, %v3184, %v3190
      %v3194 = vld [vmem:[%s246] sm:$0xff]
      %v3195 = vld [vmem:[%s246 + $0x8] sm:$0xff]
      %v3196 = vld [vmem:[%s246 + $0x10] sm:$0xff]
      %3200 = vrot.lane.b32.xlu0 %v3194, 90
      %v3201 = vpop.permute.xlu0 %3200
      %3202 = vrot.lane.b32.xlu0 %v3195, 90
      %v3203 = vpop.permute.xlu0 %3202
      %3204 = vrot.lane.b32.xlu0 %v3196, 90
      %v3205 = vpop.permute.xlu0 %3204
      %v3206 = vsel %vm1552, %v3201, %v3203
      %v3207 = vsel %vm1552, %v3203, %v3205
      %v3211 = vadd.f32 %v3191, %v3206
      %v3212 = vadd.f32 %v3192, %v3207
      %v3213 = vadd.f32 %v3193, %v3205
      %3214 = vst [vmem:[%s251] sm:$0xff] %v3211
      %3215 = vst [vmem:[%s251 + $0x8] sm:$0xff] %v3212
      %vm3216 = vcmask 556032
      %3217 = vst.msk [vmem:[%s251 + $0x10] sm:$0xff] %vm3216, %v3213
      %p3218 = scmp.lt.s32.totalorder %s17, 1
      %s3219 = scalar_select %p3218, %s17, 1
      %s3220 = smul.addr %s3219, 3
      %s3221 = smul.addr %s3220, 8
      %s3222 = scalar_lea.vmem %s6, %s3221
      // Predicated region
      $region45: #{spa_block_fwd.1} parent=43 // pred_check
        %p3223 = pneg %p166
      $region46: #{spa_block_fwd.1} parent=43 // pred_check_branch
        %3225 = sbr.rel (%p3223) target = $region48
      $region47: #{spa_block_fwd.1} parent=43 // pred_region
        _
      $region48: #{spa_block_fwd.1} parent=43 // pred_fallthru
        _
    $region44: #{spa_block_fwd.1} parent=5 // pred_fallthru
      _
    %p3226 = scmp.le.s32.totalorder 2, %s12
    // Predicated region
    $region49: #{spa_block_fwd.1} parent=5 // pred_check
      %p3227 = pneg %p3226
    $region50: #{spa_block_fwd.1} parent=5 // pred_check_branch
      %3229 = sbr.rel (%p3227) target = $region52
    $region51: #{spa_block_fwd.1} parent=5 // pred_region
      %s3230 = ssub.s32 %s12, 2
      // Predicated region
      $region53: #{spa_block_fwd.1} parent=51 // pred_check
        %p3231 = pneg %p172
      $region54: #{spa_block_fwd.1} parent=51 // pred_check_branch
        %3233 = sbr.rel (%p3231) target = $region56
      $region55: #{spa_block_fwd.1} parent=51 // pred_region
        %p3234 = scmp.lt.s32.totalorder %s18, 1
        %s3235 = scalar_select %p3234, %s18, 1
        %s3236 = smul.addr %s3235, 3
        %s3237 = smul.addr %s3236, 8
        %s3238 = scalar_lea.vmem %s6, %s3237
      $region56: #{spa_block_fwd.1} parent=51 // pred_fallthru
        _
    $region52: #{spa_block_fwd.1} parent=5 // pred_fallthru
      _
  $region6: #{spa_block_fwd.1} parent=0 // loop_footer
    %s16 = sadd.s32 1, %s12
  $region7: #{spa_block_fwd.1} parent=0 // loop_footer_branch
    %11 = sbr.rel target = $region3
  $region8: #{spa_block_fwd.1} parent=0 // loop_exit
    _

</llo_original>
